<compile_context>
chip_gen: v5e
topology: v5e:2x2
jax: 0.10.0
libtpu: 0.0.40
codegen_flags: <defaults>
</compile_context>

<pallas_src>
import jax
import jax.numpy as jnp
import numpy as np
from jax.experimental import pallas as pl
from jax.experimental.pallas import tpu as pltpu


# ------------------------------ Pallas kernel -------------------------------

def _lenet_kernel(x_ref, w1_ref, b1_ref, w2_ref, b2_ref,
                  wl1_ref, bl1_ref, wl2_ref, bl2_ref, wl3_ref, bl3_ref,
                  o_ref, acc1_ref, acc2_ref, p1_ref):
    """LeNet forward for a tile of TB samples; every matmul batched over TB.

    Layouts (TB = samples per grid step, always a multiple of 8):
      x_ref   (2, 16, TB, 128): rows parity-split (bank, row), batch-inner,
                                lanes = w*3 + c (96 used, zero padded).
      conv accumulators (2, rows*TB, 256): N packed [even ow | odd ow] halves.
      p1_ref  (2, 7, TB, 128): pooled conv1, rows parity-split, lanes = w*6 + c.
      o_ref   (TB, 128): logits in lanes 0..2, one dense store.
    """
    f32 = jnp.float32
    TB = o_ref.shape[0]
    M1 = 14 * TB            # conv1 pooled rows * batch
    M2 = 5 * TB             # conv2 pooled rows * batch

    # ---- conv1 (5x5, 3->6) + bias + ReLU + 2x2 maxpool, taps batched over TB --
    for i in range(5):                      # kernel-row taps
        w1_i = w1_ref[i]                    # (128, 256)
        for p in range(2):                  # conv-output-row parity
            bank, off = (p + i) & 1, (p + i) >> 1
            lhs = x_ref.at[bank][pl.ds(off, 14), :, :].reshape(M1, 128)
            contrib = jnp.dot(lhs, w1_i, preferred_element_type=f32)
            if i == 0:
                acc1_ref[p] = contrib
            else:
                acc1_ref[p] += contrib
    hp = jnp.maximum(acc1_ref[0], acc1_ref[1])        # pool over height
    wp = jnp.maximum(hp[:, :128], hp[:, 128:])        # pool over width (even|odd)
    p1 = jnp.maximum(wp + b1_ref[...], 0.0)           # (14*TB, 128)
    p1 = p1.reshape(7, 2, TB, 128)                    # rows -> (half, parity, b)
    p1_ref[0] = p1[:, 0]                              # even-row bank
    p1_ref[1] = p1[:, 1]                              # odd-row bank

    # ---- conv2 (5x5, 6->16) + bias + ReLU + 2x2 maxpool -----------------------
    for i in range(5):
        w2_i = w2_ref[i]                    # (128, 256)
        for p in range(2):
            bank, off = (p + i) & 1, (p + i) >> 1
            lhs = p1_ref.at[bank][pl.ds(off, 5), :, :].reshape(M2, 128)
            contrib = jnp.dot(lhs, w2_i, preferred_element_type=f32)
            if i == 0:
                acc2_ref[p] = contrib
            else:
                acc2_ref[p] += contrib
    hp2 = jnp.maximum(acc2_ref[0], acc2_ref[1])
    wp2 = jnp.maximum(hp2[:, :128], hp2[:, 128:])
    p2 = jnp.maximum(wp2 + b2_ref[...], 0.0)          # (5*TB, 128): rows = (h, b)

    # ---- linear1 (400->120): NCHW flatten folded into per-height weight slabs -
    h1 = jnp.dot(p2[0:TB, :], wl1_ref[0], preferred_element_type=f32)
    for h in range(1, 5):
        h1 = h1 + jnp.dot(p2[h * TB:(h + 1) * TB, :], wl1_ref[h],
                          preferred_element_type=f32)
    h1 = jnp.maximum(h1 + bl1_ref[...], 0.0)

    # ---- linear2 (120->84) + ReLU, linear3 (84->3); single dense store --------
    h2 = jnp.maximum(jnp.dot(h1, wl2_ref[...], preferred_element_type=f32)
                     + bl2_ref[...], 0.0)
    o_ref[...] = (jnp.dot(h2, wl3_ref[...], preferred_element_type=f32)
                  + bl3_ref[...])


# ------------------------- weight lowering / packing ------------------------

def _lower_conv_weight(w_oihw, out_w_half):
    """OIHW conv weight -> per-row-tap (128, 256) matmul matrices.

    Input lanes pack (w, ic) as l = w*IC + ic; output columns pack
    (ow parity, pooled col, oc) as n = (ow & 1)*128 + (ow // 2)*OC + oc, so
    conv_row(oh) = sum_i packed_input_row(oh + i) @ W[i] and the 2x2 width pool
    is a max of the two 128-lane halves."""
    w = np.asarray(w_oihw, np.float32)
    OC, IC, KH, KW = w.shape
    out = np.zeros((KH, 128, 256), np.float32)
    for kh in range(KH):
        for half in range(2):
            for pw in range(out_w_half):
                ow = 2 * pw + half
                col = half * 128 + pw * OC
                for kw in range(KW):
                    row = (ow + kw) * IC
                    out[kh, row:row + IC, col:col + OC] = w[:, :, kh, kw].T
    return jnp.asarray(out)


def _pack_conv_bias(b, out_w_half):
    b = np.asarray(b, np.float32)
    v = np.zeros((1, 128), np.float32)
    oc = b.shape[0]
    for pw in range(out_w_half):
        v[0, pw * oc:(pw + 1) * oc] = b
    return jnp.asarray(v)


def pack_params(params):
    """One-time lowering of PyTorch-layout params to the kernel's packed layout."""
    p = {}
    p['w1'] = _lower_conv_weight(params['conv1_w'], 14)       # (5, 128, 256)
    p['b1'] = _pack_conv_bias(params['conv1_b'], 14)          # (1, 128)
    p['w2'] = _lower_conv_weight(params['conv2_w'], 5)        # (5, 128, 256)
    p['b2'] = _pack_conv_bias(params['conv2_b'], 5)           # (1, 128)

    # linear1: PyTorch flattens NCHW (f = c*25 + h*5 + w); the kernel's pooled
    # conv2 activations arrive as rows (h, batch) with lanes w*16 + c, so the
    # permutation is folded into per-height weight slabs, K/N padded to 128.
    wl1_src = np.asarray(params['lin1_w'], np.float32)        # (400, 120)
    wl1 = np.zeros((5, 128, 128), np.float32)
    for h in range(5):
        for w in range(5):
            for c in range(16):
                wl1[h, w * 16 + c, :120] = wl1_src[c * 25 + h * 5 + w, :]
    p['wl1'] = jnp.asarray(wl1)
    p['bl1'] = jnp.asarray(np.pad(np.asarray(params['lin1_b'], np.float32),
                                  (0, 8)).reshape(1, 128))

    wl2 = np.zeros((128, 128), np.float32)
    wl2[:120, :84] = np.asarray(params['lin2_w'], np.float32)
    wl3 = np.zeros((128, 128), np.float32)
    wl3[:84, :3] = np.asarray(params['lin3_w'], np.float32)
    p['wl2'] = jnp.asarray(wl2)
    p['bl2'] = jnp.asarray(np.pad(np.asarray(params['lin2_b'], np.float32),
                                  (0, 44)).reshape(1, 128))
    p['wl3'] = jnp.asarray(wl3)
    p['bl3'] = jnp.asarray(np.pad(np.asarray(params['lin3_b'], np.float32),
                                  (0, 125)).reshape(1, 128))
    return p


# ------------------------------- forward pass --------------------------------

def _pick_tile(batch):
    """Samples per grid step: multiple of 8; for larger batches keep >=2 grid
    steps (so both v7x TensorCores get work) before growing the tile."""
    b8 = ((batch + 7) // 8) * 8
    if b8 <= 16:
        return b8
    return 16 if b8 <= 64 else 32


def my_model_forward(packed, x_nchw):
    """x_nchw: (B, 3, 32, 32) float32 (PyTorch NCHW); returns (B, 3)."""
    B = x_nchw.shape[0]
    TB = _pick_tile(B)
    Bp = ((B + TB - 1) // TB) * TB

    # (B,3,32,32) -> lanes (w*3+c) padded to 128, rows parity-split, batch-inner.
    x = jnp.transpose(x_nchw, (0, 2, 3, 1)).reshape(B, 32, 96)
    x = jnp.pad(x, ((0, Bp - B), (0, 0), (0, 32)))              # (Bp, 32, 128)
    x = jnp.transpose(x.reshape(Bp, 16, 2, 128), (2, 1, 0, 3))  # (2, 16, Bp, 128)

    out = pl.pallas_call(
        _lenet_kernel,
        out_shape=jax.ShapeDtypeStruct((Bp, 128), jnp.float32),
        grid_spec=pltpu.PrefetchScalarGridSpec(
            num_scalar_prefetch=0,
            grid=(Bp // TB,),
            in_specs=[
                pl.BlockSpec((2, 16, TB, 128), lambda b: (0, 0, b, 0)),  # input
                pl.BlockSpec((5, 128, 256), lambda b: (0, 0, 0)),  # conv1 W (lowered)
                pl.BlockSpec((1, 128), lambda b: (0, 0)),          # conv1 b (packed)
                pl.BlockSpec((5, 128, 256), lambda b: (0, 0, 0)),  # conv2 W (lowered)
                pl.BlockSpec((1, 128), lambda b: (0, 0)),          # conv2 b (packed)
                pl.BlockSpec((5, 128, 128), lambda b: (0, 0, 0)),  # lin1 W (perm, padded)
                pl.BlockSpec((1, 128), lambda b: (0, 0)),          # lin1 b
                pl.BlockSpec((128, 128), lambda b: (0, 0)),        # lin2 W (padded)
                pl.BlockSpec((1, 128), lambda b: (0, 0)),          # lin2 b
                pl.BlockSpec((128, 128), lambda b: (0, 0)),        # lin3 W (padded)
                pl.BlockSpec((1, 128), lambda b: (0, 0)),          # lin3 b
            ],
            out_specs=pl.BlockSpec((TB, 128), lambda b: (b, 0)),
            scratch_shapes=[
                pltpu.VMEM((2, 14 * TB, 256), jnp.float32),   # conv1 accumulators
                pltpu.VMEM((2, 5 * TB, 256), jnp.float32),    # conv2 accumulators
                pltpu.VMEM((2, 7, TB, 128), jnp.float32),     # pooled conv1 (parity split)
            ],
        ),
        compiler_params=pltpu.CompilerParams(
            dimension_semantics=("parallel",),
            vmem_limit_bytes=32 * 1024 * 1024,
        ),
    )(x, packed['w1'], packed['b1'], packed['w2'], packed['b2'],
      packed['wl1'], packed['bl1'], packed['wl2'], packed['bl2'],
      packed['wl3'], packed['bl3'])
    return out[:B, :3]


# --------------------------- parameter creation ------------------------------

def init_params(key):
    def uniform(k, shape, fan_in):
        bound = 1.0 / jnp.sqrt(jnp.float32(fan_in))
        return jax.random.uniform(k, shape, jnp.float32, -bound, bound)

    keys = jax.random.split(key, 10)
    return {
        'conv1_w': uniform(keys[0], (6, 3, 5, 5), 3 * 5 * 5),
        'conv1_b': uniform(keys[1], (6,), 3 * 5 * 5),
        'conv2_w': uniform(keys[2], (16, 6, 5, 5), 6 * 5 * 5),
        'conv2_b': uniform(keys[3], (16,), 6 * 5 * 5),
        'lin1_w': uniform(keys[4], (400, 120), 400),
        'lin1_b': uniform(keys[5], (120,), 400),
        'lin2_w': uniform(keys[6], (120, 84), 120),
        'lin2_b': uniform(keys[7], (84,), 120),
        'lin3_w': uniform(keys[8], (84, 3), 84),
        'lin3_b': uniform(keys[9], (3,), 84),
    }


# ------------------------------ pure-JAX reference ---------------------------

def reference_forward(params, x_nchw):
    hi = jax.lax.Precision.HIGHEST

    def conv(x, w, b):
        y = jax.lax.conv_general_dilated(
            x, w, window_strides=(1, 1), padding='VALID',
            dimension_numbers=('NCHW', 'OIHW', 'NCHW'), precision=hi)
        return y + b[None, :, None, None]

    def pool(x):
        return jax.lax.reduce_window(x, -jnp.inf, jax.lax.max,
                                     (1, 1, 2, 2), (1, 1, 2, 2), 'VALID')

    x = pool(jax.nn.relu(conv(x_nchw, params['conv1_w'], params['conv1_b'])))
    x = pool(jax.nn.relu(conv(x, params['conv2_w'], params['conv2_b'])))
    x = x.reshape(x.shape[0], -1)                               # NCHW flatten
    x = jax.nn.relu(jnp.dot(x, params['lin1_w'], precision=hi) + params['lin1_b'])
    x = jax.nn.relu(jnp.dot(x, params['lin2_w'], precision=hi) + params['lin2_b'])
    return jnp.dot(x, params['lin3_w'], precision=hi) + params['lin3_b']


if __name__ == "__main__":
    key = jax.random.PRNGKey(0)
    pkey, xkey = jax.random.split(key)
    params = init_params(pkey)
    packed = pack_params(params)

    # LeNet geometry: 3-channel 32x32 images, batch 2.
    x = jax.random.normal(xkey, (2, 3, 32, 32), dtype=jnp.float32)

    fwd = jax.jit(my_model_forward)
    out = jax.block_until_ready(fwd(packed, x))
    assert out.shape == (2, 3), out.shape
    assert out.dtype == jnp.float32

    ref = jax.block_until_ready(reference_forward(params, x))
    err = float(jnp.max(jnp.abs(out - ref)))
    assert err < 5e-2, f"max abs error vs reference: {err}"

    print("KERNEL_OK")
</pallas_src>

<mosaic_0001>
module attributes {stable_mosaic.version = 11 : i64} {
  func.func @_lenet_kernel(%arg0: i32, %arg1: memref<2x16x8x128xf32, #tpu.memory_space<vmem>>, %arg2: memref<5x128x256xf32, #tpu.memory_space<vmem>>, %arg3: memref<1x128xf32, #tpu.memory_space<vmem>>, %arg4: memref<5x128x256xf32, #tpu.memory_space<vmem>>, %arg5: memref<1x128xf32, #tpu.memory_space<vmem>>, %arg6: memref<5x128x128xf32, #tpu.memory_space<vmem>>, %arg7: memref<1x128xf32, #tpu.memory_space<vmem>>, %arg8: memref<128x128xf32, #tpu.memory_space<vmem>>, %arg9: memref<1x128xf32, #tpu.memory_space<vmem>>, %arg10: memref<128x128xf32, #tpu.memory_space<vmem>>, %arg11: memref<1x128xf32, #tpu.memory_space<vmem>>, %arg12: memref<8x128xf32, #tpu.memory_space<vmem>>, %arg13: memref<2x112x256xf32, #tpu.memory_space<vmem>>, %arg14: memref<2x40x256xf32, #tpu.memory_space<vmem>>, %arg15: memref<2x7x8x128xf32, #tpu.memory_space<vmem>>) attributes {dimension_semantics = [#tpu.dimension_semantics<parallel>], iteration_bounds = array<i64: 1>, scalar_prefetch = 0 : i64, scratch_operands = 3 : i64, tpu.core_type = #tpu.core_type<tc>, window_params = [{transform_indices = @transform_0, window_bounds = array<i64: 2, 16, 8, 128>}, {pipeline_mode = #tpu.pipeline_mode<synchronous>, transform_indices = @transform_1, window_bounds = array<i64: 5, 128, 256>}, {pipeline_mode = #tpu.pipeline_mode<synchronous>, transform_indices = @transform_2, window_bounds = array<i64: 1, 128>}, {pipeline_mode = #tpu.pipeline_mode<synchronous>, transform_indices = @transform_3, window_bounds = array<i64: 5, 128, 256>}, {pipeline_mode = #tpu.pipeline_mode<synchronous>, transform_indices = @transform_4, window_bounds = array<i64: 1, 128>}, {pipeline_mode = #tpu.pipeline_mode<synchronous>, transform_indices = @transform_5, window_bounds = array<i64: 5, 128, 128>}, {pipeline_mode = #tpu.pipeline_mode<synchronous>, transform_indices = @transform_6, window_bounds = array<i64: 1, 128>}, {pipeline_mode = #tpu.pipeline_mode<synchronous>, transform_indices = @transform_7, window_bounds = array<i64: 128, 128>}, {pipeline_mode = #tpu.pipeline_mode<synchronous>, transform_indices = @transform_8, window_bounds = array<i64: 1, 128>}, {pipeline_mode = #tpu.pipeline_mode<synchronous>, transform_indices = @transform_9, window_bounds = array<i64: 128, 128>}, {pipeline_mode = #tpu.pipeline_mode<synchronous>, transform_indices = @transform_10, window_bounds = array<i64: 1, 128>}, {transform_indices = @transform_11, window_bounds = array<i64: 8, 128>}]} {
    %c0 = arith.constant 0 : index
    %c0_0 = arith.constant 0 : index
    %c0_1 = arith.constant 0 : index
    %0 = vector.load %arg2[%c0, %c0_0, %c0_1] : memref<5x128x256xf32, #tpu.memory_space<vmem>>, vector<1x128x256xf32>
    %1 = vector.shape_cast %0 : vector<1x128x256xf32> to vector<128x256xf32>
    %c0_i32 = arith.constant 0 : i32
    %c0_i32_2 = arith.constant 0 : i32
    %c0_i32_3 = arith.constant 0 : i32
    %c0_i32_4 = arith.constant 0 : i32
    %2 = tpu.memref_slice %arg1[%c0_i32, %c0_i32_2, %c0_i32_3, %c0_i32_4] : memref<2x16x8x128xf32, #tpu.memory_space<vmem>> -> memref<1x16x8x128xf32, #tpu.memory_space<vmem>>
    %3 = tpu.memref_squeeze %2 : memref<1x16x8x128xf32, #tpu.memory_space<vmem>> -> memref<16x8x128xf32, #tpu.memory_space<vmem>>
    %c0_5 = arith.constant 0 : index
    %c0_6 = arith.constant 0 : index
    %c0_7 = arith.constant 0 : index
    %4 = vector.load %3[%c0_5, %c0_6, %c0_7] : memref<16x8x128xf32, #tpu.memory_space<vmem>>, vector<14x8x128xf32>
    %5 = vector.shape_cast %4 : vector<14x8x128xf32> to vector<112x128xf32>
    %cst = arith.constant dense<0.000000e+00> : vector<112x256xf32>
    %6 = tpu.matmul %5, %1, %cst {dimension_numbers = #tpu.dot_dimension_numbers<[1], [0], [0], [1], [0, 0, 1, 1], [], []>} : vector<112x128xf32>, vector<128x256xf32>, vector<112x256xf32> -> vector<112x256xf32>
    %c0_8 = arith.constant 0 : index
    %c0_9 = arith.constant 0 : index
    %c0_10 = arith.constant 0 : index
    %7 = vector.load %arg13[%c0_8, %c0_9, %c0_10] : memref<2x112x256xf32, #tpu.memory_space<vmem>>, vector<1x112x256xf32>
    %8 = vector.shape_cast %7 : vector<1x112x256xf32> to vector<112x256xf32>
    %9 = vector.shape_cast %6 : vector<112x256xf32> to vector<1x112x256xf32>
    tpu.vector_store %arg13[%c0_8, %c0_9, %c0_10], %9 {strides = array<i32>} : memref<2x112x256xf32, #tpu.memory_space<vmem>>, vector<1x112x256xf32>,
    %c1_i32 = arith.constant 1 : i32
    %c0_i32_11 = arith.constant 0 : i32
    %c0_i32_12 = arith.constant 0 : i32
    %c0_i32_13 = arith.constant 0 : i32
    %10 = tpu.memref_slice %arg1[%c1_i32, %c0_i32_11, %c0_i32_12, %c0_i32_13] : memref<2x16x8x128xf32, #tpu.memory_space<vmem>> -> memref<1x16x8x128xf32, #tpu.memory_space<vmem>>
    %11 = tpu.memref_squeeze %10 : memref<1x16x8x128xf32, #tpu.memory_space<vmem>> -> memref<16x8x128xf32, #tpu.memory_space<vmem>>
    %c0_14 = arith.constant 0 : index
    %c0_15 = arith.constant 0 : index
    %c0_16 = arith.constant 0 : index
    %12 = vector.load %11[%c0_14, %c0_15, %c0_16] : memref<16x8x128xf32, #tpu.memory_space<vmem>>, vector<14x8x128xf32>
    %13 = vector.shape_cast %12 : vector<14x8x128xf32> to vector<112x128xf32>
    %cst_17 = arith.constant dense<0.000000e+00> : vector<112x256xf32>
    %14 = tpu.matmul %13, %1, %cst_17 {dimension_numbers = #tpu.dot_dimension_numbers<[1], [0], [0], [1], [0, 0, 1, 1], [], []>} : vector<112x128xf32>, vector<128x256xf32>, vector<112x256xf32> -> vector<112x256xf32>
    %c1 = arith.constant 1 : index
    %c0_18 = arith.constant 0 : index
    %c0_19 = arith.constant 0 : index
    %15 = vector.load %arg13[%c1, %c0_18, %c0_19] : memref<2x112x256xf32, #tpu.memory_space<vmem>>, vector<1x112x256xf32>
    %16 = vector.shape_cast %15 : vector<1x112x256xf32> to vector<112x256xf32>
    %17 = vector.shape_cast %14 : vector<112x256xf32> to vector<1x112x256xf32>
    tpu.vector_store %arg13[%c1, %c0_18, %c0_19], %17 {strides = array<i32>} : memref<2x112x256xf32, #tpu.memory_space<vmem>>, vector<1x112x256xf32>,
    %c1_20 = arith.constant 1 : index
    %c0_21 = arith.constant 0 : index
    %c0_22 = arith.constant 0 : index
    %18 = vector.load %arg2[%c1_20, %c0_21, %c0_22] : memref<5x128x256xf32, #tpu.memory_space<vmem>>, vector<1x128x256xf32>
    %19 = vector.shape_cast %18 : vector<1x128x256xf32> to vector<128x256xf32>
    %c1_i32_23 = arith.constant 1 : i32
    %c0_i32_24 = arith.constant 0 : i32
    %c0_i32_25 = arith.constant 0 : i32
    %c0_i32_26 = arith.constant 0 : i32
    %20 = tpu.memref_slice %arg1[%c1_i32_23, %c0_i32_24, %c0_i32_25, %c0_i32_26] : memref<2x16x8x128xf32, #tpu.memory_space<vmem>> -> memref<1x16x8x128xf32, #tpu.memory_space<vmem>>
    %21 = tpu.memref_squeeze %20 : memref<1x16x8x128xf32, #tpu.memory_space<vmem>> -> memref<16x8x128xf32, #tpu.memory_space<vmem>>
    %c0_27 = arith.constant 0 : index
    %c0_28 = arith.constant 0 : index
    %c0_29 = arith.constant 0 : index
    %22 = vector.load %21[%c0_27, %c0_28, %c0_29] : memref<16x8x128xf32, #tpu.memory_space<vmem>>, vector<14x8x128xf32>
    %23 = vector.shape_cast %22 : vector<14x8x128xf32> to vector<112x128xf32>
    %cst_30 = arith.constant dense<0.000000e+00> : vector<112x256xf32>
    %24 = tpu.matmul %23, %19, %cst_30 {dimension_numbers = #tpu.dot_dimension_numbers<[1], [0], [0], [1], [0, 0, 1, 1], [], []>} : vector<112x128xf32>, vector<128x256xf32>, vector<112x256xf32> -> vector<112x256xf32>
    %c0_31 = arith.constant 0 : index
    %c0_32 = arith.constant 0 : index
    %c0_33 = arith.constant 0 : index
    %25 = vector.load %arg13[%c0_31, %c0_32, %c0_33] : memref<2x112x256xf32, #tpu.memory_space<vmem>>, vector<1x112x256xf32>
    %26 = vector.shape_cast %25 : vector<1x112x256xf32> to vector<112x256xf32>
    %27 = arith.addf %26, %24 : vector<112x256xf32>
    %c0_34 = arith.constant 0 : index
    %c0_35 = arith.constant 0 : index
    %c0_36 = arith.constant 0 : index
    %28 = vector.load %arg13[%c0_34, %c0_35, %c0_36] : memref<2x112x256xf32, #tpu.memory_space<vmem>>, vector<1x112x256xf32>
    %29 = vector.shape_cast %28 : vector<1x112x256xf32> to vector<112x256xf32>
    %30 = vector.shape_cast %27 : vector<112x256xf32> to vector<1x112x256xf32>
    tpu.vector_store %arg13[%c0_34, %c0_35, %c0_36], %30 {strides = array<i32>} : memref<2x112x256xf32, #tpu.memory_space<vmem>>, vector<1x112x256xf32>,
    %c0_i32_37 = arith.constant 0 : i32
    %c0_i32_38 = arith.constant 0 : i32
    %c0_i32_39 = arith.constant 0 : i32
    %c0_i32_40 = arith.constant 0 : i32
    %31 = tpu.memref_slice %arg1[%c0_i32_37, %c0_i32_38, %c0_i32_39, %c0_i32_40] : memref<2x16x8x128xf32, #tpu.memory_space<vmem>> -> memref<1x16x8x128xf32, #tpu.memory_space<vmem>>
    %32 = tpu.memref_squeeze %31 : memref<1x16x8x128xf32, #tpu.memory_space<vmem>> -> memref<16x8x128xf32, #tpu.memory_space<vmem>>
    %c1_41 = arith.constant 1 : index
    %c0_42 = arith.constant 0 : index
    %c0_43 = arith.constant 0 : index
    %33 = vector.load %32[%c1_41, %c0_42, %c0_43] : memref<16x8x128xf32, #tpu.memory_space<vmem>>, vector<14x8x128xf32>
    %34 = vector.shape_cast %33 : vector<14x8x128xf32> to vector<112x128xf32>
    %cst_44 = arith.constant dense<0.000000e+00> : vector<112x256xf32>
    %35 = tpu.matmul %34, %19, %cst_44 {dimension_numbers = #tpu.dot_dimension_numbers<[1], [0], [0], [1], [0, 0, 1, 1], [], []>} : vector<112x128xf32>, vector<128x256xf32>, vector<112x256xf32> -> vector<112x256xf32>
    %c1_45 = arith.constant 1 : index
    %c0_46 = arith.constant 0 : index
    %c0_47 = arith.constant 0 : index
    %36 = vector.load %arg13[%c1_45, %c0_46, %c0_47] : memref<2x112x256xf32, #tpu.memory_space<vmem>>, vector<1x112x256xf32>
    %37 = vector.shape_cast %36 : vector<1x112x256xf32> to vector<112x256xf32>
    %38 = arith.addf %37, %35 : vector<112x256xf32>
    %c1_48 = arith.constant 1 : index
    %c0_49 = arith.constant 0 : index
    %c0_50 = arith.constant 0 : index
    %39 = vector.load %arg13[%c1_48, %c0_49, %c0_50] : memref<2x112x256xf32, #tpu.memory_space<vmem>>, vector<1x112x256xf32>
    %40 = vector.shape_cast %39 : vector<1x112x256xf32> to vector<112x256xf32>
    %41 = vector.shape_cast %38 : vector<112x256xf32> to vector<1x112x256xf32>
    tpu.vector_store %arg13[%c1_48, %c0_49, %c0_50], %41 {strides = array<i32>} : memref<2x112x256xf32, #tpu.memory_space<vmem>>, vector<1x112x256xf32>,
    %c2 = arith.constant 2 : index
    %c0_51 = arith.constant 0 : index
    %c0_52 = arith.constant 0 : index
    %42 = vector.load %arg2[%c2, %c0_51, %c0_52] : memref<5x128x256xf32, #tpu.memory_space<vmem>>, vector<1x128x256xf32>
    %43 = vector.shape_cast %42 : vector<1x128x256xf32> to vector<128x256xf32>
    %c0_i32_53 = arith.constant 0 : i32
    %c0_i32_54 = arith.constant 0 : i32
    %c0_i32_55 = arith.constant 0 : i32
    %c0_i32_56 = arith.constant 0 : i32
    %44 = tpu.memref_slice %arg1[%c0_i32_53, %c0_i32_54, %c0_i32_55, %c0_i32_56] : memref<2x16x8x128xf32, #tpu.memory_space<vmem>> -> memref<1x16x8x128xf32, #tpu.memory_space<vmem>>
    %45 = tpu.memref_squeeze %44 : memref<1x16x8x128xf32, #tpu.memory_space<vmem>> -> memref<16x8x128xf32, #tpu.memory_space<vmem>>
    %c1_57 = arith.constant 1 : index
    %c0_58 = arith.constant 0 : index
    %c0_59 = arith.constant 0 : index
    %46 = vector.load %45[%c1_57, %c0_58, %c0_59] : memref<16x8x128xf32, #tpu.memory_space<vmem>>, vector<14x8x128xf32>
    %47 = vector.shape_cast %46 : vector<14x8x128xf32> to vector<112x128xf32>
    %cst_60 = arith.constant dense<0.000000e+00> : vector<112x256xf32>
    %48 = tpu.matmul %47, %43, %cst_60 {dimension_numbers = #tpu.dot_dimension_numbers<[1], [0], [0], [1], [0, 0, 1, 1], [], []>} : vector<112x128xf32>, vector<128x256xf32>, vector<112x256xf32> -> vector<112x256xf32>
    %c0_61 = arith.constant 0 : index
    %c0_62 = arith.constant 0 : index
    %c0_63 = arith.constant 0 : index
    %49 = vector.load %arg13[%c0_61, %c0_62, %c0_63] : memref<2x112x256xf32, #tpu.memory_space<vmem>>, vector<1x112x256xf32>
    %50 = vector.shape_cast %49 : vector<1x112x256xf32> to vector<112x256xf32>
    %51 = arith.addf %50, %48 : vector<112x256xf32>
    %c0_64 = arith.constant 0 : index
    %c0_65 = arith.constant 0 : index
    %c0_66 = arith.constant 0 : index
    %52 = vector.load %arg13[%c0_64, %c0_65, %c0_66] : memref<2x112x256xf32, #tpu.memory_space<vmem>>, vector<1x112x256xf32>
    %53 = vector.shape_cast %52 : vector<1x112x256xf32> to vector<112x256xf32>
    %54 = vector.shape_cast %51 : vector<112x256xf32> to vector<1x112x256xf32>
    tpu.vector_store %arg13[%c0_64, %c0_65, %c0_66], %54 {strides = array<i32>} : memref<2x112x256xf32, #tpu.memory_space<vmem>>, vector<1x112x256xf32>,
    %c1_i32_67 = arith.constant 1 : i32
    %c0_i32_68 = arith.constant 0 : i32
    %c0_i32_69 = arith.constant 0 : i32
    %c0_i32_70 = arith.constant 0 : i32
    %55 = tpu.memref_slice %arg1[%c1_i32_67, %c0_i32_68, %c0_i32_69, %c0_i32_70] : memref<2x16x8x128xf32, #tpu.memory_space<vmem>> -> memref<1x16x8x128xf32, #tpu.memory_space<vmem>>
    %56 = tpu.memref_squeeze %55 : memref<1x16x8x128xf32, #tpu.memory_space<vmem>> -> memref<16x8x128xf32, #tpu.memory_space<vmem>>
    %c1_71 = arith.constant 1 : index
    %c0_72 = arith.constant 0 : index
    %c0_73 = arith.constant 0 : index
    %57 = vector.load %56[%c1_71, %c0_72, %c0_73] : memref<16x8x128xf32, #tpu.memory_space<vmem>>, vector<14x8x128xf32>
    %58 = vector.shape_cast %57 : vector<14x8x128xf32> to vector<112x128xf32>
    %cst_74 = arith.constant dense<0.000000e+00> : vector<112x256xf32>
    %59 = tpu.matmul %58, %43, %cst_74 {dimension_numbers = #tpu.dot_dimension_numbers<[1], [0], [0], [1], [0, 0, 1, 1], [], []>} : vector<112x128xf32>, vector<128x256xf32>, vector<112x256xf32> -> vector<112x256xf32>
    %c1_75 = arith.constant 1 : index
    %c0_76 = arith.constant 0 : index
    %c0_77 = arith.constant 0 : index
    %60 = vector.load %arg13[%c1_75, %c0_76, %c0_77] : memref<2x112x256xf32, #tpu.memory_space<vmem>>, vector<1x112x256xf32>
    %61 = vector.shape_cast %60 : vector<1x112x256xf32> to vector<112x256xf32>
    %62 = arith.addf %61, %59 : vector<112x256xf32>
    %c1_78 = arith.constant 1 : index
    %c0_79 = arith.constant 0 : index
    %c0_80 = arith.constant 0 : index
    %63 = vector.load %arg13[%c1_78, %c0_79, %c0_80] : memref<2x112x256xf32, #tpu.memory_space<vmem>>, vector<1x112x256xf32>
    %64 = vector.shape_cast %63 : vector<1x112x256xf32> to vector<112x256xf32>
    %65 = vector.shape_cast %62 : vector<112x256xf32> to vector<1x112x256xf32>
    tpu.vector_store %arg13[%c1_78, %c0_79, %c0_80], %65 {strides = array<i32>} : memref<2x112x256xf32, #tpu.memory_space<vmem>>, vector<1x112x256xf32>,
    %c3 = arith.constant 3 : index
    %c0_81 = arith.constant 0 : index
    %c0_82 = arith.constant 0 : index
    %66 = vector.load %arg2[%c3, %c0_81, %c0_82] : memref<5x128x256xf32, #tpu.memory_space<vmem>>, vector<1x128x256xf32>
    %67 = vector.shape_cast %66 : vector<1x128x256xf32> to vector<128x256xf32>
    %c1_i32_83 = arith.constant 1 : i32
    %c0_i32_84 = arith.constant 0 : i32
    %c0_i32_85 = arith.constant 0 : i32
    %c0_i32_86 = arith.constant 0 : i32
    %68 = tpu.memref_slice %arg1[%c1_i32_83, %c0_i32_84, %c0_i32_85, %c0_i32_86] : memref<2x16x8x128xf32, #tpu.memory_space<vmem>> -> memref<1x16x8x128xf32, #tpu.memory_space<vmem>>
    %69 = tpu.memref_squeeze %68 : memref<1x16x8x128xf32, #tpu.memory_space<vmem>> -> memref<16x8x128xf32, #tpu.memory_space<vmem>>
    %c1_87 = arith.constant 1 : index
    %c0_88 = arith.constant 0 : index
    %c0_89 = arith.constant 0 : index
    %70 = vector.load %69[%c1_87, %c0_88, %c0_89] : memref<16x8x128xf32, #tpu.memory_space<vmem>>, vector<14x8x128xf32>
    %71 = vector.shape_cast %70 : vector<14x8x128xf32> to vector<112x128xf32>
    %cst_90 = arith.constant dense<0.000000e+00> : vector<112x256xf32>
    %72 = tpu.matmul %71, %67, %cst_90 {dimension_numbers = #tpu.dot_dimension_numbers<[1], [0], [0], [1], [0, 0, 1, 1], [], []>} : vector<112x128xf32>, vector<128x256xf32>, vector<112x256xf32> -> vector<112x256xf32>
    %c0_91 = arith.constant 0 : index
    %c0_92 = arith.constant 0 : index
    %c0_93 = arith.constant 0 : index
    %73 = vector.load %arg13[%c0_91, %c0_92, %c0_93] : memref<2x112x256xf32, #tpu.memory_space<vmem>>, vector<1x112x256xf32>
    %74 = vector.shape_cast %73 : vector<1x112x256xf32> to vector<112x256xf32>
    %75 = arith.addf %74, %72 : vector<112x256xf32>
    %c0_94 = arith.constant 0 : index
    %c0_95 = arith.constant 0 : index
    %c0_96 = arith.constant 0 : index
    %76 = vector.load %arg13[%c0_94, %c0_95, %c0_96] : memref<2x112x256xf32, #tpu.memory_space<vmem>>, vector<1x112x256xf32>
    %77 = vector.shape_cast %76 : vector<1x112x256xf32> to vector<112x256xf32>
    %78 = vector.shape_cast %75 : vector<112x256xf32> to vector<1x112x256xf32>
    tpu.vector_store %arg13[%c0_94, %c0_95, %c0_96], %78 {strides = array<i32>} : memref<2x112x256xf32, #tpu.memory_space<vmem>>, vector<1x112x256xf32>,
    %c0_i32_97 = arith.constant 0 : i32
    %c0_i32_98 = arith.constant 0 : i32
    %c0_i32_99 = arith.constant 0 : i32
    %c0_i32_100 = arith.constant 0 : i32
    %79 = tpu.memref_slice %arg1[%c0_i32_97, %c0_i32_98, %c0_i32_99, %c0_i32_100] : memref<2x16x8x128xf32, #tpu.memory_space<vmem>> -> memref<1x16x8x128xf32, #tpu.memory_space<vmem>>
    %80 = tpu.memref_squeeze %79 : memref<1x16x8x128xf32, #tpu.memory_space<vmem>> -> memref<16x8x128xf32, #tpu.memory_space<vmem>>
    %c2_101 = arith.constant 2 : index
    %c0_102 = arith.constant 0 : index
    %c0_103 = arith.constant 0 : index
    %81 = vector.load %80[%c2_101, %c0_102, %c0_103] : memref<16x8x128xf32, #tpu.memory_space<vmem>>, vector<14x8x128xf32>
    %82 = vector.shape_cast %81 : vector<14x8x128xf32> to vector<112x128xf32>
    %cst_104 = arith.constant dense<0.000000e+00> : vector<112x256xf32>
    %83 = tpu.matmul %82, %67, %cst_104 {dimension_numbers = #tpu.dot_dimension_numbers<[1], [0], [0], [1], [0, 0, 1, 1], [], []>} : vector<112x128xf32>, vector<128x256xf32>, vector<112x256xf32> -> vector<112x256xf32>
    %c1_105 = arith.constant 1 : index
    %c0_106 = arith.constant 0 : index
    %c0_107 = arith.constant 0 : index
    %84 = vector.load %arg13[%c1_105, %c0_106, %c0_107] : memref<2x112x256xf32, #tpu.memory_space<vmem>>, vector<1x112x256xf32>
    %85 = vector.shape_cast %84 : vector<1x112x256xf32> to vector<112x256xf32>
    %86 = arith.addf %85, %83 : vector<112x256xf32>
    %c1_108 = arith.constant 1 : index
    %c0_109 = arith.constant 0 : index
    %c0_110 = arith.constant 0 : index
    %87 = vector.load %arg13[%c1_108, %c0_109, %c0_110] : memref<2x112x256xf32, #tpu.memory_space<vmem>>, vector<1x112x256xf32>
    %88 = vector.shape_cast %87 : vector<1x112x256xf32> to vector<112x256xf32>
    %89 = vector.shape_cast %86 : vector<112x256xf32> to vector<1x112x256xf32>
    tpu.vector_store %arg13[%c1_108, %c0_109, %c0_110], %89 {strides = array<i32>} : memref<2x112x256xf32, #tpu.memory_space<vmem>>, vector<1x112x256xf32>,
    %c4 = arith.constant 4 : index
    %c0_111 = arith.constant 0 : index
    %c0_112 = arith.constant 0 : index
    %90 = vector.load %arg2[%c4, %c0_111, %c0_112] : memref<5x128x256xf32, #tpu.memory_space<vmem>>, vector<1x128x256xf32>
    %91 = vector.shape_cast %90 : vector<1x128x256xf32> to vector<128x256xf32>
    %c0_i32_113 = arith.constant 0 : i32
    %c0_i32_114 = arith.constant 0 : i32
    %c0_i32_115 = arith.constant 0 : i32
    %c0_i32_116 = arith.constant 0 : i32
    %92 = tpu.memref_slice %arg1[%c0_i32_113, %c0_i32_114, %c0_i32_115, %c0_i32_116] : memref<2x16x8x128xf32, #tpu.memory_space<vmem>> -> memref<1x16x8x128xf32, #tpu.memory_space<vmem>>
    %93 = tpu.memref_squeeze %92 : memref<1x16x8x128xf32, #tpu.memory_space<vmem>> -> memref<16x8x128xf32, #tpu.memory_space<vmem>>
    %c2_117 = arith.constant 2 : index
    %c0_118 = arith.constant 0 : index
    %c0_119 = arith.constant 0 : index
    %94 = vector.load %93[%c2_117, %c0_118, %c0_119] : memref<16x8x128xf32, #tpu.memory_space<vmem>>, vector<14x8x128xf32>
    %95 = vector.shape_cast %94 : vector<14x8x128xf32> to vector<112x128xf32>
    %cst_120 = arith.constant dense<0.000000e+00> : vector<112x256xf32>
    %96 = tpu.matmul %95, %91, %cst_120 {dimension_numbers = #tpu.dot_dimension_numbers<[1], [0], [0], [1], [0, 0, 1, 1], [], []>} : vector<112x128xf32>, vector<128x256xf32>, vector<112x256xf32> -> vector<112x256xf32>
    %c0_121 = arith.constant 0 : index
    %c0_122 = arith.constant 0 : index
    %c0_123 = arith.constant 0 : index
    %97 = vector.load %arg13[%c0_121, %c0_122, %c0_123] : memref<2x112x256xf32, #tpu.memory_space<vmem>>, vector<1x112x256xf32>
    %98 = vector.shape_cast %97 : vector<1x112x256xf32> to vector<112x256xf32>
    %99 = arith.addf %98, %96 : vector<112x256xf32>
    %c0_124 = arith.constant 0 : index
    %c0_125 = arith.constant 0 : index
    %c0_126 = arith.constant 0 : index
    %100 = vector.load %arg13[%c0_124, %c0_125, %c0_126] : memref<2x112x256xf32, #tpu.memory_space<vmem>>, vector<1x112x256xf32>
    %101 = vector.shape_cast %100 : vector<1x112x256xf32> to vector<112x256xf32>
    %102 = vector.shape_cast %99 : vector<112x256xf32> to vector<1x112x256xf32>
    tpu.vector_store %arg13[%c0_124, %c0_125, %c0_126], %102 {strides = array<i32>} : memref<2x112x256xf32, #tpu.memory_space<vmem>>, vector<1x112x256xf32>,
    %c1_i32_127 = arith.constant 1 : i32
    %c0_i32_128 = arith.constant 0 : i32
    %c0_i32_129 = arith.constant 0 : i32
    %c0_i32_130 = arith.constant 0 : i32
    %103 = tpu.memref_slice %arg1[%c1_i32_127, %c0_i32_128, %c0_i32_129, %c0_i32_130] : memref<2x16x8x128xf32, #tpu.memory_space<vmem>> -> memref<1x16x8x128xf32, #tpu.memory_space<vmem>>
    %104 = tpu.memref_squeeze %103 : memref<1x16x8x128xf32, #tpu.memory_space<vmem>> -> memref<16x8x128xf32, #tpu.memory_space<vmem>>
    %c2_131 = arith.constant 2 : index
    %c0_132 = arith.constant 0 : index
    %c0_133 = arith.constant 0 : index
    %105 = vector.load %104[%c2_131, %c0_132, %c0_133] : memref<16x8x128xf32, #tpu.memory_space<vmem>>, vector<14x8x128xf32>
    %106 = vector.shape_cast %105 : vector<14x8x128xf32> to vector<112x128xf32>
    %cst_134 = arith.constant dense<0.000000e+00> : vector<112x256xf32>
    %107 = tpu.matmul %106, %91, %cst_134 {dimension_numbers = #tpu.dot_dimension_numbers<[1], [0], [0], [1], [0, 0, 1, 1], [], []>} : vector<112x128xf32>, vector<128x256xf32>, vector<112x256xf32> -> vector<112x256xf32>
    %c1_135 = arith.constant 1 : index
    %c0_136 = arith.constant 0 : index
    %c0_137 = arith.constant 0 : index
    %108 = vector.load %arg13[%c1_135, %c0_136, %c0_137] : memref<2x112x256xf32, #tpu.memory_space<vmem>>, vector<1x112x256xf32>
    %109 = vector.shape_cast %108 : vector<1x112x256xf32> to vector<112x256xf32>
    %110 = arith.addf %109, %107 : vector<112x256xf32>
    %c1_138 = arith.constant 1 : index
    %c0_139 = arith.constant 0 : index
    %c0_140 = arith.constant 0 : index
    %111 = vector.load %arg13[%c1_138, %c0_139, %c0_140] : memref<2x112x256xf32, #tpu.memory_space<vmem>>, vector<1x112x256xf32>
    %112 = vector.shape_cast %111 : vector<1x112x256xf32> to vector<112x256xf32>
    %113 = vector.shape_cast %110 : vector<112x256xf32> to vector<1x112x256xf32>
    tpu.vector_store %arg13[%c1_138, %c0_139, %c0_140], %113 {strides = array<i32>} : memref<2x112x256xf32, #tpu.memory_space<vmem>>, vector<1x112x256xf32>,
    %c0_141 = arith.constant 0 : index
    %c0_142 = arith.constant 0 : index
    %c0_143 = arith.constant 0 : index
    %114 = vector.load %arg13[%c0_141, %c0_142, %c0_143] : memref<2x112x256xf32, #tpu.memory_space<vmem>>, vector<1x112x256xf32>
    %115 = vector.shape_cast %114 : vector<1x112x256xf32> to vector<112x256xf32>
    %c1_144 = arith.constant 1 : index
    %c0_145 = arith.constant 0 : index
    %c0_146 = arith.constant 0 : index
    %116 = vector.load %arg13[%c1_144, %c0_145, %c0_146] : memref<2x112x256xf32, #tpu.memory_space<vmem>>, vector<1x112x256xf32>
    %117 = vector.shape_cast %116 : vector<1x112x256xf32> to vector<112x256xf32>
    %118 = arith.maximumf %115, %117 : vector<112x256xf32>
    %119 = vector.extract_strided_slice %118 {offsets = [0, 0], sizes = [112, 128], strides = [1, 1]} : vector<112x256xf32> to vector<112x128xf32>
    %120 = vector.extract_strided_slice %118 {offsets = [0, 128], sizes = [112, 128], strides = [1, 1]} : vector<112x256xf32> to vector<112x128xf32>
    %121 = arith.maximumf %119, %120 : vector<112x128xf32>
    %c0_147 = arith.constant 0 : index
    %c0_148 = arith.constant 0 : index
    %122 = vector.load %arg3[%c0_147, %c0_148] : memref<1x128xf32, #tpu.memory_space<vmem>>, vector<1x128xf32>
    %123 = vector.broadcast %122 : vector<1x128xf32> to vector<112x128xf32>
    %124 = arith.addf %121, %123 : vector<112x128xf32>
    %cst_149 = arith.constant 0.000000e+00 : f32
    %125 = vector.broadcast %cst_149 : f32 to vector<112x128xf32>
    %126 = arith.maximumf %124, %125 : vector<112x128xf32>
    %127 = vector.shape_cast %126 : vector<112x128xf32> to vector<7x2x8x128xf32>
    %128 = vector.extract_strided_slice %127 {offsets = [0, 0, 0, 0], sizes = [7, 1, 8, 128], strides = [1, 1, 1, 1]} : vector<7x2x8x128xf32> to vector<7x1x8x128xf32>
    %129 = vector.shape_cast %128 : vector<7x1x8x128xf32> to vector<7x8x128xf32>
    %c0_150 = arith.constant 0 : index
    %c0_151 = arith.constant 0 : index
    %c0_152 = arith.constant 0 : index
    %c0_153 = arith.constant 0 : index
    %130 = vector.load %arg15[%c0_150, %c0_151, %c0_152, %c0_153] : memref<2x7x8x128xf32, #tpu.memory_space<vmem>>, vector<1x7x8x128xf32>
    %131 = vector.shape_cast %130 : vector<1x7x8x128xf32> to vector<7x8x128xf32>
    %132 = vector.shape_cast %129 : vector<7x8x128xf32> to vector<1x7x8x128xf32>
    tpu.vector_store %arg15[%c0_150, %c0_151, %c0_152, %c0_153], %132 {strides = array<i32>} : memref<2x7x8x128xf32, #tpu.memory_space<vmem>>, vector<1x7x8x128xf32>,
    %133 = vector.extract_strided_slice %127 {offsets = [0, 1, 0, 0], sizes = [7, 1, 8, 128], strides = [1, 1, 1, 1]} : vector<7x2x8x128xf32> to vector<7x1x8x128xf32>
    %134 = vector.shape_cast %133 : vector<7x1x8x128xf32> to vector<7x8x128xf32>
    %c1_154 = arith.constant 1 : index
    %c0_155 = arith.constant 0 : index
    %c0_156 = arith.constant 0 : index
    %c0_157 = arith.constant 0 : index
    %135 = vector.load %arg15[%c1_154, %c0_155, %c0_156, %c0_157] : memref<2x7x8x128xf32, #tpu.memory_space<vmem>>, vector<1x7x8x128xf32>
    %136 = vector.shape_cast %135 : vector<1x7x8x128xf32> to vector<7x8x128xf32>
    %137 = vector.shape_cast %134 : vector<7x8x128xf32> to vector<1x7x8x128xf32>
    tpu.vector_store %arg15[%c1_154, %c0_155, %c0_156, %c0_157], %137 {strides = array<i32>} : memref<2x7x8x128xf32, #tpu.memory_space<vmem>>, vector<1x7x8x128xf32>,
    %c0_158 = arith.constant 0 : index
    %c0_159 = arith.constant 0 : index
    %c0_160 = arith.constant 0 : index
    %138 = vector.load %arg4[%c0_158, %c0_159, %c0_160] : memref<5x128x256xf32, #tpu.memory_space<vmem>>, vector<1x128x256xf32>
    %139 = vector.shape_cast %138 : vector<1x128x256xf32> to vector<128x256xf32>
    %c0_i32_161 = arith.constant 0 : i32
    %c0_i32_162 = arith.constant 0 : i32
    %c0_i32_163 = arith.constant 0 : i32
    %c0_i32_164 = arith.constant 0 : i32
    %140 = tpu.memref_slice %arg15[%c0_i32_161, %c0_i32_162, %c0_i32_163, %c0_i32_164] : memref<2x7x8x128xf32, #tpu.memory_space<vmem>> -> memref<1x7x8x128xf32, #tpu.memory_space<vmem>>
    %141 = tpu.memref_squeeze %140 : memref<1x7x8x128xf32, #tpu.memory_space<vmem>> -> memref<7x8x128xf32, #tpu.memory_space<vmem>>
    %c0_165 = arith.constant 0 : index
    %c0_166 = arith.constant 0 : index
    %c0_167 = arith.constant 0 : index
    %142 = vector.load %141[%c0_165, %c0_166, %c0_167] : memref<7x8x128xf32, #tpu.memory_space<vmem>>, vector<5x8x128xf32>
    %143 = vector.shape_cast %142 : vector<5x8x128xf32> to vector<40x128xf32>
    %cst_168 = arith.constant dense<0.000000e+00> : vector<40x256xf32>
    %144 = tpu.matmul %143, %139, %cst_168 {dimension_numbers = #tpu.dot_dimension_numbers<[1], [0], [0], [1], [0, 0, 1, 1], [], []>} : vector<40x128xf32>, vector<128x256xf32>, vector<40x256xf32> -> vector<40x256xf32>
    %c0_169 = arith.constant 0 : index
    %c0_170 = arith.constant 0 : index
    %c0_171 = arith.constant 0 : index
    %145 = vector.load %arg14[%c0_169, %c0_170, %c0_171] : memref<2x40x256xf32, #tpu.memory_space<vmem>>, vector<1x40x256xf32>
    %146 = vector.shape_cast %145 : vector<1x40x256xf32> to vector<40x256xf32>
    %147 = vector.shape_cast %144 : vector<40x256xf32> to vector<1x40x256xf32>
    tpu.vector_store %arg14[%c0_169, %c0_170, %c0_171], %147 {strides = array<i32>} : memref<2x40x256xf32, #tpu.memory_space<vmem>>, vector<1x40x256xf32>,
    %c1_i32_172 = arith.constant 1 : i32
    %c0_i32_173 = arith.constant 0 : i32
    %c0_i32_174 = arith.constant 0 : i32
    %c0_i32_175 = arith.constant 0 : i32
    %148 = tpu.memref_slice %arg15[%c1_i32_172, %c0_i32_173, %c0_i32_174, %c0_i32_175] : memref<2x7x8x128xf32, #tpu.memory_space<vmem>> -> memref<1x7x8x128xf32, #tpu.memory_space<vmem>>
    %149 = tpu.memref_squeeze %148 : memref<1x7x8x128xf32, #tpu.memory_space<vmem>> -> memref<7x8x128xf32, #tpu.memory_space<vmem>>
    %c0_176 = arith.constant 0 : index
    %c0_177 = arith.constant 0 : index
    %c0_178 = arith.constant 0 : index
    %150 = vector.load %149[%c0_176, %c0_177, %c0_178] : memref<7x8x128xf32, #tpu.memory_space<vmem>>, vector<5x8x128xf32>
    %151 = vector.shape_cast %150 : vector<5x8x128xf32> to vector<40x128xf32>
    %cst_179 = arith.constant dense<0.000000e+00> : vector<40x256xf32>
    %152 = tpu.matmul %151, %139, %cst_179 {dimension_numbers = #tpu.dot_dimension_numbers<[1], [0], [0], [1], [0, 0, 1, 1], [], []>} : vector<40x128xf32>, vector<128x256xf32>, vector<40x256xf32> -> vector<40x256xf32>
    %c1_180 = arith.constant 1 : index
    %c0_181 = arith.constant 0 : index
    %c0_182 = arith.constant 0 : index
    %153 = vector.load %arg14[%c1_180, %c0_181, %c0_182] : memref<2x40x256xf32, #tpu.memory_space<vmem>>, vector<1x40x256xf32>
    %154 = vector.shape_cast %153 : vector<1x40x256xf32> to vector<40x256xf32>
    %155 = vector.shape_cast %152 : vector<40x256xf32> to vector<1x40x256xf32>
    tpu.vector_store %arg14[%c1_180, %c0_181, %c0_182], %155 {strides = array<i32>} : memref<2x40x256xf32, #tpu.memory_space<vmem>>, vector<1x40x256xf32>,
    %c1_183 = arith.constant 1 : index
    %c0_184 = arith.constant 0 : index
    %c0_185 = arith.constant 0 : index
    %156 = vector.load %arg4[%c1_183, %c0_184, %c0_185] : memref<5x128x256xf32, #tpu.memory_space<vmem>>, vector<1x128x256xf32>
    %157 = vector.shape_cast %156 : vector<1x128x256xf32> to vector<128x256xf32>
    %c1_i32_186 = arith.constant 1 : i32
    %c0_i32_187 = arith.constant 0 : i32
    %c0_i32_188 = arith.constant 0 : i32
    %c0_i32_189 = arith.constant 0 : i32
    %158 = tpu.memref_slice %arg15[%c1_i32_186, %c0_i32_187, %c0_i32_188, %c0_i32_189] : memref<2x7x8x128xf32, #tpu.memory_space<vmem>> -> memref<1x7x8x128xf32, #tpu.memory_space<vmem>>
    %159 = tpu.memref_squeeze %158 : memref<1x7x8x128xf32, #tpu.memory_space<vmem>> -> memref<7x8x128xf32, #tpu.memory_space<vmem>>
    %c0_190 = arith.constant 0 : index
    %c0_191 = arith.constant 0 : index
    %c0_192 = arith.constant 0 : index
    %160 = vector.load %159[%c0_190, %c0_191, %c0_192] : memref<7x8x128xf32, #tpu.memory_space<vmem>>, vector<5x8x128xf32>
    %161 = vector.shape_cast %160 : vector<5x8x128xf32> to vector<40x128xf32>
    %cst_193 = arith.constant dense<0.000000e+00> : vector<40x256xf32>
    %162 = tpu.matmul %161, %157, %cst_193 {dimension_numbers = #tpu.dot_dimension_numbers<[1], [0], [0], [1], [0, 0, 1, 1], [], []>} : vector<40x128xf32>, vector<128x256xf32>, vector<40x256xf32> -> vector<40x256xf32>
    %c0_194 = arith.constant 0 : index
    %c0_195 = arith.constant 0 : index
    %c0_196 = arith.constant 0 : index
    %163 = vector.load %arg14[%c0_194, %c0_195, %c0_196] : memref<2x40x256xf32, #tpu.memory_space<vmem>>, vector<1x40x256xf32>
    %164 = vector.shape_cast %163 : vector<1x40x256xf32> to vector<40x256xf32>
    %165 = arith.addf %164, %162 : vector<40x256xf32>
    %c0_197 = arith.constant 0 : index
    %c0_198 = arith.constant 0 : index
    %c0_199 = arith.constant 0 : index
    %166 = vector.load %arg14[%c0_197, %c0_198, %c0_199] : memref<2x40x256xf32, #tpu.memory_space<vmem>>, vector<1x40x256xf32>
    %167 = vector.shape_cast %166 : vector<1x40x256xf32> to vector<40x256xf32>
    %168 = vector.shape_cast %165 : vector<40x256xf32> to vector<1x40x256xf32>
    tpu.vector_store %arg14[%c0_197, %c0_198, %c0_199], %168 {strides = array<i32>} : memref<2x40x256xf32, #tpu.memory_space<vmem>>, vector<1x40x256xf32>,
    %c0_i32_200 = arith.constant 0 : i32
    %c0_i32_201 = arith.constant 0 : i32
    %c0_i32_202 = arith.constant 0 : i32
    %c0_i32_203 = arith.constant 0 : i32
    %169 = tpu.memref_slice %arg15[%c0_i32_200, %c0_i32_201, %c0_i32_202, %c0_i32_203] : memref<2x7x8x128xf32, #tpu.memory_space<vmem>> -> memref<1x7x8x128xf32, #tpu.memory_space<vmem>>
    %170 = tpu.memref_squeeze %169 : memref<1x7x8x128xf32, #tpu.memory_space<vmem>> -> memref<7x8x128xf32, #tpu.memory_space<vmem>>
    %c1_204 = arith.constant 1 : index
    %c0_205 = arith.constant 0 : index
    %c0_206 = arith.constant 0 : index
    %171 = vector.load %170[%c1_204, %c0_205, %c0_206] : memref<7x8x128xf32, #tpu.memory_space<vmem>>, vector<5x8x128xf32>
    %172 = vector.shape_cast %171 : vector<5x8x128xf32> to vector<40x128xf32>
    %cst_207 = arith.constant dense<0.000000e+00> : vector<40x256xf32>
    %173 = tpu.matmul %172, %157, %cst_207 {dimension_numbers = #tpu.dot_dimension_numbers<[1], [0], [0], [1], [0, 0, 1, 1], [], []>} : vector<40x128xf32>, vector<128x256xf32>, vector<40x256xf32> -> vector<40x256xf32>
    %c1_208 = arith.constant 1 : index
    %c0_209 = arith.constant 0 : index
    %c0_210 = arith.constant 0 : index
    %174 = vector.load %arg14[%c1_208, %c0_209, %c0_210] : memref<2x40x256xf32, #tpu.memory_space<vmem>>, vector<1x40x256xf32>
    %175 = vector.shape_cast %174 : vector<1x40x256xf32> to vector<40x256xf32>
    %176 = arith.addf %175, %173 : vector<40x256xf32>
    %c1_211 = arith.constant 1 : index
    %c0_212 = arith.constant 0 : index
    %c0_213 = arith.constant 0 : index
    %177 = vector.load %arg14[%c1_211, %c0_212, %c0_213] : memref<2x40x256xf32, #tpu.memory_space<vmem>>, vector<1x40x256xf32>
    %178 = vector.shape_cast %177 : vector<1x40x256xf32> to vector<40x256xf32>
    %179 = vector.shape_cast %176 : vector<40x256xf32> to vector<1x40x256xf32>
    tpu.vector_store %arg14[%c1_211, %c0_212, %c0_213], %179 {strides = array<i32>} : memref<2x40x256xf32, #tpu.memory_space<vmem>>, vector<1x40x256xf32>,
    %c2_214 = arith.constant 2 : index
    %c0_215 = arith.constant 0 : index
    %c0_216 = arith.constant 0 : index
    %180 = vector.load %arg4[%c2_214, %c0_215, %c0_216] : memref<5x128x256xf32, #tpu.memory_space<vmem>>, vector<1x128x256xf32>
    %181 = vector.shape_cast %180 : vector<1x128x256xf32> to vector<128x256xf32>
    %c0_i32_217 = arith.constant 0 : i32
    %c0_i32_218 = arith.constant 0 : i32
    %c0_i32_219 = arith.constant 0 : i32
    %c0_i32_220 = arith.constant 0 : i32
    %182 = tpu.memref_slice %arg15[%c0_i32_217, %c0_i32_218, %c0_i32_219, %c0_i32_220] : memref<2x7x8x128xf32, #tpu.memory_space<vmem>> -> memref<1x7x8x128xf32, #tpu.memory_space<vmem>>
    %183 = tpu.memref_squeeze %182 : memref<1x7x8x128xf32, #tpu.memory_space<vmem>> -> memref<7x8x128xf32, #tpu.memory_space<vmem>>
    %c1_221 = arith.constant 1 : index
    %c0_222 = arith.constant 0 : index
    %c0_223 = arith.constant 0 : index
    %184 = vector.load %183[%c1_221, %c0_222, %c0_223] : memref<7x8x128xf32, #tpu.memory_space<vmem>>, vector<5x8x128xf32>
    %185 = vector.shape_cast %184 : vector<5x8x128xf32> to vector<40x128xf32>
    %cst_224 = arith.constant dense<0.000000e+00> : vector<40x256xf32>
    %186 = tpu.matmul %185, %181, %cst_224 {dimension_numbers = #tpu.dot_dimension_numbers<[1], [0], [0], [1], [0, 0, 1, 1], [], []>} : vector<40x128xf32>, vector<128x256xf32>, vector<40x256xf32> -> vector<40x256xf32>
    %c0_225 = arith.constant 0 : index
    %c0_226 = arith.constant 0 : index
    %c0_227 = arith.constant 0 : index
    %187 = vector.load %arg14[%c0_225, %c0_226, %c0_227] : memref<2x40x256xf32, #tpu.memory_space<vmem>>, vector<1x40x256xf32>
    %188 = vector.shape_cast %187 : vector<1x40x256xf32> to vector<40x256xf32>
    %189 = arith.addf %188, %186 : vector<40x256xf32>
    %c0_228 = arith.constant 0 : index
    %c0_229 = arith.constant 0 : index
    %c0_230 = arith.constant 0 : index
    %190 = vector.load %arg14[%c0_228, %c0_229, %c0_230] : memref<2x40x256xf32, #tpu.memory_space<vmem>>, vector<1x40x256xf32>
    %191 = vector.shape_cast %190 : vector<1x40x256xf32> to vector<40x256xf32>
    %192 = vector.shape_cast %189 : vector<40x256xf32> to vector<1x40x256xf32>
    tpu.vector_store %arg14[%c0_228, %c0_229, %c0_230], %192 {strides = array<i32>} : memref<2x40x256xf32, #tpu.memory_space<vmem>>, vector<1x40x256xf32>,
    %c1_i32_231 = arith.constant 1 : i32
    %c0_i32_232 = arith.constant 0 : i32
    %c0_i32_233 = arith.constant 0 : i32
    %c0_i32_234 = arith.constant 0 : i32
    %193 = tpu.memref_slice %arg15[%c1_i32_231, %c0_i32_232, %c0_i32_233, %c0_i32_234] : memref<2x7x8x128xf32, #tpu.memory_space<vmem>> -> memref<1x7x8x128xf32, #tpu.memory_space<vmem>>
    %194 = tpu.memref_squeeze %193 : memref<1x7x8x128xf32, #tpu.memory_space<vmem>> -> memref<7x8x128xf32, #tpu.memory_space<vmem>>
    %c1_235 = arith.constant 1 : index
    %c0_236 = arith.constant 0 : index
    %c0_237 = arith.constant 0 : index
    %195 = vector.load %194[%c1_235, %c0_236, %c0_237] : memref<7x8x128xf32, #tpu.memory_space<vmem>>, vector<5x8x128xf32>
    %196 = vector.shape_cast %195 : vector<5x8x128xf32> to vector<40x128xf32>
    %cst_238 = arith.constant dense<0.000000e+00> : vector<40x256xf32>
    %197 = tpu.matmul %196, %181, %cst_238 {dimension_numbers = #tpu.dot_dimension_numbers<[1], [0], [0], [1], [0, 0, 1, 1], [], []>} : vector<40x128xf32>, vector<128x256xf32>, vector<40x256xf32> -> vector<40x256xf32>
    %c1_239 = arith.constant 1 : index
    %c0_240 = arith.constant 0 : index
    %c0_241 = arith.constant 0 : index
    %198 = vector.load %arg14[%c1_239, %c0_240, %c0_241] : memref<2x40x256xf32, #tpu.memory_space<vmem>>, vector<1x40x256xf32>
    %199 = vector.shape_cast %198 : vector<1x40x256xf32> to vector<40x256xf32>
    %200 = arith.addf %199, %197 : vector<40x256xf32>
    %c1_242 = arith.constant 1 : index
    %c0_243 = arith.constant 0 : index
    %c0_244 = arith.constant 0 : index
    %201 = vector.load %arg14[%c1_242, %c0_243, %c0_244] : memref<2x40x256xf32, #tpu.memory_space<vmem>>, vector<1x40x256xf32>
    %202 = vector.shape_cast %201 : vector<1x40x256xf32> to vector<40x256xf32>
    %203 = vector.shape_cast %200 : vector<40x256xf32> to vector<1x40x256xf32>
    tpu.vector_store %arg14[%c1_242, %c0_243, %c0_244], %203 {strides = array<i32>} : memref<2x40x256xf32, #tpu.memory_space<vmem>>, vector<1x40x256xf32>,
    %c3_245 = arith.constant 3 : index
    %c0_246 = arith.constant 0 : index
    %c0_247 = arith.constant 0 : index
    %204 = vector.load %arg4[%c3_245, %c0_246, %c0_247] : memref<5x128x256xf32, #tpu.memory_space<vmem>>, vector<1x128x256xf32>
    %205 = vector.shape_cast %204 : vector<1x128x256xf32> to vector<128x256xf32>
    %c1_i32_248 = arith.constant 1 : i32
    %c0_i32_249 = arith.constant 0 : i32
    %c0_i32_250 = arith.constant 0 : i32
    %c0_i32_251 = arith.constant 0 : i32
    %206 = tpu.memref_slice %arg15[%c1_i32_248, %c0_i32_249, %c0_i32_250, %c0_i32_251] : memref<2x7x8x128xf32, #tpu.memory_space<vmem>> -> memref<1x7x8x128xf32, #tpu.memory_space<vmem>>
    %207 = tpu.memref_squeeze %206 : memref<1x7x8x128xf32, #tpu.memory_space<vmem>> -> memref<7x8x128xf32, #tpu.memory_space<vmem>>
    %c1_252 = arith.constant 1 : index
    %c0_253 = arith.constant 0 : index
    %c0_254 = arith.constant 0 : index
    %208 = vector.load %207[%c1_252, %c0_253, %c0_254] : memref<7x8x128xf32, #tpu.memory_space<vmem>>, vector<5x8x128xf32>
    %209 = vector.shape_cast %208 : vector<5x8x128xf32> to vector<40x128xf32>
    %cst_255 = arith.constant dense<0.000000e+00> : vector<40x256xf32>
    %210 = tpu.matmul %209, %205, %cst_255 {dimension_numbers = #tpu.dot_dimension_numbers<[1], [0], [0], [1], [0, 0, 1, 1], [], []>} : vector<40x128xf32>, vector<128x256xf32>, vector<40x256xf32> -> vector<40x256xf32>
    %c0_256 = arith.constant 0 : index
    %c0_257 = arith.constant 0 : index
    %c0_258 = arith.constant 0 : index
    %211 = vector.load %arg14[%c0_256, %c0_257, %c0_258] : memref<2x40x256xf32, #tpu.memory_space<vmem>>, vector<1x40x256xf32>
    %212 = vector.shape_cast %211 : vector<1x40x256xf32> to vector<40x256xf32>
    %213 = arith.addf %212, %210 : vector<40x256xf32>
    %c0_259 = arith.constant 0 : index
    %c0_260 = arith.constant 0 : index
    %c0_261 = arith.constant 0 : index
    %214 = vector.load %arg14[%c0_259, %c0_260, %c0_261] : memref<2x40x256xf32, #tpu.memory_space<vmem>>, vector<1x40x256xf32>
    %215 = vector.shape_cast %214 : vector<1x40x256xf32> to vector<40x256xf32>
    %216 = vector.shape_cast %213 : vector<40x256xf32> to vector<1x40x256xf32>
    tpu.vector_store %arg14[%c0_259, %c0_260, %c0_261], %216 {strides = array<i32>} : memref<2x40x256xf32, #tpu.memory_space<vmem>>, vector<1x40x256xf32>,
    %c0_i32_262 = arith.constant 0 : i32
    %c0_i32_263 = arith.constant 0 : i32
    %c0_i32_264 = arith.constant 0 : i32
    %c0_i32_265 = arith.constant 0 : i32
    %217 = tpu.memref_slice %arg15[%c0_i32_262, %c0_i32_263, %c0_i32_264, %c0_i32_265] : memref<2x7x8x128xf32, #tpu.memory_space<vmem>> -> memref<1x7x8x128xf32, #tpu.memory_space<vmem>>
    %218 = tpu.memref_squeeze %217 : memref<1x7x8x128xf32, #tpu.memory_space<vmem>> -> memref<7x8x128xf32, #tpu.memory_space<vmem>>
    %c2_266 = arith.constant 2 : index
    %c0_267 = arith.constant 0 : index
    %c0_268 = arith.constant 0 : index
    %219 = vector.load %218[%c2_266, %c0_267, %c0_268] : memref<7x8x128xf32, #tpu.memory_space<vmem>>, vector<5x8x128xf32>
    %220 = vector.shape_cast %219 : vector<5x8x128xf32> to vector<40x128xf32>
    %cst_269 = arith.constant dense<0.000000e+00> : vector<40x256xf32>
    %221 = tpu.matmul %220, %205, %cst_269 {dimension_numbers = #tpu.dot_dimension_numbers<[1], [0], [0], [1], [0, 0, 1, 1], [], []>} : vector<40x128xf32>, vector<128x256xf32>, vector<40x256xf32> -> vector<40x256xf32>
    %c1_270 = arith.constant 1 : index
    %c0_271 = arith.constant 0 : index
    %c0_272 = arith.constant 0 : index
    %222 = vector.load %arg14[%c1_270, %c0_271, %c0_272] : memref<2x40x256xf32, #tpu.memory_space<vmem>>, vector<1x40x256xf32>
    %223 = vector.shape_cast %222 : vector<1x40x256xf32> to vector<40x256xf32>
    %224 = arith.addf %223, %221 : vector<40x256xf32>
    %c1_273 = arith.constant 1 : index
    %c0_274 = arith.constant 0 : index
    %c0_275 = arith.constant 0 : index
    %225 = vector.load %arg14[%c1_273, %c0_274, %c0_275] : memref<2x40x256xf32, #tpu.memory_space<vmem>>, vector<1x40x256xf32>
    %226 = vector.shape_cast %225 : vector<1x40x256xf32> to vector<40x256xf32>
    %227 = vector.shape_cast %224 : vector<40x256xf32> to vector<1x40x256xf32>
    tpu.vector_store %arg14[%c1_273, %c0_274, %c0_275], %227 {strides = array<i32>} : memref<2x40x256xf32, #tpu.memory_space<vmem>>, vector<1x40x256xf32>,
    %c4_276 = arith.constant 4 : index
    %c0_277 = arith.constant 0 : index
    %c0_278 = arith.constant 0 : index
    %228 = vector.load %arg4[%c4_276, %c0_277, %c0_278] : memref<5x128x256xf32, #tpu.memory_space<vmem>>, vector<1x128x256xf32>
    %229 = vector.shape_cast %228 : vector<1x128x256xf32> to vector<128x256xf32>
    %c0_i32_279 = arith.constant 0 : i32
    %c0_i32_280 = arith.constant 0 : i32
    %c0_i32_281 = arith.constant 0 : i32
    %c0_i32_282 = arith.constant 0 : i32
    %230 = tpu.memref_slice %arg15[%c0_i32_279, %c0_i32_280, %c0_i32_281, %c0_i32_282] : memref<2x7x8x128xf32, #tpu.memory_space<vmem>> -> memref<1x7x8x128xf32, #tpu.memory_space<vmem>>
    %231 = tpu.memref_squeeze %230 : memref<1x7x8x128xf32, #tpu.memory_space<vmem>> -> memref<7x8x128xf32, #tpu.memory_space<vmem>>
    %c2_283 = arith.constant 2 : index
    %c0_284 = arith.constant 0 : index
    %c0_285 = arith.constant 0 : index
    %232 = vector.load %231[%c2_283, %c0_284, %c0_285] : memref<7x8x128xf32, #tpu.memory_space<vmem>>, vector<5x8x128xf32>
    %233 = vector.shape_cast %232 : vector<5x8x128xf32> to vector<40x128xf32>
    %cst_286 = arith.constant dense<0.000000e+00> : vector<40x256xf32>
    %234 = tpu.matmul %233, %229, %cst_286 {dimension_numbers = #tpu.dot_dimension_numbers<[1], [0], [0], [1], [0, 0, 1, 1], [], []>} : vector<40x128xf32>, vector<128x256xf32>, vector<40x256xf32> -> vector<40x256xf32>
    %c0_287 = arith.constant 0 : index
    %c0_288 = arith.constant 0 : index
    %c0_289 = arith.constant 0 : index
    %235 = vector.load %arg14[%c0_287, %c0_288, %c0_289] : memref<2x40x256xf32, #tpu.memory_space<vmem>>, vector<1x40x256xf32>
    %236 = vector.shape_cast %235 : vector<1x40x256xf32> to vector<40x256xf32>
    %237 = arith.addf %236, %234 : vector<40x256xf32>
    %c0_290 = arith.constant 0 : index
    %c0_291 = arith.constant 0 : index
    %c0_292 = arith.constant 0 : index
    %238 = vector.load %arg14[%c0_290, %c0_291, %c0_292] : memref<2x40x256xf32, #tpu.memory_space<vmem>>, vector<1x40x256xf32>
    %239 = vector.shape_cast %238 : vector<1x40x256xf32> to vector<40x256xf32>
    %240 = vector.shape_cast %237 : vector<40x256xf32> to vector<1x40x256xf32>
    tpu.vector_store %arg14[%c0_290, %c0_291, %c0_292], %240 {strides = array<i32>} : memref<2x40x256xf32, #tpu.memory_space<vmem>>, vector<1x40x256xf32>,
    %c1_i32_293 = arith.constant 1 : i32
    %c0_i32_294 = arith.constant 0 : i32
    %c0_i32_295 = arith.constant 0 : i32
    %c0_i32_296 = arith.constant 0 : i32
    %241 = tpu.memref_slice %arg15[%c1_i32_293, %c0_i32_294, %c0_i32_295, %c0_i32_296] : memref<2x7x8x128xf32, #tpu.memory_space<vmem>> -> memref<1x7x8x128xf32, #tpu.memory_space<vmem>>
    %242 = tpu.memref_squeeze %241 : memref<1x7x8x128xf32, #tpu.memory_space<vmem>> -> memref<7x8x128xf32, #tpu.memory_space<vmem>>
    %c2_297 = arith.constant 2 : index
    %c0_298 = arith.constant 0 : index
    %c0_299 = arith.constant 0 : index
    %243 = vector.load %242[%c2_297, %c0_298, %c0_299] : memref<7x8x128xf32, #tpu.memory_space<vmem>>, vector<5x8x128xf32>
    %244 = vector.shape_cast %243 : vector<5x8x128xf32> to vector<40x128xf32>
    %cst_300 = arith.constant dense<0.000000e+00> : vector<40x256xf32>
    %245 = tpu.matmul %244, %229, %cst_300 {dimension_numbers = #tpu.dot_dimension_numbers<[1], [0], [0], [1], [0, 0, 1, 1], [], []>} : vector<40x128xf32>, vector<128x256xf32>, vector<40x256xf32> -> vector<40x256xf32>
    %c1_301 = arith.constant 1 : index
    %c0_302 = arith.constant 0 : index
    %c0_303 = arith.constant 0 : index
    %246 = vector.load %arg14[%c1_301, %c0_302, %c0_303] : memref<2x40x256xf32, #tpu.memory_space<vmem>>, vector<1x40x256xf32>
    %247 = vector.shape_cast %246 : vector<1x40x256xf32> to vector<40x256xf32>
    %248 = arith.addf %247, %245 : vector<40x256xf32>
    %c1_304 = arith.constant 1 : index
    %c0_305 = arith.constant 0 : index
    %c0_306 = arith.constant 0 : index
    %249 = vector.load %arg14[%c1_304, %c0_305, %c0_306] : memref<2x40x256xf32, #tpu.memory_space<vmem>>, vector<1x40x256xf32>
    %250 = vector.shape_cast %249 : vector<1x40x256xf32> to vector<40x256xf32>
    %251 = vector.shape_cast %248 : vector<40x256xf32> to vector<1x40x256xf32>
    tpu.vector_store %arg14[%c1_304, %c0_305, %c0_306], %251 {strides = array<i32>} : memref<2x40x256xf32, #tpu.memory_space<vmem>>, vector<1x40x256xf32>,
    %c0_307 = arith.constant 0 : index
    %c0_308 = arith.constant 0 : index
    %c0_309 = arith.constant 0 : index
    %252 = vector.load %arg14[%c0_307, %c0_308, %c0_309] : memref<2x40x256xf32, #tpu.memory_space<vmem>>, vector<1x40x256xf32>
    %253 = vector.shape_cast %252 : vector<1x40x256xf32> to vector<40x256xf32>
    %c1_310 = arith.constant 1 : index
    %c0_311 = arith.constant 0 : index
    %c0_312 = arith.constant 0 : index
    %254 = vector.load %arg14[%c1_310, %c0_311, %c0_312] : memref<2x40x256xf32, #tpu.memory_space<vmem>>, vector<1x40x256xf32>
    %255 = vector.shape_cast %254 : vector<1x40x256xf32> to vector<40x256xf32>
    %256 = arith.maximumf %253, %255 : vector<40x256xf32>
    %257 = vector.extract_strided_slice %256 {offsets = [0, 0], sizes = [40, 128], strides = [1, 1]} : vector<40x256xf32> to vector<40x128xf32>
    %258 = vector.extract_strided_slice %256 {offsets = [0, 128], sizes = [40, 128], strides = [1, 1]} : vector<40x256xf32> to vector<40x128xf32>
    %259 = arith.maximumf %257, %258 : vector<40x128xf32>
    %c0_313 = arith.constant 0 : index
    %c0_314 = arith.constant 0 : index
    %260 = vector.load %arg5[%c0_313, %c0_314] : memref<1x128xf32, #tpu.memory_space<vmem>>, vector<1x128xf32>
    %261 = vector.broadcast %260 : vector<1x128xf32> to vector<40x128xf32>
    %262 = arith.addf %259, %261 : vector<40x128xf32>
    %cst_315 = arith.constant 0.000000e+00 : f32
    %263 = vector.broadcast %cst_315 : f32 to vector<40x128xf32>
    %264 = arith.maximumf %262, %263 : vector<40x128xf32>
    %265 = vector.extract_strided_slice %264 {offsets = [0, 0], sizes = [8, 128], strides = [1, 1]} : vector<40x128xf32> to vector<8x128xf32>
    %c0_316 = arith.constant 0 : index
    %c0_317 = arith.constant 0 : index
    %c0_318 = arith.constant 0 : index
    %266 = vector.load %arg6[%c0_316, %c0_317, %c0_318] : memref<5x128x128xf32, #tpu.memory_space<vmem>>, vector<1x128x128xf32>
    %267 = vector.shape_cast %266 : vector<1x128x128xf32> to vector<128x128xf32>
    %cst_319 = arith.constant dense<0.000000e+00> : vector<8x128xf32>
    %268 = tpu.matmul %265, %267, %cst_319 {dimension_numbers = #tpu.dot_dimension_numbers<[1], [0], [0], [1], [0, 0, 1, 1], [], []>} : vector<8x128xf32>, vector<128x128xf32>, vector<8x128xf32> -> vector<8x128xf32>
    %269 = vector.extract_strided_slice %264 {offsets = [8, 0], sizes = [8, 128], strides = [1, 1]} : vector<40x128xf32> to vector<8x128xf32>
    %c1_320 = arith.constant 1 : index
    %c0_321 = arith.constant 0 : index
    %c0_322 = arith.constant 0 : index
    %270 = vector.load %arg6[%c1_320, %c0_321, %c0_322] : memref<5x128x128xf32, #tpu.memory_space<vmem>>, vector<1x128x128xf32>
    %271 = vector.shape_cast %270 : vector<1x128x128xf32> to vector<128x128xf32>
    %cst_323 = arith.constant dense<0.000000e+00> : vector<8x128xf32>
    %272 = tpu.matmul %269, %271, %cst_323 {dimension_numbers = #tpu.dot_dimension_numbers<[1], [0], [0], [1], [0, 0, 1, 1], [], []>} : vector<8x128xf32>, vector<128x128xf32>, vector<8x128xf32> -> vector<8x128xf32>
    %273 = arith.addf %268, %272 : vector<8x128xf32>
    %274 = vector.extract_strided_slice %264 {offsets = [16, 0], sizes = [8, 128], strides = [1, 1]} : vector<40x128xf32> to vector<8x128xf32>
    %c2_324 = arith.constant 2 : index
    %c0_325 = arith.constant 0 : index
    %c0_326 = arith.constant 0 : index
    %275 = vector.load %arg6[%c2_324, %c0_325, %c0_326] : memref<5x128x128xf32, #tpu.memory_space<vmem>>, vector<1x128x128xf32>
    %276 = vector.shape_cast %275 : vector<1x128x128xf32> to vector<128x128xf32>
    %cst_327 = arith.constant dense<0.000000e+00> : vector<8x128xf32>
    %277 = tpu.matmul %274, %276, %cst_327 {dimension_numbers = #tpu.dot_dimension_numbers<[1], [0], [0], [1], [0, 0, 1, 1], [], []>} : vector<8x128xf32>, vector<128x128xf32>, vector<8x128xf32> -> vector<8x128xf32>
    %278 = arith.addf %273, %277 : vector<8x128xf32>
    %279 = vector.extract_strided_slice %264 {offsets = [24, 0], sizes = [8, 128], strides = [1, 1]} : vector<40x128xf32> to vector<8x128xf32>
    %c3_328 = arith.constant 3 : index
    %c0_329 = arith.constant 0 : index
    %c0_330 = arith.constant 0 : index
    %280 = vector.load %arg6[%c3_328, %c0_329, %c0_330] : memref<5x128x128xf32, #tpu.memory_space<vmem>>, vector<1x128x128xf32>
    %281 = vector.shape_cast %280 : vector<1x128x128xf32> to vector<128x128xf32>
    %cst_331 = arith.constant dense<0.000000e+00> : vector<8x128xf32>
    %282 = tpu.matmul %279, %281, %cst_331 {dimension_numbers = #tpu.dot_dimension_numbers<[1], [0], [0], [1], [0, 0, 1, 1], [], []>} : vector<8x128xf32>, vector<128x128xf32>, vector<8x128xf32> -> vector<8x128xf32>
    %283 = arith.addf %278, %282 : vector<8x128xf32>
    %284 = vector.extract_strided_slice %264 {offsets = [32, 0], sizes = [8, 128], strides = [1, 1]} : vector<40x128xf32> to vector<8x128xf32>
    %c4_332 = arith.constant 4 : index
    %c0_333 = arith.constant 0 : index
    %c0_334 = arith.constant 0 : index
    %285 = vector.load %arg6[%c4_332, %c0_333, %c0_334] : memref<5x128x128xf32, #tpu.memory_space<vmem>>, vector<1x128x128xf32>
    %286 = vector.shape_cast %285 : vector<1x128x128xf32> to vector<128x128xf32>
    %cst_335 = arith.constant dense<0.000000e+00> : vector<8x128xf32>
    %287 = tpu.matmul %284, %286, %cst_335 {dimension_numbers = #tpu.dot_dimension_numbers<[1], [0], [0], [1], [0, 0, 1, 1], [], []>} : vector<8x128xf32>, vector<128x128xf32>, vector<8x128xf32> -> vector<8x128xf32>
    %288 = arith.addf %283, %287 : vector<8x128xf32>
    %c0_336 = arith.constant 0 : index
    %c0_337 = arith.constant 0 : index
    %289 = vector.load %arg7[%c0_336, %c0_337] : memref<1x128xf32, #tpu.memory_space<vmem>>, vector<1x128xf32>
    %290 = vector.broadcast %289 : vector<1x128xf32> to vector<8x128xf32>
    %291 = arith.addf %288, %290 : vector<8x128xf32>
    %cst_338 = arith.constant 0.000000e+00 : f32
    %292 = vector.broadcast %cst_338 : f32 to vector<8x128xf32>
    %293 = arith.maximumf %291, %292 : vector<8x128xf32>
    %c0_339 = arith.constant 0 : index
    %c0_340 = arith.constant 0 : index
    %294 = vector.load %arg8[%c0_339, %c0_340] : memref<128x128xf32, #tpu.memory_space<vmem>>, vector<128x128xf32>
    %cst_341 = arith.constant dense<0.000000e+00> : vector<8x128xf32>
    %295 = tpu.matmul %293, %294, %cst_341 {dimension_numbers = #tpu.dot_dimension_numbers<[1], [0], [0], [1], [0, 0, 1, 1], [], []>} : vector<8x128xf32>, vector<128x128xf32>, vector<8x128xf32> -> vector<8x128xf32>
    %c0_342 = arith.constant 0 : index
    %c0_343 = arith.constant 0 : index
    %296 = vector.load %arg9[%c0_342, %c0_343] : memref<1x128xf32, #tpu.memory_space<vmem>>, vector<1x128xf32>
    %297 = vector.broadcast %296 : vector<1x128xf32> to vector<8x128xf32>
    %298 = arith.addf %295, %297 : vector<8x128xf32>
    %cst_344 = arith.constant 0.000000e+00 : f32
    %299 = vector.broadcast %cst_344 : f32 to vector<8x128xf32>
    %300 = arith.maximumf %298, %299 : vector<8x128xf32>
    %c0_345 = arith.constant 0 : index
    %c0_346 = arith.constant 0 : index
    %301 = vector.load %arg10[%c0_345, %c0_346] : memref<128x128xf32, #tpu.memory_space<vmem>>, vector<128x128xf32>
    %cst_347 = arith.constant dense<0.000000e+00> : vector<8x128xf32>
    %302 = tpu.matmul %300, %301, %cst_347 {dimension_numbers = #tpu.dot_dimension_numbers<[1], [0], [0], [1], [0, 0, 1, 1], [], []>} : vector<8x128xf32>, vector<128x128xf32>, vector<8x128xf32> -> vector<8x128xf32>
    %c0_348 = arith.constant 0 : index
    %c0_349 = arith.constant 0 : index
    %303 = vector.load %arg11[%c0_348, %c0_349] : memref<1x128xf32, #tpu.memory_space<vmem>>, vector<1x128xf32>
    %304 = vector.broadcast %303 : vector<1x128xf32> to vector<8x128xf32>
    %305 = arith.addf %302, %304 : vector<8x128xf32>
    %c0_350 = arith.constant 0 : index
    %c0_351 = arith.constant 0 : index
    %306 = vector.load %arg12[%c0_350, %c0_351] : memref<8x128xf32, #tpu.memory_space<vmem>>, vector<8x128xf32>
    tpu.vector_store %arg12[%c0_350, %c0_351], %305 {strides = array<i32>} : memref<8x128xf32, #tpu.memory_space<vmem>>, vector<8x128xf32>,
    return
  }
  func.func @transform_0(%arg0: i32) -> (i32, i32, i32, i32) {
    %c0_i32 = arith.constant 0 : i32
    %c0_i32_0 = arith.constant 0 : i32
    %c0_i32_1 = arith.constant 0 : i32
    %c0_i32_2 = arith.constant 0 : i32
    return %c0_i32, %c0_i32_0, %arg0, %c0_i32_1 : i32, i32, i32, i32
  }
  func.func @transform_1(%arg0: i32) -> (i32, i32, i32) {
    %c0_i32 = arith.constant 0 : i32
    %c0_i32_0 = arith.constant 0 : i32
    %c0_i32_1 = arith.constant 0 : i32
    %c0_i32_2 = arith.constant 0 : i32
    return %c0_i32, %c0_i32_0, %c0_i32_1 : i32, i32, i32
  }
  func.func @transform_2(%arg0: i32) -> (i32, i32) {
    %c0_i32 = arith.constant 0 : i32
    %c0_i32_0 = arith.constant 0 : i32
    %c0_i32_1 = arith.constant 0 : i32
    return %c0_i32, %c0_i32_0 : i32, i32
  }
  func.func @transform_3(%arg0: i32) -> (i32, i32, i32) {
    %c0_i32 = arith.constant 0 : i32
    %c0_i32_0 = arith.constant 0 : i32
    %c0_i32_1 = arith.constant 0 : i32
    %c0_i32_2 = arith.constant 0 : i32
    return %c0_i32, %c0_i32_0, %c0_i32_1 : i32, i32, i32
  }
  func.func @transform_4(%arg0: i32) -> (i32, i32) {
    %c0_i32 = arith.constant 0 : i32
    %c0_i32_0 = arith.constant 0 : i32
    %c0_i32_1 = arith.constant 0 : i32
    return %c0_i32, %c0_i32_0 : i32, i32
  }
  func.func @transform_5(%arg0: i32) -> (i32, i32, i32) {
    %c0_i32 = arith.constant 0 : i32
    %c0_i32_0 = arith.constant 0 : i32
    %c0_i32_1 = arith.constant 0 : i32
    %c0_i32_2 = arith.constant 0 : i32
    return %c0_i32, %c0_i32_0, %c0_i32_1 : i32, i32, i32
  }
  func.func @transform_6(%arg0: i32) -> (i32, i32) {
    %c0_i32 = arith.constant 0 : i32
    %c0_i32_0 = arith.constant 0 : i32
    %c0_i32_1 = arith.constant 0 : i32
    return %c0_i32, %c0_i32_0 : i32, i32
  }
  func.func @transform_7(%arg0: i32) -> (i32, i32) {
    %c0_i32 = arith.constant 0 : i32
    %c0_i32_0 = arith.constant 0 : i32
    %c0_i32_1 = arith.constant 0 : i32
    return %c0_i32, %c0_i32_0 : i32, i32
  }
  func.func @transform_8(%arg0: i32) -> (i32, i32) {
    %c0_i32 = arith.constant 0 : i32
    %c0_i32_0 = arith.constant 0 : i32
    %c0_i32_1 = arith.constant 0 : i32
    return %c0_i32, %c0_i32_0 : i32, i32
  }
  func.func @transform_9(%arg0: i32) -> (i32, i32) {
    %c0_i32 = arith.constant 0 : i32
    %c0_i32_0 = arith.constant 0 : i32
    %c0_i32_1 = arith.constant 0 : i32
    return %c0_i32, %c0_i32_0 : i32, i32
  }
  func.func @transform_10(%arg0: i32) -> (i32, i32) {
    %c0_i32 = arith.constant 0 : i32
    %c0_i32_0 = arith.constant 0 : i32
    %c0_i32_1 = arith.constant 0 : i32
    return %c0_i32, %c0_i32_0 : i32, i32
  }
  func.func @transform_11(%arg0: i32) -> (i32, i32) {
    %c0_i32 = arith.constant 0 : i32
    %c0_i32_0 = arith.constant 0 : i32
    return %arg0, %c0_i32 : i32, i32
  }
}

</mosaic_0001>

<llo_original>
// kernel: my_model_forward.1
$region0: #{my_model_forward.1}
  #allocation0 [shape = 'u32[]', space=smem, size = 0x4, offset = 0x4, fixed_abs, tag = 'smem constant byte address 0x4 - core index']
  #allocation1 [shape = 'u32[72,128]{1,0:T(1,128)}', space=vmem, size = 0x9000, scoped, tag = 'internal scratch']
  #allocation2 [shape = 'f32[2,112,256]{2,1,0:T(8,128)}', space=vmem, size = 0x38000, scoped, tag = 'scratch operand']
  #allocation3 [shape = 'f32[2,40,256]{2,1,0:T(8,128)}', space=vmem, size = 0x14000, scoped, tag = 'scratch operand']
  #allocation4 [shape = 'f32[2,7,8,128]{3,2,1,0:T(8,128)}', space=vmem, size = 0xe000, scoped, tag = 'scratch operand']
  %s0 = inlined_call_operand.vmem [shape: f32[2,16,8,128], index: 0, kind: input, shape index: {}]
  %s1 = inlined_call_operand.vmem [shape: f32[5,128,256], index: 1, kind: input, shape index: {}]
  %s2 = inlined_call_operand.vmem [shape: f32[1,128], index: 2, kind: input, shape index: {}]
  %s3 = inlined_call_operand.hbm [shape: f32[5,128,256], index: 3, kind: input, shape index: {}]
  %s4 = inlined_call_operand.vmem [shape: f32[1,128], index: 4, kind: input, shape index: {}]
  %s5 = inlined_call_operand.hbm [shape: f32[5,128,128], index: 5, kind: input, shape index: {}]
  %s6 = inlined_call_operand.vmem [shape: f32[1,128], index: 6, kind: input, shape index: {}]
  %s7 = inlined_call_operand.vmem [shape: f32[128,128], index: 7, kind: input, shape index: {}]
  %s8 = inlined_call_operand.vmem [shape: f32[1,128], index: 8, kind: input, shape index: {}]
  %s9 = inlined_call_operand.hbm [shape: f32[128,128], index: 9, kind: input, shape index: {}]
  %s10 = inlined_call_operand.vmem [shape: f32[1,128], index: 10, kind: input, shape index: {}]
  %s11 = inlined_call_operand.vmem [shape: f32[8,128], index: 11, kind: output, shape index: {}]
  %s12 = sld [smem:[#allocation0]]
  $region66: #{my_model_forward.1} parent=0
    _
  %s14 = ssub.s32 1, %s12
  %s15 = scalar_select 0, %s14, %s12
  $region1: #{my_model_forward.1} parent=0
    #allocation5 [shape = 'u8[655360]{0}', space=vmem, size = 0xa0000, scoped, tag = 'input window, operand 3, single buffered']
    #allocation6 [shape = 's32[1]{0}', space=sflag, size = 0x4, scoped, tag = 'scoped memory for my_model_forward.1']
    #allocation7 [shape = 'u8[327680]{0}', space=vmem, size = 0x50000, scoped, tag = 'input window, operand 5, single buffered']
    #allocation8 [shape = 's32[1]{0}', space=sflag, size = 0x4, scoped, tag = 'scoped memory for my_model_forward.1']
    #allocation9 [shape = 'u8[65536]{0}', space=vmem, size = 0x10000, scoped, tag = 'input window, operand 9, single buffered']
    %16 = vsyncpa [#allocation6], 0
    %17 = vsyncpa [#allocation8], 0
    // Predicated region
    $region2: #{my_model_forward.1} parent=1 // pred_check
      _
    $region3: #{my_model_forward.1} parent=1 // pred_check_branch
      %19 = sbr.rel (0) target = $region5
    $region4: #{my_model_forward.1} parent=1 // pred_region
      _
    $region5: #{my_model_forward.1} parent=1 // pred_fallthru
      _
    // Predicated region
    $region6: #{my_model_forward.1} parent=1 // pred_check
      _
    $region7: #{my_model_forward.1} parent=1 // pred_check_branch
      %21 = sbr.rel (0) target = $region9
    $region8: #{my_model_forward.1} parent=1 // pred_region
      _
    $region9: #{my_model_forward.1} parent=1 // pred_fallthru
      _
    // Predicated region
    $region10: #{my_model_forward.1} parent=1 // pred_check
      _
    $region11: #{my_model_forward.1} parent=1 // pred_check_branch
      %23 = sbr.rel (0) target = $region13
    $region12: #{my_model_forward.1} parent=1 // pred_region
      _
    $region13: #{my_model_forward.1} parent=1 // pred_fallthru
      _
    // Predicated region
    $region14: #{my_model_forward.1} parent=1 // pred_check
      _
    $region15: #{my_model_forward.1} parent=1 // pred_check_branch
      %25 = sbr.rel (0) target = $region17
    $region16: #{my_model_forward.1} parent=1 // pred_region
      %27 = vsyncadd [#allocation6], 0
      %s28 = sshll.u32 %s3, 4
      %s29 = int_to_ptr.hbm [resolvable:$true] %s28
      %s30 = sshll.u32 [#allocation5], 4
      %s31 = int_to_ptr.vmem [resolvable:$true] %s30
      %36 = dma.hbm_to_vmem [thread:$0]  %s29, 20480, %s31, [#allocation6], 256, 256, 16
    $region17: #{my_model_forward.1} parent=1 // pred_fallthru
      _
    // Predicated region
    $region18: #{my_model_forward.1} parent=1 // pred_check
      _
    $region19: #{my_model_forward.1} parent=1 // pred_check_branch
      %38 = sbr.rel (0) target = $region21
    $region20: #{my_model_forward.1} parent=1 // pred_region
      _
    $region21: #{my_model_forward.1} parent=1 // pred_fallthru
      _
    // Predicated region
    $region22: #{my_model_forward.1} parent=1 // pred_check
      _
    $region23: #{my_model_forward.1} parent=1 // pred_check_branch
      %40 = sbr.rel (0) target = $region25
    $region24: #{my_model_forward.1} parent=1 // pred_region
      %42 = vsyncadd [#allocation8], 0
      %s43 = sshll.u32 %s5, 4
      %s44 = int_to_ptr.hbm [resolvable:$true] %s43
      %s45 = sshll.u32 [#allocation7], 4
      %s46 = int_to_ptr.vmem [resolvable:$true] %s45
      %51 = dma.hbm_to_vmem [thread:$0]  %s44, 10240, %s46, [#allocation8], 128, 128, 8
    $region25: #{my_model_forward.1} parent=1 // pred_fallthru
      _
    // Predicated region
    $region26: #{my_model_forward.1} parent=1 // pred_check
      _
    $region27: #{my_model_forward.1} parent=1 // pred_check_branch
      %53 = sbr.rel (0) target = $region29
    $region28: #{my_model_forward.1} parent=1 // pred_region
      _
    $region29: #{my_model_forward.1} parent=1 // pred_fallthru
      _
    // Predicated region
    $region30: #{my_model_forward.1} parent=1 // pred_check
      _
    $region31: #{my_model_forward.1} parent=1 // pred_check_branch
      %55 = sbr.rel (0) target = $region33
    $region32: #{my_model_forward.1} parent=1 // pred_region
      _
    $region33: #{my_model_forward.1} parent=1 // pred_fallthru
      _
    // Predicated region
    $region34: #{my_model_forward.1} parent=1 // pred_check
      _
    $region35: #{my_model_forward.1} parent=1 // pred_check_branch
      %57 = sbr.rel (0) target = $region37
    $region36: #{my_model_forward.1} parent=1 // pred_region
      _
    $region37: #{my_model_forward.1} parent=1 // pred_fallthru
      _
    // Predicated region
    $region38: #{my_model_forward.1} parent=1 // pred_check
      _
    $region39: #{my_model_forward.1} parent=1 // pred_check_branch
      %59 = sbr.rel (0) target = $region41
    $region40: #{my_model_forward.1} parent=1 // pred_region
      %61 = vsyncadd [#allocation8], 0
      %s62 = sshll.u32 %s9, 4
      %s63 = int_to_ptr.hbm [resolvable:$true] %s62
      %s64 = sshll.u32 [#allocation9], 4
      %s65 = int_to_ptr.vmem [resolvable:$true] %s64
      %70 = dma.hbm_to_vmem [thread:$0]  %s63, 2048, %s65, [#allocation8], 128, 128, 8
    $region41: #{my_model_forward.1} parent=1 // pred_fallthru
      _
    // Predicated region
    $region42: #{my_model_forward.1} parent=1 // pred_check
      _
    $region43: #{my_model_forward.1} parent=1 // pred_check_branch
      %72 = sbr.rel (0) target = $region45
    $region44: #{my_model_forward.1} parent=1 // pred_region
      _
    $region45: #{my_model_forward.1} parent=1 // pred_fallthru
      _
    // Predicated region
    $region46: #{my_model_forward.1} parent=1 // pred_check
      _
    $region47: #{my_model_forward.1} parent=1 // pred_check_branch
      %74 = sbr.rel (0) target = $region49
    $region48: #{my_model_forward.1} parent=1 // pred_region
      %76 = dma.done [#allocation6], 20480
    $region49: #{my_model_forward.1} parent=1 // pred_fallthru
      _
    // Predicated region
    $region50: #{my_model_forward.1} parent=1 // pred_check
      _
    $region51: #{my_model_forward.1} parent=1 // pred_check_branch
      %78 = sbr.rel (0) target = $region53
    $region52: #{my_model_forward.1} parent=1 // pred_region
      %80 = dma.done [#allocation8], 10240
    $region53: #{my_model_forward.1} parent=1 // pred_fallthru
      _
    // Predicated region
    $region54: #{my_model_forward.1} parent=1 // pred_check
      _
    $region55: #{my_model_forward.1} parent=1 // pred_check_branch
      %82 = sbr.rel (0) target = $region57
    $region56: #{my_model_forward.1} parent=1 // pred_region
      %84 = dma.done [#allocation8], 2048
    $region57: #{my_model_forward.1} parent=1 // pred_fallthru
      _
    %v85 = vld [vmem:[%s1] sm:$0xff]
    %v86 = vld [vmem:[%s1 + $0x8] sm:$0xff]
    %v87 = vld [vmem:[%s1 + $0x10] sm:$0xff]
    %v88 = vld [vmem:[%s1 + $0x18] sm:$0xff]
    %v89 = vld [vmem:[%s1 + $0x20] sm:$0xff]
    %v90 = vld [vmem:[%s1 + $0x28] sm:$0xff]
    %v91 = vld [vmem:[%s1 + $0x30] sm:$0xff]
    %v92 = vld [vmem:[%s1 + $0x38] sm:$0xff]
    %v93 = vld [vmem:[%s1 + $0x40] sm:$0xff]
    %v94 = vld [vmem:[%s1 + $0x48] sm:$0xff]
    %v95 = vld [vmem:[%s1 + $0x50] sm:$0xff]
    %v96 = vld [vmem:[%s1 + $0x58] sm:$0xff]
    %v97 = vld [vmem:[%s1 + $0x60] sm:$0xff]
    %v98 = vld [vmem:[%s1 + $0x68] sm:$0xff]
    %v99 = vld [vmem:[%s1 + $0x70] sm:$0xff]
    %v100 = vld [vmem:[%s1 + $0x78] sm:$0xff]
    %v101 = vld [vmem:[%s1 + $0x80] sm:$0xff]
    %v102 = vld [vmem:[%s1 + $0x88] sm:$0xff]
    %v103 = vld [vmem:[%s1 + $0x90] sm:$0xff]
    %v104 = vld [vmem:[%s1 + $0x98] sm:$0xff]
    %v105 = vld [vmem:[%s1 + $0xa0] sm:$0xff]
    %v106 = vld [vmem:[%s1 + $0xa8] sm:$0xff]
    %v107 = vld [vmem:[%s1 + $0xb0] sm:$0xff]
    %v108 = vld [vmem:[%s1 + $0xb8] sm:$0xff]
    %v109 = vld [vmem:[%s1 + $0xc0] sm:$0xff]
    %v110 = vld [vmem:[%s1 + $0xc8] sm:$0xff]
    %v111 = vld [vmem:[%s1 + $0xd0] sm:$0xff]
    %v112 = vld [vmem:[%s1 + $0xd8] sm:$0xff]
    %v113 = vld [vmem:[%s1 + $0xe0] sm:$0xff]
    %v114 = vld [vmem:[%s1 + $0xe8] sm:$0xff]
    %v115 = vld [vmem:[%s1 + $0xf0] sm:$0xff]
    %v116 = vld [vmem:[%s1 + $0xf8] sm:$0xff]
    %v117 = vld [vmem:[%s0] sm:$0xff]
    %v118 = vld [vmem:[%s0 + $0x8] sm:$0xff]
    %v119 = vld [vmem:[%s0 + $0x10] sm:$0xff]
    %v120 = vld [vmem:[%s0 + $0x18] sm:$0xff]
    %v121 = vld [vmem:[%s0 + $0x20] sm:$0xff]
    %v122 = vld [vmem:[%s0 + $0x28] sm:$0xff]
    %v123 = vld [vmem:[%s0 + $0x30] sm:$0xff]
    %v124 = vld [vmem:[%s0 + $0x38] sm:$0xff]
    %v125 = vld [vmem:[%s0 + $0x40] sm:$0xff]
    %v126 = vld [vmem:[%s0 + $0x48] sm:$0xff]
    %v127 = vld [vmem:[%s0 + $0x50] sm:$0xff]
    %v128 = vld [vmem:[%s0 + $0x58] sm:$0xff]
    %v129 = vld [vmem:[%s0 + $0x60] sm:$0xff]
    %v130 = vld [vmem:[%s0 + $0x68] sm:$0xff]
    %131 = vmatpush.msra.mxu0 %v115
    %132 = vmatpush.msra.mxu0 %v113
    %133 = vmatpush.msra.mxu0 %v111
    %134 = vmatpush.msra.mxu0 %v109
    %135 = vmatpush.msra.mxu0 %v107
    %136 = vmatpush.msra.mxu0 %v105
    %137 = vmatpush.msra.mxu0 %v103
    %138 = vmatpush.msra.mxu0 %v101
    %139 = vmatpush.msra.mxu0 %v99
    %140 = vmatpush.msra.mxu0 %v97
    %141 = vmatpush.msra.mxu0 %v95
    %142 = vmatpush.msra.mxu0 %v93
    %143 = vmatpush.msra.mxu0 %v91
    %144 = vmatpush.msra.mxu0 %v89
    %145 = vmatpush.msra.mxu0 %v87
    %146 = vmatpush.msra.mxu0 %v85
    %147 = vmatmul.f32.gmra.mxu0 %v117
    %v148 = vpop.f32.mrf.mxu0
    %v149 = vadd.f32 0.0, %v148
    %150 = vmatmul.f32.gmra.mxu0 %v118
    %v151 = vpop.f32.mrf.mxu0
    %v152 = vadd.f32 0.0, %v151
    %153 = vmatmul.f32.gmra.mxu0 %v119
    %v154 = vpop.f32.mrf.mxu0
    %v155 = vadd.f32 0.0, %v154
    %156 = vmatmul.f32.gmra.mxu0 %v120
    %v157 = vpop.f32.mrf.mxu0
    %v158 = vadd.f32 0.0, %v157
    %159 = vmatmul.f32.gmra.mxu0 %v121
    %v160 = vpop.f32.mrf.mxu0
    %v161 = vadd.f32 0.0, %v160
    %162 = vmatmul.f32.gmra.mxu0 %v122
    %v163 = vpop.f32.mrf.mxu0
    %v164 = vadd.f32 0.0, %v163
    %165 = vmatmul.f32.gmra.mxu0 %v123
    %v166 = vpop.f32.mrf.mxu0
    %v167 = vadd.f32 0.0, %v166
    %168 = vmatmul.f32.gmra.mxu0 %v124
    %v169 = vpop.f32.mrf.mxu0
    %v170 = vadd.f32 0.0, %v169
    %171 = vmatmul.f32.gmra.mxu0 %v125
    %v172 = vpop.f32.mrf.mxu0
    %v173 = vadd.f32 0.0, %v172
    %174 = vmatmul.f32.gmra.mxu0 %v126
    %v175 = vpop.f32.mrf.mxu0
    %v176 = vadd.f32 0.0, %v175
    %177 = vmatmul.f32.gmra.mxu0 %v127
    %v178 = vpop.f32.mrf.mxu0
    %v179 = vadd.f32 0.0, %v178
    %180 = vmatmul.f32.gmra.mxu0 %v128
    %v181 = vpop.f32.mrf.mxu0
    %v182 = vadd.f32 0.0, %v181
    %183 = vmatmul.f32.gmra.mxu0 %v129
    %v184 = vpop.f32.mrf.mxu0
    %v185 = vadd.f32 0.0, %v184
    %186 = vmatmul.f32.gmra.mxu0 %v130
    %v187 = vpop.f32.mrf.mxu0
    %v188 = vadd.f32 0.0, %v187
    %189 = vdwg.mxu0
    %190 = vmatpush.msra.mxu0 %v116
    %191 = vmatpush.msra.mxu0 %v114
    %192 = vmatpush.msra.mxu0 %v112
    %193 = vmatpush.msra.mxu0 %v110
    %194 = vmatpush.msra.mxu0 %v108
    %195 = vmatpush.msra.mxu0 %v106
    %196 = vmatpush.msra.mxu0 %v104
    %197 = vmatpush.msra.mxu0 %v102
    %198 = vmatpush.msra.mxu0 %v100
    %199 = vmatpush.msra.mxu0 %v98
    %200 = vmatpush.msra.mxu0 %v96
    %201 = vmatpush.msra.mxu0 %v94
    %202 = vmatpush.msra.mxu0 %v92
    %203 = vmatpush.msra.mxu0 %v90
    %204 = vmatpush.msra.mxu0 %v88
    %205 = vmatpush.msra.mxu0 %v86
    %206 = vmatmul.f32.gmra.mxu0 %v117
    %v207 = vpop.f32.mrf.mxu0
    %v208 = vadd.f32 0.0, %v207
    %209 = vmatmul.f32.gmra.mxu0 %v118
    %v210 = vpop.f32.mrf.mxu0
    %v211 = vadd.f32 0.0, %v210
    %212 = vmatmul.f32.gmra.mxu0 %v119
    %v213 = vpop.f32.mrf.mxu0
    %v214 = vadd.f32 0.0, %v213
    %215 = vmatmul.f32.gmra.mxu0 %v120
    %v216 = vpop.f32.mrf.mxu0
    %v217 = vadd.f32 0.0, %v216
    %218 = vmatmul.f32.gmra.mxu0 %v121
    %v219 = vpop.f32.mrf.mxu0
    %v220 = vadd.f32 0.0, %v219
    %221 = vmatmul.f32.gmra.mxu0 %v122
    %v222 = vpop.f32.mrf.mxu0
    %v223 = vadd.f32 0.0, %v222
    %224 = vmatmul.f32.gmra.mxu0 %v123
    %v225 = vpop.f32.mrf.mxu0
    %v226 = vadd.f32 0.0, %v225
    %227 = vmatmul.f32.gmra.mxu0 %v124
    %v228 = vpop.f32.mrf.mxu0
    %v229 = vadd.f32 0.0, %v228
    %230 = vmatmul.f32.gmra.mxu0 %v125
    %v231 = vpop.f32.mrf.mxu0
    %v232 = vadd.f32 0.0, %v231
    %233 = vmatmul.f32.gmra.mxu0 %v126
    %v234 = vpop.f32.mrf.mxu0
    %v235 = vadd.f32 0.0, %v234
    %236 = vmatmul.f32.gmra.mxu0 %v127
    %v237 = vpop.f32.mrf.mxu0
    %v238 = vadd.f32 0.0, %v237
    %239 = vmatmul.f32.gmra.mxu0 %v128
    %v240 = vpop.f32.mrf.mxu0
    %v241 = vadd.f32 0.0, %v240
    %242 = vmatmul.f32.gmra.mxu0 %v129
    %v243 = vpop.f32.mrf.mxu0
    %v244 = vadd.f32 0.0, %v243
    %245 = vmatmul.f32.gmra.mxu0 %v130
    %v246 = vpop.f32.mrf.mxu0
    %v247 = vadd.f32 0.0, %v246
    %248 = vdwg.mxu0
    %249 = vst [vmem:[#allocation2] sm:$0xff] %v149
    %250 = vst [vmem:[#allocation2 + $0x8] sm:$0xff] %v208
    %251 = vst [vmem:[#allocation2 + $0x10] sm:$0xff] %v152
    %252 = vst [vmem:[#allocation2 + $0x18] sm:$0xff] %v211
    %253 = vst [vmem:[#allocation2 + $0x20] sm:$0xff] %v155
    %254 = vst [vmem:[#allocation2 + $0x28] sm:$0xff] %v214
    %255 = vst [vmem:[#allocation2 + $0x30] sm:$0xff] %v158
    %256 = vst [vmem:[#allocation2 + $0x38] sm:$0xff] %v217
    %257 = vst [vmem:[#allocation2 + $0x40] sm:$0xff] %v161
    %258 = vst [vmem:[#allocation2 + $0x48] sm:$0xff] %v220
    %259 = vst [vmem:[#allocation2 + $0x50] sm:$0xff] %v164
    %260 = vst [vmem:[#allocation2 + $0x58] sm:$0xff] %v223
    %261 = vst [vmem:[#allocation2 + $0x60] sm:$0xff] %v167
    %262 = vst [vmem:[#allocation2 + $0x68] sm:$0xff] %v226
    %263 = vst [vmem:[#allocation2 + $0x70] sm:$0xff] %v170
    %264 = vst [vmem:[#allocation2 + $0x78] sm:$0xff] %v229
    %265 = vst [vmem:[#allocation2 + $0x80] sm:$0xff] %v173
    %266 = vst [vmem:[#allocation2 + $0x88] sm:$0xff] %v232
    %267 = vst [vmem:[#allocation2 + $0x90] sm:$0xff] %v176
    %268 = vst [vmem:[#allocation2 + $0x98] sm:$0xff] %v235
    %269 = vst [vmem:[#allocation2 + $0xa0] sm:$0xff] %v179
    %270 = vst [vmem:[#allocation2 + $0xa8] sm:$0xff] %v238
    %271 = vst [vmem:[#allocation2 + $0xb0] sm:$0xff] %v182
    %272 = vst [vmem:[#allocation2 + $0xb8] sm:$0xff] %v241
    %273 = vst [vmem:[#allocation2 + $0xc0] sm:$0xff] %v185
    %274 = vst [vmem:[#allocation2 + $0xc8] sm:$0xff] %v244
    %275 = vst [vmem:[#allocation2 + $0xd0] sm:$0xff] %v188
    %276 = vst [vmem:[#allocation2 + $0xd8] sm:$0xff] %v247
    %s277 = scalar_lea.vmem %s0, 128
    %v278 = vld [vmem:[%s277] sm:$0xff]
    %v279 = vld [vmem:[%s277 + $0x8] sm:$0xff]
    %v280 = vld [vmem:[%s277 + $0x10] sm:$0xff]
    %v281 = vld [vmem:[%s277 + $0x18] sm:$0xff]
    %v282 = vld [vmem:[%s277 + $0x20] sm:$0xff]
    %v283 = vld [vmem:[%s277 + $0x28] sm:$0xff]
    %v284 = vld [vmem:[%s277 + $0x30] sm:$0xff]
    %v285 = vld [vmem:[%s277 + $0x38] sm:$0xff]
    %v286 = vld [vmem:[%s277 + $0x40] sm:$0xff]
    %v287 = vld [vmem:[%s277 + $0x48] sm:$0xff]
    %v288 = vld [vmem:[%s277 + $0x50] sm:$0xff]
    %v289 = vld [vmem:[%s277 + $0x58] sm:$0xff]
    %v290 = vld [vmem:[%s277 + $0x60] sm:$0xff]
    %v291 = vld [vmem:[%s277 + $0x68] sm:$0xff]
    %292 = vmatpush.msra.mxu0 %v115
    %293 = vmatpush.msra.mxu0 %v113
    %294 = vmatpush.msra.mxu0 %v111
    %295 = vmatpush.msra.mxu0 %v109
    %296 = vmatpush.msra.mxu0 %v107
    %297 = vmatpush.msra.mxu0 %v105
    %298 = vmatpush.msra.mxu0 %v103
    %299 = vmatpush.msra.mxu0 %v101
    %300 = vmatpush.msra.mxu0 %v99
    %301 = vmatpush.msra.mxu0 %v97
    %302 = vmatpush.msra.mxu0 %v95
    %303 = vmatpush.msra.mxu0 %v93
    %304 = vmatpush.msra.mxu0 %v91
    %305 = vmatpush.msra.mxu0 %v89
    %306 = vmatpush.msra.mxu0 %v87
    %307 = vmatpush.msra.mxu0 %v85
    %308 = vmatmul.f32.gmra.mxu0 %v278
    %v309 = vpop.f32.mrf.mxu0
    %v310 = vadd.f32 0.0, %v309
    %311 = vmatmul.f32.gmra.mxu0 %v279
    %v312 = vpop.f32.mrf.mxu0
    %v313 = vadd.f32 0.0, %v312
    %314 = vmatmul.f32.gmra.mxu0 %v280
    %v315 = vpop.f32.mrf.mxu0
    %v316 = vadd.f32 0.0, %v315
    %317 = vmatmul.f32.gmra.mxu0 %v281
    %v318 = vpop.f32.mrf.mxu0
    %v319 = vadd.f32 0.0, %v318
    %320 = vmatmul.f32.gmra.mxu0 %v282
    %v321 = vpop.f32.mrf.mxu0
    %v322 = vadd.f32 0.0, %v321
    %323 = vmatmul.f32.gmra.mxu0 %v283
    %v324 = vpop.f32.mrf.mxu0
    %v325 = vadd.f32 0.0, %v324
    %326 = vmatmul.f32.gmra.mxu0 %v284
    %v327 = vpop.f32.mrf.mxu0
    %v328 = vadd.f32 0.0, %v327
    %329 = vmatmul.f32.gmra.mxu0 %v285
    %v330 = vpop.f32.mrf.mxu0
    %v331 = vadd.f32 0.0, %v330
    %332 = vmatmul.f32.gmra.mxu0 %v286
    %v333 = vpop.f32.mrf.mxu0
    %v334 = vadd.f32 0.0, %v333
    %335 = vmatmul.f32.gmra.mxu0 %v287
    %v336 = vpop.f32.mrf.mxu0
    %v337 = vadd.f32 0.0, %v336
    %338 = vmatmul.f32.gmra.mxu0 %v288
    %v339 = vpop.f32.mrf.mxu0
    %v340 = vadd.f32 0.0, %v339
    %341 = vmatmul.f32.gmra.mxu0 %v289
    %v342 = vpop.f32.mrf.mxu0
    %v343 = vadd.f32 0.0, %v342
    %344 = vmatmul.f32.gmra.mxu0 %v290
    %v345 = vpop.f32.mrf.mxu0
    %v346 = vadd.f32 0.0, %v345
    %347 = vmatmul.f32.gmra.mxu0 %v291
    %v348 = vpop.f32.mrf.mxu0
    %v349 = vadd.f32 0.0, %v348
    %350 = vdwg.mxu0
    %351 = vmatpush.msra.mxu0 %v116
    %352 = vmatpush.msra.mxu0 %v114
    %353 = vmatpush.msra.mxu0 %v112
    %354 = vmatpush.msra.mxu0 %v110
    %355 = vmatpush.msra.mxu0 %v108
    %356 = vmatpush.msra.mxu0 %v106
    %357 = vmatpush.msra.mxu0 %v104
    %358 = vmatpush.msra.mxu0 %v102
    %359 = vmatpush.msra.mxu0 %v100
    %360 = vmatpush.msra.mxu0 %v98
    %361 = vmatpush.msra.mxu0 %v96
    %362 = vmatpush.msra.mxu0 %v94
    %363 = vmatpush.msra.mxu0 %v92
    %364 = vmatpush.msra.mxu0 %v90
    %365 = vmatpush.msra.mxu0 %v88
    %366 = vmatpush.msra.mxu0 %v86
    %367 = vmatmul.f32.gmra.mxu0 %v278
    %v368 = vpop.f32.mrf.mxu0
    %v369 = vadd.f32 0.0, %v368
    %370 = vmatmul.f32.gmra.mxu0 %v279
    %v371 = vpop.f32.mrf.mxu0
    %v372 = vadd.f32 0.0, %v371
    %373 = vmatmul.f32.gmra.mxu0 %v280
    %v374 = vpop.f32.mrf.mxu0
    %v375 = vadd.f32 0.0, %v374
    %376 = vmatmul.f32.gmra.mxu0 %v281
    %v377 = vpop.f32.mrf.mxu0
    %v378 = vadd.f32 0.0, %v377
    %379 = vmatmul.f32.gmra.mxu0 %v282
    %v380 = vpop.f32.mrf.mxu0
    %v381 = vadd.f32 0.0, %v380
    %382 = vmatmul.f32.gmra.mxu0 %v283
    %v383 = vpop.f32.mrf.mxu0
    %v384 = vadd.f32 0.0, %v383
    %385 = vmatmul.f32.gmra.mxu0 %v284
    %v386 = vpop.f32.mrf.mxu0
    %v387 = vadd.f32 0.0, %v386
    %388 = vmatmul.f32.gmra.mxu0 %v285
    %v389 = vpop.f32.mrf.mxu0
    %v390 = vadd.f32 0.0, %v389
    %391 = vmatmul.f32.gmra.mxu0 %v286
    %v392 = vpop.f32.mrf.mxu0
    %v393 = vadd.f32 0.0, %v392
    %394 = vmatmul.f32.gmra.mxu0 %v287
    %v395 = vpop.f32.mrf.mxu0
    %v396 = vadd.f32 0.0, %v395
    %397 = vmatmul.f32.gmra.mxu0 %v288
    %v398 = vpop.f32.mrf.mxu0
    %v399 = vadd.f32 0.0, %v398
    %400 = vmatmul.f32.gmra.mxu0 %v289
    %v401 = vpop.f32.mrf.mxu0
    %v402 = vadd.f32 0.0, %v401
    %403 = vmatmul.f32.gmra.mxu0 %v290
    %v404 = vpop.f32.mrf.mxu0
    %v405 = vadd.f32 0.0, %v404
    %406 = vmatmul.f32.gmra.mxu0 %v291
    %v407 = vpop.f32.mrf.mxu0
    %v408 = vadd.f32 0.0, %v407
    %409 = vdwg.mxu0
    %s410 = scalar_lea.vmem [#allocation2], 224
    %411 = vst [vmem:[%s410] sm:$0xff] %v310
    %412 = vst [vmem:[%s410 + $0x8] sm:$0xff] %v369
    %413 = vst [vmem:[%s410 + $0x10] sm:$0xff] %v313
    %414 = vst [vmem:[%s410 + $0x18] sm:$0xff] %v372
    %415 = vst [vmem:[%s410 + $0x20] sm:$0xff] %v316
    %416 = vst [vmem:[%s410 + $0x28] sm:$0xff] %v375
    %417 = vst [vmem:[%s410 + $0x30] sm:$0xff] %v319
    %418 = vst [vmem:[%s410 + $0x38] sm:$0xff] %v378
    %419 = vst [vmem:[%s410 + $0x40] sm:$0xff] %v322
    %420 = vst [vmem:[%s410 + $0x48] sm:$0xff] %v381
    %421 = vst [vmem:[%s410 + $0x50] sm:$0xff] %v325
    %422 = vst [vmem:[%s410 + $0x58] sm:$0xff] %v384
    %423 = vst [vmem:[%s410 + $0x60] sm:$0xff] %v328
    %424 = vst [vmem:[%s410 + $0x68] sm:$0xff] %v387
    %425 = vst [vmem:[%s410 + $0x70] sm:$0xff] %v331
    %426 = vst [vmem:[%s410 + $0x78] sm:$0xff] %v390
    %427 = vst [vmem:[%s410 + $0x80] sm:$0xff] %v334
    %428 = vst [vmem:[%s410 + $0x88] sm:$0xff] %v393
    %429 = vst [vmem:[%s410 + $0x90] sm:$0xff] %v337
    %430 = vst [vmem:[%s410 + $0x98] sm:$0xff] %v396
    %431 = vst [vmem:[%s410 + $0xa0] sm:$0xff] %v340
    %432 = vst [vmem:[%s410 + $0xa8] sm:$0xff] %v399
    %433 = vst [vmem:[%s410 + $0xb0] sm:$0xff] %v343
    %434 = vst [vmem:[%s410 + $0xb8] sm:$0xff] %v402
    %435 = vst [vmem:[%s410 + $0xc0] sm:$0xff] %v346
    %436 = vst [vmem:[%s410 + $0xc8] sm:$0xff] %v405
    %437 = vst [vmem:[%s410 + $0xd0] sm:$0xff] %v349
    %438 = vst [vmem:[%s410 + $0xd8] sm:$0xff] %v408
    %s439 = scalar_lea.vmem %s1, 256
    %v440 = vld [vmem:[%s439] sm:$0xff]
    %v441 = vld [vmem:[%s439 + $0x8] sm:$0xff]
    %v442 = vld [vmem:[%s439 + $0x10] sm:$0xff]
    %v443 = vld [vmem:[%s439 + $0x18] sm:$0xff]
    %v444 = vld [vmem:[%s439 + $0x20] sm:$0xff]
    %v445 = vld [vmem:[%s439 + $0x28] sm:$0xff]
    %v446 = vld [vmem:[%s439 + $0x30] sm:$0xff]
    %v447 = vld [vmem:[%s439 + $0x38] sm:$0xff]
    %v448 = vld [vmem:[%s439 + $0x40] sm:$0xff]
    %v449 = vld [vmem:[%s439 + $0x48] sm:$0xff]
    %v450 = vld [vmem:[%s439 + $0x50] sm:$0xff]
    %v451 = vld [vmem:[%s439 + $0x58] sm:$0xff]
    %v452 = vld [vmem:[%s439 + $0x60] sm:$0xff]
    %v453 = vld [vmem:[%s439 + $0x68] sm:$0xff]
    %v454 = vld [vmem:[%s439 + $0x70] sm:$0xff]
    %v455 = vld [vmem:[%s439 + $0x78] sm:$0xff]
    %v456 = vld [vmem:[%s439 + $0x80] sm:$0xff]
    %v457 = vld [vmem:[%s439 + $0x88] sm:$0xff]
    %v458 = vld [vmem:[%s439 + $0x90] sm:$0xff]
    %v459 = vld [vmem:[%s439 + $0x98] sm:$0xff]
    %v460 = vld [vmem:[%s439 + $0xa0] sm:$0xff]
    %v461 = vld [vmem:[%s439 + $0xa8] sm:$0xff]
    %v462 = vld [vmem:[%s439 + $0xb0] sm:$0xff]
    %v463 = vld [vmem:[%s439 + $0xb8] sm:$0xff]
    %v464 = vld [vmem:[%s439 + $0xc0] sm:$0xff]
    %v465 = vld [vmem:[%s439 + $0xc8] sm:$0xff]
    %v466 = vld [vmem:[%s439 + $0xd0] sm:$0xff]
    %v467 = vld [vmem:[%s439 + $0xd8] sm:$0xff]
    %v468 = vld [vmem:[%s439 + $0xe0] sm:$0xff]
    %v469 = vld [vmem:[%s439 + $0xe8] sm:$0xff]
    %v470 = vld [vmem:[%s439 + $0xf0] sm:$0xff]
    %v471 = vld [vmem:[%s439 + $0xf8] sm:$0xff]
    %v472 = vld [vmem:[%s277] sm:$0xff]
    %v473 = vld [vmem:[%s277 + $0x8] sm:$0xff]
    %v474 = vld [vmem:[%s277 + $0x10] sm:$0xff]
    %v475 = vld [vmem:[%s277 + $0x18] sm:$0xff]
    %v476 = vld [vmem:[%s277 + $0x20] sm:$0xff]
    %v477 = vld [vmem:[%s277 + $0x28] sm:$0xff]
    %v478 = vld [vmem:[%s277 + $0x30] sm:$0xff]
    %v479 = vld [vmem:[%s277 + $0x38] sm:$0xff]
    %v480 = vld [vmem:[%s277 + $0x40] sm:$0xff]
    %v481 = vld [vmem:[%s277 + $0x48] sm:$0xff]
    %v482 = vld [vmem:[%s277 + $0x50] sm:$0xff]
    %v483 = vld [vmem:[%s277 + $0x58] sm:$0xff]
    %v484 = vld [vmem:[%s277 + $0x60] sm:$0xff]
    %v485 = vld [vmem:[%s277 + $0x68] sm:$0xff]
    %486 = vmatpush.msra.mxu0 %v470
    %487 = vmatpush.msra.mxu0 %v468
    %488 = vmatpush.msra.mxu0 %v466
    %489 = vmatpush.msra.mxu0 %v464
    %490 = vmatpush.msra.mxu0 %v462
    %491 = vmatpush.msra.mxu0 %v460
    %492 = vmatpush.msra.mxu0 %v458
    %493 = vmatpush.msra.mxu0 %v456
    %494 = vmatpush.msra.mxu0 %v454
    %495 = vmatpush.msra.mxu0 %v452
    %496 = vmatpush.msra.mxu0 %v450
    %497 = vmatpush.msra.mxu0 %v448
    %498 = vmatpush.msra.mxu0 %v446
    %499 = vmatpush.msra.mxu0 %v444
    %500 = vmatpush.msra.mxu0 %v442
    %501 = vmatpush.msra.mxu0 %v440
    %502 = vmatmul.f32.gmra.mxu0 %v472
    %v503 = vpop.f32.mrf.mxu0
    %v504 = vadd.f32 0.0, %v503
    %505 = vmatmul.f32.gmra.mxu0 %v473
    %v506 = vpop.f32.mrf.mxu0
    %v507 = vadd.f32 0.0, %v506
    %508 = vmatmul.f32.gmra.mxu0 %v474
    %v509 = vpop.f32.mrf.mxu0
    %v510 = vadd.f32 0.0, %v509
    %511 = vmatmul.f32.gmra.mxu0 %v475
    %v512 = vpop.f32.mrf.mxu0
    %v513 = vadd.f32 0.0, %v512
    %514 = vmatmul.f32.gmra.mxu0 %v476
    %v515 = vpop.f32.mrf.mxu0
    %v516 = vadd.f32 0.0, %v515
    %517 = vmatmul.f32.gmra.mxu0 %v477
    %v518 = vpop.f32.mrf.mxu0
    %v519 = vadd.f32 0.0, %v518
    %520 = vmatmul.f32.gmra.mxu0 %v478
    %v521 = vpop.f32.mrf.mxu0
    %v522 = vadd.f32 0.0, %v521
    %523 = vmatmul.f32.gmra.mxu0 %v479
    %v524 = vpop.f32.mrf.mxu0
    %v525 = vadd.f32 0.0, %v524
    %526 = vmatmul.f32.gmra.mxu0 %v480
    %v527 = vpop.f32.mrf.mxu0
    %v528 = vadd.f32 0.0, %v527
    %529 = vmatmul.f32.gmra.mxu0 %v481
    %v530 = vpop.f32.mrf.mxu0
    %v531 = vadd.f32 0.0, %v530
    %532 = vmatmul.f32.gmra.mxu0 %v482
    %v533 = vpop.f32.mrf.mxu0
    %v534 = vadd.f32 0.0, %v533
    %535 = vmatmul.f32.gmra.mxu0 %v483
    %v536 = vpop.f32.mrf.mxu0
    %v537 = vadd.f32 0.0, %v536
    %538 = vmatmul.f32.gmra.mxu0 %v484
    %v539 = vpop.f32.mrf.mxu0
    %v540 = vadd.f32 0.0, %v539
    %541 = vmatmul.f32.gmra.mxu0 %v485
    %v542 = vpop.f32.mrf.mxu0
    %v543 = vadd.f32 0.0, %v542
    %544 = vdwg.mxu0
    %545 = vmatpush.msra.mxu0 %v471
    %546 = vmatpush.msra.mxu0 %v469
    %547 = vmatpush.msra.mxu0 %v467
    %548 = vmatpush.msra.mxu0 %v465
    %549 = vmatpush.msra.mxu0 %v463
    %550 = vmatpush.msra.mxu0 %v461
    %551 = vmatpush.msra.mxu0 %v459
    %552 = vmatpush.msra.mxu0 %v457
    %553 = vmatpush.msra.mxu0 %v455
    %554 = vmatpush.msra.mxu0 %v453
    %555 = vmatpush.msra.mxu0 %v451
    %556 = vmatpush.msra.mxu0 %v449
    %557 = vmatpush.msra.mxu0 %v447
    %558 = vmatpush.msra.mxu0 %v445
    %559 = vmatpush.msra.mxu0 %v443
    %560 = vmatpush.msra.mxu0 %v441
    %561 = vmatmul.f32.gmra.mxu0 %v472
    %v562 = vpop.f32.mrf.mxu0
    %v563 = vadd.f32 0.0, %v562
    %564 = vmatmul.f32.gmra.mxu0 %v473
    %v565 = vpop.f32.mrf.mxu0
    %v566 = vadd.f32 0.0, %v565
    %567 = vmatmul.f32.gmra.mxu0 %v474
    %v568 = vpop.f32.mrf.mxu0
    %v569 = vadd.f32 0.0, %v568
    %570 = vmatmul.f32.gmra.mxu0 %v475
    %v571 = vpop.f32.mrf.mxu0
    %v572 = vadd.f32 0.0, %v571
    %573 = vmatmul.f32.gmra.mxu0 %v476
    %v574 = vpop.f32.mrf.mxu0
    %v575 = vadd.f32 0.0, %v574
    %576 = vmatmul.f32.gmra.mxu0 %v477
    %v577 = vpop.f32.mrf.mxu0
    %v578 = vadd.f32 0.0, %v577
    %579 = vmatmul.f32.gmra.mxu0 %v478
    %v580 = vpop.f32.mrf.mxu0
    %v581 = vadd.f32 0.0, %v580
    %582 = vmatmul.f32.gmra.mxu0 %v479
    %v583 = vpop.f32.mrf.mxu0
    %v584 = vadd.f32 0.0, %v583
    %585 = vmatmul.f32.gmra.mxu0 %v480
    %v586 = vpop.f32.mrf.mxu0
    %v587 = vadd.f32 0.0, %v586
    %588 = vmatmul.f32.gmra.mxu0 %v481
    %v589 = vpop.f32.mrf.mxu0
    %v590 = vadd.f32 0.0, %v589
    %591 = vmatmul.f32.gmra.mxu0 %v482
    %v592 = vpop.f32.mrf.mxu0
    %v593 = vadd.f32 0.0, %v592
    %594 = vmatmul.f32.gmra.mxu0 %v483
    %v595 = vpop.f32.mrf.mxu0
    %v596 = vadd.f32 0.0, %v595
    %597 = vmatmul.f32.gmra.mxu0 %v484
    %v598 = vpop.f32.mrf.mxu0
    %v599 = vadd.f32 0.0, %v598
    %600 = vmatmul.f32.gmra.mxu0 %v485
    %v601 = vpop.f32.mrf.mxu0
    %v602 = vadd.f32 0.0, %v601
    %603 = vdwg.mxu0
    %v604 = vld [vmem:[#allocation2] sm:$0xff]
    %v605 = vld [vmem:[#allocation2 + $0x8] sm:$0xff]
    %v606 = vld [vmem:[#allocation2 + $0x10] sm:$0xff]
    %v607 = vld [vmem:[#allocation2 + $0x18] sm:$0xff]
    %v608 = vld [vmem:[#allocation2 + $0x20] sm:$0xff]
    %v609 = vld [vmem:[#allocation2 + $0x28] sm:$0xff]
    %v610 = vld [vmem:[#allocation2 + $0x30] sm:$0xff]
    %v611 = vld [vmem:[#allocation2 + $0x38] sm:$0xff]
    %v612 = vld [vmem:[#allocation2 + $0x40] sm:$0xff]
    %v613 = vld [vmem:[#allocation2 + $0x48] sm:$0xff]
    %v614 = vld [vmem:[#allocation2 + $0x50] sm:$0xff]
    %v615 = vld [vmem:[#allocation2 + $0x58] sm:$0xff]
    %v616 = vld [vmem:[#allocation2 + $0x60] sm:$0xff]
    %v617 = vld [vmem:[#allocation2 + $0x68] sm:$0xff]
    %v618 = vld [vmem:[#allocation2 + $0x70] sm:$0xff]
    %v619 = vld [vmem:[#allocation2 + $0x78] sm:$0xff]
    %v620 = vld [vmem:[#allocation2 + $0x80] sm:$0xff]
    %v621 = vld [vmem:[#allocation2 + $0x88] sm:$0xff]
    %v622 = vld [vmem:[#allocation2 + $0x90] sm:$0xff]
    %v623 = vld [vmem:[#allocation2 + $0x98] sm:$0xff]
    %v624 = vld [vmem:[#allocation2 + $0xa0] sm:$0xff]
    %v625 = vld [vmem:[#allocation2 + $0xa8] sm:$0xff]
    %v626 = vld [vmem:[#allocation2 + $0xb0] sm:$0xff]
    %v627 = vld [vmem:[#allocation2 + $0xb8] sm:$0xff]
    %v628 = vld [vmem:[#allocation2 + $0xc0] sm:$0xff]
    %v629 = vld [vmem:[#allocation2 + $0xc8] sm:$0xff]
    %v630 = vld [vmem:[#allocation2 + $0xd0] sm:$0xff]
    %v631 = vld [vmem:[#allocation2 + $0xd8] sm:$0xff]
    %v632 = vadd.f32 %v604, %v504
    %v633 = vadd.f32 %v605, %v563
    %v634 = vadd.f32 %v606, %v507
    %v635 = vadd.f32 %v607, %v566
    %v636 = vadd.f32 %v608, %v510
    %v637 = vadd.f32 %v609, %v569
    %v638 = vadd.f32 %v610, %v513
    %v639 = vadd.f32 %v611, %v572
    %v640 = vadd.f32 %v612, %v516
    %v641 = vadd.f32 %v613, %v575
    %v642 = vadd.f32 %v614, %v519
    %v643 = vadd.f32 %v615, %v578
    %v644 = vadd.f32 %v616, %v522
    %v645 = vadd.f32 %v617, %v581
    %v646 = vadd.f32 %v618, %v525
    %v647 = vadd.f32 %v619, %v584
    %v648 = vadd.f32 %v620, %v528
    %v649 = vadd.f32 %v621, %v587
    %v650 = vadd.f32 %v622, %v531
    %v651 = vadd.f32 %v623, %v590
    %v652 = vadd.f32 %v624, %v534
    %v653 = vadd.f32 %v625, %v593
    %v654 = vadd.f32 %v626, %v537
    %v655 = vadd.f32 %v627, %v596
    %v656 = vadd.f32 %v628, %v540
    %v657 = vadd.f32 %v629, %v599
    %v658 = vadd.f32 %v630, %v543
    %v659 = vadd.f32 %v631, %v602
    %660 = vst [vmem:[#allocation2] sm:$0xff] %v632
    %661 = vst [vmem:[#allocation2 + $0x8] sm:$0xff] %v633
    %662 = vst [vmem:[#allocation2 + $0x10] sm:$0xff] %v634
    %663 = vst [vmem:[#allocation2 + $0x18] sm:$0xff] %v635
    %664 = vst [vmem:[#allocation2 + $0x20] sm:$0xff] %v636
    %665 = vst [vmem:[#allocation2 + $0x28] sm:$0xff] %v637
    %666 = vst [vmem:[#allocation2 + $0x30] sm:$0xff] %v638
    %667 = vst [vmem:[#allocation2 + $0x38] sm:$0xff] %v639
    %668 = vst [vmem:[#allocation2 + $0x40] sm:$0xff] %v640
    %669 = vst [vmem:[#allocation2 + $0x48] sm:$0xff] %v641
    %670 = vst [vmem:[#allocation2 + $0x50] sm:$0xff] %v642
    %671 = vst [vmem:[#allocation2 + $0x58] sm:$0xff] %v643
    %672 = vst [vmem:[#allocation2 + $0x60] sm:$0xff] %v644
    %673 = vst [vmem:[#allocation2 + $0x68] sm:$0xff] %v645
    %674 = vst [vmem:[#allocation2 + $0x70] sm:$0xff] %v646
    %675 = vst [vmem:[#allocation2 + $0x78] sm:$0xff] %v647
    %676 = vst [vmem:[#allocation2 + $0x80] sm:$0xff] %v648
    %677 = vst [vmem:[#allocation2 + $0x88] sm:$0xff] %v649
    %678 = vst [vmem:[#allocation2 + $0x90] sm:$0xff] %v650
    %679 = vst [vmem:[#allocation2 + $0x98] sm:$0xff] %v651
    %680 = vst [vmem:[#allocation2 + $0xa0] sm:$0xff] %v652
    %681 = vst [vmem:[#allocation2 + $0xa8] sm:$0xff] %v653
    %682 = vst [vmem:[#allocation2 + $0xb0] sm:$0xff] %v654
    %683 = vst [vmem:[#allocation2 + $0xb8] sm:$0xff] %v655
    %684 = vst [vmem:[#allocation2 + $0xc0] sm:$0xff] %v656
    %685 = vst [vmem:[#allocation2 + $0xc8] sm:$0xff] %v657
    %686 = vst [vmem:[#allocation2 + $0xd0] sm:$0xff] %v658
    %687 = vst [vmem:[#allocation2 + $0xd8] sm:$0xff] %v659
    %s688 = scalar_lea.vmem %s0, 8
    %v689 = vld [vmem:[%s688] sm:$0xff]
    %v690 = vld [vmem:[%s688 + $0x8] sm:$0xff]
    %v691 = vld [vmem:[%s688 + $0x10] sm:$0xff]
    %v692 = vld [vmem:[%s688 + $0x18] sm:$0xff]
    %v693 = vld [vmem:[%s688 + $0x20] sm:$0xff]
    %v694 = vld [vmem:[%s688 + $0x28] sm:$0xff]
    %v695 = vld [vmem:[%s688 + $0x30] sm:$0xff]
    %v696 = vld [vmem:[%s688 + $0x38] sm:$0xff]
    %v697 = vld [vmem:[%s688 + $0x40] sm:$0xff]
    %v698 = vld [vmem:[%s688 + $0x48] sm:$0xff]
    %v699 = vld [vmem:[%s688 + $0x50] sm:$0xff]
    %v700 = vld [vmem:[%s688 + $0x58] sm:$0xff]
    %v701 = vld [vmem:[%s688 + $0x60] sm:$0xff]
    %v702 = vld [vmem:[%s688 + $0x68] sm:$0xff]
    %703 = vmatpush.msra.mxu0 %v470
    %704 = vmatpush.msra.mxu0 %v468
    %705 = vmatpush.msra.mxu0 %v466
    %706 = vmatpush.msra.mxu0 %v464
    %707 = vmatpush.msra.mxu0 %v462
    %708 = vmatpush.msra.mxu0 %v460
    %709 = vmatpush.msra.mxu0 %v458
    %710 = vmatpush.msra.mxu0 %v456
    %711 = vmatpush.msra.mxu0 %v454
    %712 = vmatpush.msra.mxu0 %v452
    %713 = vmatpush.msra.mxu0 %v450
    %714 = vmatpush.msra.mxu0 %v448
    %715 = vmatpush.msra.mxu0 %v446
    %716 = vmatpush.msra.mxu0 %v444
    %717 = vmatpush.msra.mxu0 %v442
    %718 = vmatpush.msra.mxu0 %v440
    %719 = vmatmul.f32.gmra.mxu0 %v689
    %v720 = vpop.f32.mrf.mxu0
    %v721 = vadd.f32 0.0, %v720
    %722 = vmatmul.f32.gmra.mxu0 %v690
    %v723 = vpop.f32.mrf.mxu0
    %v724 = vadd.f32 0.0, %v723
    %725 = vmatmul.f32.gmra.mxu0 %v691
    %v726 = vpop.f32.mrf.mxu0
    %v727 = vadd.f32 0.0, %v726
    %728 = vmatmul.f32.gmra.mxu0 %v692
    %v729 = vpop.f32.mrf.mxu0
    %v730 = vadd.f32 0.0, %v729
    %731 = vmatmul.f32.gmra.mxu0 %v693
    %v732 = vpop.f32.mrf.mxu0
    %v733 = vadd.f32 0.0, %v732
    %734 = vmatmul.f32.gmra.mxu0 %v694
    %v735 = vpop.f32.mrf.mxu0
    %v736 = vadd.f32 0.0, %v735
    %737 = vmatmul.f32.gmra.mxu0 %v695
    %v738 = vpop.f32.mrf.mxu0
    %v739 = vadd.f32 0.0, %v738
    %740 = vmatmul.f32.gmra.mxu0 %v696
    %v741 = vpop.f32.mrf.mxu0
    %v742 = vadd.f32 0.0, %v741
    %743 = vmatmul.f32.gmra.mxu0 %v697
    %v744 = vpop.f32.mrf.mxu0
    %v745 = vadd.f32 0.0, %v744
    %746 = vmatmul.f32.gmra.mxu0 %v698
    %v747 = vpop.f32.mrf.mxu0
    %v748 = vadd.f32 0.0, %v747
    %749 = vmatmul.f32.gmra.mxu0 %v699
    %v750 = vpop.f32.mrf.mxu0
    %v751 = vadd.f32 0.0, %v750
    %752 = vmatmul.f32.gmra.mxu0 %v700
    %v753 = vpop.f32.mrf.mxu0
    %v754 = vadd.f32 0.0, %v753
    %755 = vmatmul.f32.gmra.mxu0 %v701
    %v756 = vpop.f32.mrf.mxu0
    %v757 = vadd.f32 0.0, %v756
    %758 = vmatmul.f32.gmra.mxu0 %v702
    %v759 = vpop.f32.mrf.mxu0
    %v760 = vadd.f32 0.0, %v759
    %761 = vdwg.mxu0
    %762 = vmatpush.msra.mxu0 %v471
    %763 = vmatpush.msra.mxu0 %v469
    %764 = vmatpush.msra.mxu0 %v467
    %765 = vmatpush.msra.mxu0 %v465
    %766 = vmatpush.msra.mxu0 %v463
    %767 = vmatpush.msra.mxu0 %v461
    %768 = vmatpush.msra.mxu0 %v459
    %769 = vmatpush.msra.mxu0 %v457
    %770 = vmatpush.msra.mxu0 %v455
    %771 = vmatpush.msra.mxu0 %v453
    %772 = vmatpush.msra.mxu0 %v451
    %773 = vmatpush.msra.mxu0 %v449
    %774 = vmatpush.msra.mxu0 %v447
    %775 = vmatpush.msra.mxu0 %v445
    %776 = vmatpush.msra.mxu0 %v443
    %777 = vmatpush.msra.mxu0 %v441
    %778 = vmatmul.f32.gmra.mxu0 %v689
    %v779 = vpop.f32.mrf.mxu0
    %v780 = vadd.f32 0.0, %v779
    %781 = vmatmul.f32.gmra.mxu0 %v690
    %v782 = vpop.f32.mrf.mxu0
    %v783 = vadd.f32 0.0, %v782
    %784 = vmatmul.f32.gmra.mxu0 %v691
    %v785 = vpop.f32.mrf.mxu0
    %v786 = vadd.f32 0.0, %v785
    %787 = vmatmul.f32.gmra.mxu0 %v692
    %v788 = vpop.f32.mrf.mxu0
    %v789 = vadd.f32 0.0, %v788
    %790 = vmatmul.f32.gmra.mxu0 %v693
    %v791 = vpop.f32.mrf.mxu0
    %v792 = vadd.f32 0.0, %v791
    %793 = vmatmul.f32.gmra.mxu0 %v694
    %v794 = vpop.f32.mrf.mxu0
    %v795 = vadd.f32 0.0, %v794
    %796 = vmatmul.f32.gmra.mxu0 %v695
    %v797 = vpop.f32.mrf.mxu0
    %v798 = vadd.f32 0.0, %v797
    %799 = vmatmul.f32.gmra.mxu0 %v696
    %v800 = vpop.f32.mrf.mxu0
    %v801 = vadd.f32 0.0, %v800
    %802 = vmatmul.f32.gmra.mxu0 %v697
    %v803 = vpop.f32.mrf.mxu0
    %v804 = vadd.f32 0.0, %v803
    %805 = vmatmul.f32.gmra.mxu0 %v698
    %v806 = vpop.f32.mrf.mxu0
    %v807 = vadd.f32 0.0, %v806
    %808 = vmatmul.f32.gmra.mxu0 %v699
    %v809 = vpop.f32.mrf.mxu0
    %v810 = vadd.f32 0.0, %v809
    %811 = vmatmul.f32.gmra.mxu0 %v700
    %v812 = vpop.f32.mrf.mxu0
    %v813 = vadd.f32 0.0, %v812
    %814 = vmatmul.f32.gmra.mxu0 %v701
    %v815 = vpop.f32.mrf.mxu0
    %v816 = vadd.f32 0.0, %v815
    %817 = vmatmul.f32.gmra.mxu0 %v702
    %v818 = vpop.f32.mrf.mxu0
    %v819 = vadd.f32 0.0, %v818
    %820 = vdwg.mxu0
    %v821 = vld [vmem:[%s410] sm:$0xff]
    %v822 = vld [vmem:[%s410 + $0x8] sm:$0xff]
    %v823 = vld [vmem:[%s410 + $0x10] sm:$0xff]
    %v824 = vld [vmem:[%s410 + $0x18] sm:$0xff]
    %v825 = vld [vmem:[%s410 + $0x20] sm:$0xff]
    %v826 = vld [vmem:[%s410 + $0x28] sm:$0xff]
    %v827 = vld [vmem:[%s410 + $0x30] sm:$0xff]
    %v828 = vld [vmem:[%s410 + $0x38] sm:$0xff]
    %v829 = vld [vmem:[%s410 + $0x40] sm:$0xff]
    %v830 = vld [vmem:[%s410 + $0x48] sm:$0xff]
    %v831 = vld [vmem:[%s410 + $0x50] sm:$0xff]
    %v832 = vld [vmem:[%s410 + $0x58] sm:$0xff]
    %v833 = vld [vmem:[%s410 + $0x60] sm:$0xff]
    %v834 = vld [vmem:[%s410 + $0x68] sm:$0xff]
    %v835 = vld [vmem:[%s410 + $0x70] sm:$0xff]
    %v836 = vld [vmem:[%s410 + $0x78] sm:$0xff]
    %v837 = vld [vmem:[%s410 + $0x80] sm:$0xff]
    %v838 = vld [vmem:[%s410 + $0x88] sm:$0xff]
    %v839 = vld [vmem:[%s410 + $0x90] sm:$0xff]
    %v840 = vld [vmem:[%s410 + $0x98] sm:$0xff]
    %v841 = vld [vmem:[%s410 + $0xa0] sm:$0xff]
    %v842 = vld [vmem:[%s410 + $0xa8] sm:$0xff]
    %v843 = vld [vmem:[%s410 + $0xb0] sm:$0xff]
    %v844 = vld [vmem:[%s410 + $0xb8] sm:$0xff]
    %v845 = vld [vmem:[%s410 + $0xc0] sm:$0xff]
    %v846 = vld [vmem:[%s410 + $0xc8] sm:$0xff]
    %v847 = vld [vmem:[%s410 + $0xd0] sm:$0xff]
    %v848 = vld [vmem:[%s410 + $0xd8] sm:$0xff]
    %v849 = vadd.f32 %v821, %v721
    %v850 = vadd.f32 %v822, %v780
    %v851 = vadd.f32 %v823, %v724
    %v852 = vadd.f32 %v824, %v783
    %v853 = vadd.f32 %v825, %v727
    %v854 = vadd.f32 %v826, %v786
    %v855 = vadd.f32 %v827, %v730
    %v856 = vadd.f32 %v828, %v789
    %v857 = vadd.f32 %v829, %v733
    %v858 = vadd.f32 %v830, %v792
    %v859 = vadd.f32 %v831, %v736
    %v860 = vadd.f32 %v832, %v795
    %v861 = vadd.f32 %v833, %v739
    %v862 = vadd.f32 %v834, %v798
    %v863 = vadd.f32 %v835, %v742
    %v864 = vadd.f32 %v836, %v801
    %v865 = vadd.f32 %v837, %v745
    %v866 = vadd.f32 %v838, %v804
    %v867 = vadd.f32 %v839, %v748
    %v868 = vadd.f32 %v840, %v807
    %v869 = vadd.f32 %v841, %v751
    %v870 = vadd.f32 %v842, %v810
    %v871 = vadd.f32 %v843, %v754
    %v872 = vadd.f32 %v844, %v813
    %v873 = vadd.f32 %v845, %v757
    %v874 = vadd.f32 %v846, %v816
    %v875 = vadd.f32 %v847, %v760
    %v876 = vadd.f32 %v848, %v819
    %877 = vst [vmem:[%s410] sm:$0xff] %v849
    %878 = vst [vmem:[%s410 + $0x8] sm:$0xff] %v850
    %879 = vst [vmem:[%s410 + $0x10] sm:$0xff] %v851
    %880 = vst [vmem:[%s410 + $0x18] sm:$0xff] %v852
    %881 = vst [vmem:[%s410 + $0x20] sm:$0xff] %v853
    %882 = vst [vmem:[%s410 + $0x28] sm:$0xff] %v854
    %883 = vst [vmem:[%s410 + $0x30] sm:$0xff] %v855
    %884 = vst [vmem:[%s410 + $0x38] sm:$0xff] %v856
    %885 = vst [vmem:[%s410 + $0x40] sm:$0xff] %v857
    %886 = vst [vmem:[%s410 + $0x48] sm:$0xff] %v858
    %887 = vst [vmem:[%s410 + $0x50] sm:$0xff] %v859
    %888 = vst [vmem:[%s410 + $0x58] sm:$0xff] %v860
    %889 = vst [vmem:[%s410 + $0x60] sm:$0xff] %v861
    %890 = vst [vmem:[%s410 + $0x68] sm:$0xff] %v862
    %891 = vst [vmem:[%s410 + $0x70] sm:$0xff] %v863
    %892 = vst [vmem:[%s410 + $0x78] sm:$0xff] %v864
    %893 = vst [vmem:[%s410 + $0x80] sm:$0xff] %v865
    %894 = vst [vmem:[%s410 + $0x88] sm:$0xff] %v866
    %895 = vst [vmem:[%s410 + $0x90] sm:$0xff] %v867
    %896 = vst [vmem:[%s410 + $0x98] sm:$0xff] %v868
    %897 = vst [vmem:[%s410 + $0xa0] sm:$0xff] %v869
    %898 = vst [vmem:[%s410 + $0xa8] sm:$0xff] %v870
    %899 = vst [vmem:[%s410 + $0xb0] sm:$0xff] %v871
    %900 = vst [vmem:[%s410 + $0xb8] sm:$0xff] %v872
    %901 = vst [vmem:[%s410 + $0xc0] sm:$0xff] %v873
    %902 = vst [vmem:[%s410 + $0xc8] sm:$0xff] %v874
    %903 = vst [vmem:[%s410 + $0xd0] sm:$0xff] %v875
    %904 = vst [vmem:[%s410 + $0xd8] sm:$0xff] %v876
    %s905 = scalar_lea.vmem %s1, 512
    %v906 = vld [vmem:[%s905] sm:$0xff]
    %v907 = vld [vmem:[%s905 + $0x8] sm:$0xff]
    %v908 = vld [vmem:[%s905 + $0x10] sm:$0xff]
    %v909 = vld [vmem:[%s905 + $0x18] sm:$0xff]
    %v910 = vld [vmem:[%s905 + $0x20] sm:$0xff]
    %v911 = vld [vmem:[%s905 + $0x28] sm:$0xff]
    %v912 = vld [vmem:[%s905 + $0x30] sm:$0xff]
    %v913 = vld [vmem:[%s905 + $0x38] sm:$0xff]
    %v914 = vld [vmem:[%s905 + $0x40] sm:$0xff]
    %v915 = vld [vmem:[%s905 + $0x48] sm:$0xff]
    %v916 = vld [vmem:[%s905 + $0x50] sm:$0xff]
    %v917 = vld [vmem:[%s905 + $0x58] sm:$0xff]
    %v918 = vld [vmem:[%s905 + $0x60] sm:$0xff]
    %v919 = vld [vmem:[%s905 + $0x68] sm:$0xff]
    %v920 = vld [vmem:[%s905 + $0x70] sm:$0xff]
    %v921 = vld [vmem:[%s905 + $0x78] sm:$0xff]
    %v922 = vld [vmem:[%s905 + $0x80] sm:$0xff]
    %v923 = vld [vmem:[%s905 + $0x88] sm:$0xff]
    %v924 = vld [vmem:[%s905 + $0x90] sm:$0xff]
    %v925 = vld [vmem:[%s905 + $0x98] sm:$0xff]
    %v926 = vld [vmem:[%s905 + $0xa0] sm:$0xff]
    %v927 = vld [vmem:[%s905 + $0xa8] sm:$0xff]
    %v928 = vld [vmem:[%s905 + $0xb0] sm:$0xff]
    %v929 = vld [vmem:[%s905 + $0xb8] sm:$0xff]
    %v930 = vld [vmem:[%s905 + $0xc0] sm:$0xff]
    %v931 = vld [vmem:[%s905 + $0xc8] sm:$0xff]
    %v932 = vld [vmem:[%s905 + $0xd0] sm:$0xff]
    %v933 = vld [vmem:[%s905 + $0xd8] sm:$0xff]
    %v934 = vld [vmem:[%s905 + $0xe0] sm:$0xff]
    %v935 = vld [vmem:[%s905 + $0xe8] sm:$0xff]
    %v936 = vld [vmem:[%s905 + $0xf0] sm:$0xff]
    %v937 = vld [vmem:[%s905 + $0xf8] sm:$0xff]
    %v938 = vld [vmem:[%s688] sm:$0xff]
    %v939 = vld [vmem:[%s688 + $0x8] sm:$0xff]
    %v940 = vld [vmem:[%s688 + $0x10] sm:$0xff]
    %v941 = vld [vmem:[%s688 + $0x18] sm:$0xff]
    %v942 = vld [vmem:[%s688 + $0x20] sm:$0xff]
    %v943 = vld [vmem:[%s688 + $0x28] sm:$0xff]
    %v944 = vld [vmem:[%s688 + $0x30] sm:$0xff]
    %v945 = vld [vmem:[%s688 + $0x38] sm:$0xff]
    %v946 = vld [vmem:[%s688 + $0x40] sm:$0xff]
    %v947 = vld [vmem:[%s688 + $0x48] sm:$0xff]
    %v948 = vld [vmem:[%s688 + $0x50] sm:$0xff]
    %v949 = vld [vmem:[%s688 + $0x58] sm:$0xff]
    %v950 = vld [vmem:[%s688 + $0x60] sm:$0xff]
    %v951 = vld [vmem:[%s688 + $0x68] sm:$0xff]
    %952 = vmatpush.msra.mxu0 %v936
    %953 = vmatpush.msra.mxu0 %v934
    %954 = vmatpush.msra.mxu0 %v932
    %955 = vmatpush.msra.mxu0 %v930
    %956 = vmatpush.msra.mxu0 %v928
    %957 = vmatpush.msra.mxu0 %v926
    %958 = vmatpush.msra.mxu0 %v924
    %959 = vmatpush.msra.mxu0 %v922
    %960 = vmatpush.msra.mxu0 %v920
    %961 = vmatpush.msra.mxu0 %v918
    %962 = vmatpush.msra.mxu0 %v916
    %963 = vmatpush.msra.mxu0 %v914
    %964 = vmatpush.msra.mxu0 %v912
    %965 = vmatpush.msra.mxu0 %v910
    %966 = vmatpush.msra.mxu0 %v908
    %967 = vmatpush.msra.mxu0 %v906
    %968 = vmatmul.f32.gmra.mxu0 %v938
    %v969 = vpop.f32.mrf.mxu0
    %v970 = vadd.f32 0.0, %v969
    %971 = vmatmul.f32.gmra.mxu0 %v939
    %v972 = vpop.f32.mrf.mxu0
    %v973 = vadd.f32 0.0, %v972
    %974 = vmatmul.f32.gmra.mxu0 %v940
    %v975 = vpop.f32.mrf.mxu0
    %v976 = vadd.f32 0.0, %v975
    %977 = vmatmul.f32.gmra.mxu0 %v941
    %v978 = vpop.f32.mrf.mxu0
    %v979 = vadd.f32 0.0, %v978
    %980 = vmatmul.f32.gmra.mxu0 %v942
    %v981 = vpop.f32.mrf.mxu0
    %v982 = vadd.f32 0.0, %v981
    %983 = vmatmul.f32.gmra.mxu0 %v943
    %v984 = vpop.f32.mrf.mxu0
    %v985 = vadd.f32 0.0, %v984
    %986 = vmatmul.f32.gmra.mxu0 %v944
    %v987 = vpop.f32.mrf.mxu0
    %v988 = vadd.f32 0.0, %v987
    %989 = vmatmul.f32.gmra.mxu0 %v945
    %v990 = vpop.f32.mrf.mxu0
    %v991 = vadd.f32 0.0, %v990
    %992 = vmatmul.f32.gmra.mxu0 %v946
    %v993 = vpop.f32.mrf.mxu0
    %v994 = vadd.f32 0.0, %v993
    %995 = vmatmul.f32.gmra.mxu0 %v947
    %v996 = vpop.f32.mrf.mxu0
    %v997 = vadd.f32 0.0, %v996
    %998 = vmatmul.f32.gmra.mxu0 %v948
    %v999 = vpop.f32.mrf.mxu0
    %v1000 = vadd.f32 0.0, %v999
    %1001 = vmatmul.f32.gmra.mxu0 %v949
    %v1002 = vpop.f32.mrf.mxu0
    %v1003 = vadd.f32 0.0, %v1002
    %1004 = vmatmul.f32.gmra.mxu0 %v950
    %v1005 = vpop.f32.mrf.mxu0
    %v1006 = vadd.f32 0.0, %v1005
    %1007 = vmatmul.f32.gmra.mxu0 %v951
    %v1008 = vpop.f32.mrf.mxu0
    %v1009 = vadd.f32 0.0, %v1008
    %1010 = vdwg.mxu0
    %1011 = vmatpush.msra.mxu0 %v937
    %1012 = vmatpush.msra.mxu0 %v935
    %1013 = vmatpush.msra.mxu0 %v933
    %1014 = vmatpush.msra.mxu0 %v931
    %1015 = vmatpush.msra.mxu0 %v929
    %1016 = vmatpush.msra.mxu0 %v927
    %1017 = vmatpush.msra.mxu0 %v925
    %1018 = vmatpush.msra.mxu0 %v923
    %1019 = vmatpush.msra.mxu0 %v921
    %1020 = vmatpush.msra.mxu0 %v919
    %1021 = vmatpush.msra.mxu0 %v917
    %1022 = vmatpush.msra.mxu0 %v915
    %1023 = vmatpush.msra.mxu0 %v913
    %1024 = vmatpush.msra.mxu0 %v911
    %1025 = vmatpush.msra.mxu0 %v909
    %1026 = vmatpush.msra.mxu0 %v907
    %1027 = vmatmul.f32.gmra.mxu0 %v938
    %v1028 = vpop.f32.mrf.mxu0
    %v1029 = vadd.f32 0.0, %v1028
    %1030 = vmatmul.f32.gmra.mxu0 %v939
    %v1031 = vpop.f32.mrf.mxu0
    %v1032 = vadd.f32 0.0, %v1031
    %1033 = vmatmul.f32.gmra.mxu0 %v940
    %v1034 = vpop.f32.mrf.mxu0
    %v1035 = vadd.f32 0.0, %v1034
    %1036 = vmatmul.f32.gmra.mxu0 %v941
    %v1037 = vpop.f32.mrf.mxu0
    %v1038 = vadd.f32 0.0, %v1037
    %1039 = vmatmul.f32.gmra.mxu0 %v942
    %v1040 = vpop.f32.mrf.mxu0
    %v1041 = vadd.f32 0.0, %v1040
    %1042 = vmatmul.f32.gmra.mxu0 %v943
    %v1043 = vpop.f32.mrf.mxu0
    %v1044 = vadd.f32 0.0, %v1043
    %1045 = vmatmul.f32.gmra.mxu0 %v944
    %v1046 = vpop.f32.mrf.mxu0
    %v1047 = vadd.f32 0.0, %v1046
    %1048 = vmatmul.f32.gmra.mxu0 %v945
    %v1049 = vpop.f32.mrf.mxu0
    %v1050 = vadd.f32 0.0, %v1049
    %1051 = vmatmul.f32.gmra.mxu0 %v946
    %v1052 = vpop.f32.mrf.mxu0
    %v1053 = vadd.f32 0.0, %v1052
    %1054 = vmatmul.f32.gmra.mxu0 %v947
    %v1055 = vpop.f32.mrf.mxu0
    %v1056 = vadd.f32 0.0, %v1055
    %1057 = vmatmul.f32.gmra.mxu0 %v948
    %v1058 = vpop.f32.mrf.mxu0
    %v1059 = vadd.f32 0.0, %v1058
    %1060 = vmatmul.f32.gmra.mxu0 %v949
    %v1061 = vpop.f32.mrf.mxu0
    %v1062 = vadd.f32 0.0, %v1061
    %1063 = vmatmul.f32.gmra.mxu0 %v950
    %v1064 = vpop.f32.mrf.mxu0
    %v1065 = vadd.f32 0.0, %v1064
    %1066 = vmatmul.f32.gmra.mxu0 %v951
    %v1067 = vpop.f32.mrf.mxu0
    %v1068 = vadd.f32 0.0, %v1067
    %1069 = vdwg.mxu0
    %v1070 = vld [vmem:[#allocation2] sm:$0xff]
    %v1071 = vld [vmem:[#allocation2 + $0x8] sm:$0xff]
    %v1072 = vld [vmem:[#allocation2 + $0x10] sm:$0xff]
    %v1073 = vld [vmem:[#allocation2 + $0x18] sm:$0xff]
    %v1074 = vld [vmem:[#allocation2 + $0x20] sm:$0xff]
    %v1075 = vld [vmem:[#allocation2 + $0x28] sm:$0xff]
    %v1076 = vld [vmem:[#allocation2 + $0x30] sm:$0xff]
    %v1077 = vld [vmem:[#allocation2 + $0x38] sm:$0xff]
    %v1078 = vld [vmem:[#allocation2 + $0x40] sm:$0xff]
    %v1079 = vld [vmem:[#allocation2 + $0x48] sm:$0xff]
    %v1080 = vld [vmem:[#allocation2 + $0x50] sm:$0xff]
    %v1081 = vld [vmem:[#allocation2 + $0x58] sm:$0xff]
    %v1082 = vld [vmem:[#allocation2 + $0x60] sm:$0xff]
    %v1083 = vld [vmem:[#allocation2 + $0x68] sm:$0xff]
    %v1084 = vld [vmem:[#allocation2 + $0x70] sm:$0xff]
    %v1085 = vld [vmem:[#allocation2 + $0x78] sm:$0xff]
    %v1086 = vld [vmem:[#allocation2 + $0x80] sm:$0xff]
    %v1087 = vld [vmem:[#allocation2 + $0x88] sm:$0xff]
    %v1088 = vld [vmem:[#allocation2 + $0x90] sm:$0xff]
    %v1089 = vld [vmem:[#allocation2 + $0x98] sm:$0xff]
    %v1090 = vld [vmem:[#allocation2 + $0xa0] sm:$0xff]
    %v1091 = vld [vmem:[#allocation2 + $0xa8] sm:$0xff]
    %v1092 = vld [vmem:[#allocation2 + $0xb0] sm:$0xff]
    %v1093 = vld [vmem:[#allocation2 + $0xb8] sm:$0xff]
    %v1094 = vld [vmem:[#allocation2 + $0xc0] sm:$0xff]
    %v1095 = vld [vmem:[#allocation2 + $0xc8] sm:$0xff]
    %v1096 = vld [vmem:[#allocation2 + $0xd0] sm:$0xff]
    %v1097 = vld [vmem:[#allocation2 + $0xd8] sm:$0xff]
    %v1098 = vadd.f32 %v1070, %v970
    %v1099 = vadd.f32 %v1071, %v1029
    %v1100 = vadd.f32 %v1072, %v973
    %v1101 = vadd.f32 %v1073, %v1032
    %v1102 = vadd.f32 %v1074, %v976
    %v1103 = vadd.f32 %v1075, %v1035
    %v1104 = vadd.f32 %v1076, %v979
    %v1105 = vadd.f32 %v1077, %v1038
    %v1106 = vadd.f32 %v1078, %v982
    %v1107 = vadd.f32 %v1079, %v1041
    %v1108 = vadd.f32 %v1080, %v985
    %v1109 = vadd.f32 %v1081, %v1044
    %v1110 = vadd.f32 %v1082, %v988
    %v1111 = vadd.f32 %v1083, %v1047
    %v1112 = vadd.f32 %v1084, %v991
    %v1113 = vadd.f32 %v1085, %v1050
    %v1114 = vadd.f32 %v1086, %v994
    %v1115 = vadd.f32 %v1087, %v1053
    %v1116 = vadd.f32 %v1088, %v997
    %v1117 = vadd.f32 %v1089, %v1056
    %v1118 = vadd.f32 %v1090, %v1000
    %v1119 = vadd.f32 %v1091, %v1059
    %v1120 = vadd.f32 %v1092, %v1003
    %v1121 = vadd.f32 %v1093, %v1062
    %v1122 = vadd.f32 %v1094, %v1006
    %v1123 = vadd.f32 %v1095, %v1065
    %v1124 = vadd.f32 %v1096, %v1009
    %v1125 = vadd.f32 %v1097, %v1068
    %1126 = vst [vmem:[#allocation2] sm:$0xff] %v1098
    %1127 = vst [vmem:[#allocation2 + $0x8] sm:$0xff] %v1099
    %1128 = vst [vmem:[#allocation2 + $0x10] sm:$0xff] %v1100
    %1129 = vst [vmem:[#allocation2 + $0x18] sm:$0xff] %v1101
    %1130 = vst [vmem:[#allocation2 + $0x20] sm:$0xff] %v1102
    %1131 = vst [vmem:[#allocation2 + $0x28] sm:$0xff] %v1103
    %1132 = vst [vmem:[#allocation2 + $0x30] sm:$0xff] %v1104
    %1133 = vst [vmem:[#allocation2 + $0x38] sm:$0xff] %v1105
    %1134 = vst [vmem:[#allocation2 + $0x40] sm:$0xff] %v1106
    %1135 = vst [vmem:[#allocation2 + $0x48] sm:$0xff] %v1107
    %1136 = vst [vmem:[#allocation2 + $0x50] sm:$0xff] %v1108
    %1137 = vst [vmem:[#allocation2 + $0x58] sm:$0xff] %v1109
    %1138 = vst [vmem:[#allocation2 + $0x60] sm:$0xff] %v1110
    %1139 = vst [vmem:[#allocation2 + $0x68] sm:$0xff] %v1111
    %1140 = vst [vmem:[#allocation2 + $0x70] sm:$0xff] %v1112
    %1141 = vst [vmem:[#allocation2 + $0x78] sm:$0xff] %v1113
    %1142 = vst [vmem:[#allocation2 + $0x80] sm:$0xff] %v1114
    %1143 = vst [vmem:[#allocation2 + $0x88] sm:$0xff] %v1115
    %1144 = vst [vmem:[#allocation2 + $0x90] sm:$0xff] %v1116
    %1145 = vst [vmem:[#allocation2 + $0x98] sm:$0xff] %v1117
    %1146 = vst [vmem:[#allocation2 + $0xa0] sm:$0xff] %v1118
    %1147 = vst [vmem:[#allocation2 + $0xa8] sm:$0xff] %v1119
    %1148 = vst [vmem:[#allocation2 + $0xb0] sm:$0xff] %v1120
    %1149 = vst [vmem:[#allocation2 + $0xb8] sm:$0xff] %v1121
    %1150 = vst [vmem:[#allocation2 + $0xc0] sm:$0xff] %v1122
    %1151 = vst [vmem:[#allocation2 + $0xc8] sm:$0xff] %v1123
    %1152 = vst [vmem:[#allocation2 + $0xd0] sm:$0xff] %v1124
    %1153 = vst [vmem:[#allocation2 + $0xd8] sm:$0xff] %v1125
    %s1154 = scalar_lea.vmem %s277, 8
    %v1155 = vld [vmem:[%s1154] sm:$0xff]
    %v1156 = vld [vmem:[%s1154 + $0x8] sm:$0xff]
    %v1157 = vld [vmem:[%s1154 + $0x10] sm:$0xff]
    %v1158 = vld [vmem:[%s1154 + $0x18] sm:$0xff]
    %v1159 = vld [vmem:[%s1154 + $0x20] sm:$0xff]
    %v1160 = vld [vmem:[%s1154 + $0x28] sm:$0xff]
    %v1161 = vld [vmem:[%s1154 + $0x30] sm:$0xff]
    %v1162 = vld [vmem:[%s1154 + $0x38] sm:$0xff]
    %v1163 = vld [vmem:[%s1154 + $0x40] sm:$0xff]
    %v1164 = vld [vmem:[%s1154 + $0x48] sm:$0xff]
    %v1165 = vld [vmem:[%s1154 + $0x50] sm:$0xff]
    %v1166 = vld [vmem:[%s1154 + $0x58] sm:$0xff]
    %v1167 = vld [vmem:[%s1154 + $0x60] sm:$0xff]
    %v1168 = vld [vmem:[%s1154 + $0x68] sm:$0xff]
    %1169 = vmatpush.msra.mxu0 %v936
    %1170 = vmatpush.msra.mxu0 %v934
    %1171 = vmatpush.msra.mxu0 %v932
    %1172 = vmatpush.msra.mxu0 %v930
    %1173 = vmatpush.msra.mxu0 %v928
    %1174 = vmatpush.msra.mxu0 %v926
    %1175 = vmatpush.msra.mxu0 %v924
    %1176 = vmatpush.msra.mxu0 %v922
    %1177 = vmatpush.msra.mxu0 %v920
    %1178 = vmatpush.msra.mxu0 %v918
    %1179 = vmatpush.msra.mxu0 %v916
    %1180 = vmatpush.msra.mxu0 %v914
    %1181 = vmatpush.msra.mxu0 %v912
    %1182 = vmatpush.msra.mxu0 %v910
    %1183 = vmatpush.msra.mxu0 %v908
    %1184 = vmatpush.msra.mxu0 %v906
    %1185 = vmatmul.f32.gmra.mxu0 %v1155
    %v1186 = vpop.f32.mrf.mxu0
    %v1187 = vadd.f32 0.0, %v1186
    %1188 = vmatmul.f32.gmra.mxu0 %v1156
    %v1189 = vpop.f32.mrf.mxu0
    %v1190 = vadd.f32 0.0, %v1189
    %1191 = vmatmul.f32.gmra.mxu0 %v1157
    %v1192 = vpop.f32.mrf.mxu0
    %v1193 = vadd.f32 0.0, %v1192
    %1194 = vmatmul.f32.gmra.mxu0 %v1158
    %v1195 = vpop.f32.mrf.mxu0
    %v1196 = vadd.f32 0.0, %v1195
    %1197 = vmatmul.f32.gmra.mxu0 %v1159
    %v1198 = vpop.f32.mrf.mxu0
    %v1199 = vadd.f32 0.0, %v1198
    %1200 = vmatmul.f32.gmra.mxu0 %v1160
    %v1201 = vpop.f32.mrf.mxu0
    %v1202 = vadd.f32 0.0, %v1201
    %1203 = vmatmul.f32.gmra.mxu0 %v1161
    %v1204 = vpop.f32.mrf.mxu0
    %v1205 = vadd.f32 0.0, %v1204
    %1206 = vmatmul.f32.gmra.mxu0 %v1162
    %v1207 = vpop.f32.mrf.mxu0
    %v1208 = vadd.f32 0.0, %v1207
    %1209 = vmatmul.f32.gmra.mxu0 %v1163
    %v1210 = vpop.f32.mrf.mxu0
    %v1211 = vadd.f32 0.0, %v1210
    %1212 = vmatmul.f32.gmra.mxu0 %v1164
    %v1213 = vpop.f32.mrf.mxu0
    %v1214 = vadd.f32 0.0, %v1213
    %1215 = vmatmul.f32.gmra.mxu0 %v1165
    %v1216 = vpop.f32.mrf.mxu0
    %v1217 = vadd.f32 0.0, %v1216
    %1218 = vmatmul.f32.gmra.mxu0 %v1166
    %v1219 = vpop.f32.mrf.mxu0
    %v1220 = vadd.f32 0.0, %v1219
    %1221 = vmatmul.f32.gmra.mxu0 %v1167
    %v1222 = vpop.f32.mrf.mxu0
    %v1223 = vadd.f32 0.0, %v1222
    %1224 = vmatmul.f32.gmra.mxu0 %v1168
    %v1225 = vpop.f32.mrf.mxu0
    %v1226 = vadd.f32 0.0, %v1225
    %1227 = vdwg.mxu0
    %1228 = vmatpush.msra.mxu0 %v937
    %1229 = vmatpush.msra.mxu0 %v935
    %1230 = vmatpush.msra.mxu0 %v933
    %1231 = vmatpush.msra.mxu0 %v931
    %1232 = vmatpush.msra.mxu0 %v929
    %1233 = vmatpush.msra.mxu0 %v927
    %1234 = vmatpush.msra.mxu0 %v925
    %1235 = vmatpush.msra.mxu0 %v923
    %1236 = vmatpush.msra.mxu0 %v921
    %1237 = vmatpush.msra.mxu0 %v919
    %1238 = vmatpush.msra.mxu0 %v917
    %1239 = vmatpush.msra.mxu0 %v915
    %1240 = vmatpush.msra.mxu0 %v913
    %1241 = vmatpush.msra.mxu0 %v911
    %1242 = vmatpush.msra.mxu0 %v909
    %1243 = vmatpush.msra.mxu0 %v907
    %1244 = vmatmul.f32.gmra.mxu0 %v1155
    %v1245 = vpop.f32.mrf.mxu0
    %v1246 = vadd.f32 0.0, %v1245
    %1247 = vmatmul.f32.gmra.mxu0 %v1156
    %v1248 = vpop.f32.mrf.mxu0
    %v1249 = vadd.f32 0.0, %v1248
    %1250 = vmatmul.f32.gmra.mxu0 %v1157
    %v1251 = vpop.f32.mrf.mxu0
    %v1252 = vadd.f32 0.0, %v1251
    %1253 = vmatmul.f32.gmra.mxu0 %v1158
    %v1254 = vpop.f32.mrf.mxu0
    %v1255 = vadd.f32 0.0, %v1254
    %1256 = vmatmul.f32.gmra.mxu0 %v1159
    %v1257 = vpop.f32.mrf.mxu0
    %v1258 = vadd.f32 0.0, %v1257
    %1259 = vmatmul.f32.gmra.mxu0 %v1160
    %v1260 = vpop.f32.mrf.mxu0
    %v1261 = vadd.f32 0.0, %v1260
    %1262 = vmatmul.f32.gmra.mxu0 %v1161
    %v1263 = vpop.f32.mrf.mxu0
    %v1264 = vadd.f32 0.0, %v1263
    %1265 = vmatmul.f32.gmra.mxu0 %v1162
    %v1266 = vpop.f32.mrf.mxu0
    %v1267 = vadd.f32 0.0, %v1266
    %1268 = vmatmul.f32.gmra.mxu0 %v1163
    %v1269 = vpop.f32.mrf.mxu0
    %v1270 = vadd.f32 0.0, %v1269
    %1271 = vmatmul.f32.gmra.mxu0 %v1164
    %v1272 = vpop.f32.mrf.mxu0
    %v1273 = vadd.f32 0.0, %v1272
    %1274 = vmatmul.f32.gmra.mxu0 %v1165
    %v1275 = vpop.f32.mrf.mxu0
    %v1276 = vadd.f32 0.0, %v1275
    %1277 = vmatmul.f32.gmra.mxu0 %v1166
    %v1278 = vpop.f32.mrf.mxu0
    %v1279 = vadd.f32 0.0, %v1278
    %1280 = vmatmul.f32.gmra.mxu0 %v1167
    %v1281 = vpop.f32.mrf.mxu0
    %v1282 = vadd.f32 0.0, %v1281
    %1283 = vmatmul.f32.gmra.mxu0 %v1168
    %v1284 = vpop.f32.mrf.mxu0
    %v1285 = vadd.f32 0.0, %v1284
    %1286 = vdwg.mxu0
    %v1287 = vld [vmem:[%s410] sm:$0xff]
    %v1288 = vld [vmem:[%s410 + $0x8] sm:$0xff]
    %v1289 = vld [vmem:[%s410 + $0x10] sm:$0xff]
    %v1290 = vld [vmem:[%s410 + $0x18] sm:$0xff]
    %v1291 = vld [vmem:[%s410 + $0x20] sm:$0xff]
    %v1292 = vld [vmem:[%s410 + $0x28] sm:$0xff]
    %v1293 = vld [vmem:[%s410 + $0x30] sm:$0xff]
    %v1294 = vld [vmem:[%s410 + $0x38] sm:$0xff]
    %v1295 = vld [vmem:[%s410 + $0x40] sm:$0xff]
    %v1296 = vld [vmem:[%s410 + $0x48] sm:$0xff]
    %v1297 = vld [vmem:[%s410 + $0x50] sm:$0xff]
    %v1298 = vld [vmem:[%s410 + $0x58] sm:$0xff]
    %v1299 = vld [vmem:[%s410 + $0x60] sm:$0xff]
    %v1300 = vld [vmem:[%s410 + $0x68] sm:$0xff]
    %v1301 = vld [vmem:[%s410 + $0x70] sm:$0xff]
    %v1302 = vld [vmem:[%s410 + $0x78] sm:$0xff]
    %v1303 = vld [vmem:[%s410 + $0x80] sm:$0xff]
    %v1304 = vld [vmem:[%s410 + $0x88] sm:$0xff]
    %v1305 = vld [vmem:[%s410 + $0x90] sm:$0xff]
    %v1306 = vld [vmem:[%s410 + $0x98] sm:$0xff]
    %v1307 = vld [vmem:[%s410 + $0xa0] sm:$0xff]
    %v1308 = vld [vmem:[%s410 + $0xa8] sm:$0xff]
    %v1309 = vld [vmem:[%s410 + $0xb0] sm:$0xff]
    %v1310 = vld [vmem:[%s410 + $0xb8] sm:$0xff]
    %v1311 = vld [vmem:[%s410 + $0xc0] sm:$0xff]
    %v1312 = vld [vmem:[%s410 + $0xc8] sm:$0xff]
    %v1313 = vld [vmem:[%s410 + $0xd0] sm:$0xff]
    %v1314 = vld [vmem:[%s410 + $0xd8] sm:$0xff]
    %v1315 = vadd.f32 %v1287, %v1187
    %v1316 = vadd.f32 %v1288, %v1246
    %v1317 = vadd.f32 %v1289, %v1190
    %v1318 = vadd.f32 %v1290, %v1249
    %v1319 = vadd.f32 %v1291, %v1193
    %v1320 = vadd.f32 %v1292, %v1252
    %v1321 = vadd.f32 %v1293, %v1196
    %v1322 = vadd.f32 %v1294, %v1255
    %v1323 = vadd.f32 %v1295, %v1199
    %v1324 = vadd.f32 %v1296, %v1258
    %v1325 = vadd.f32 %v1297, %v1202
    %v1326 = vadd.f32 %v1298, %v1261
    %v1327 = vadd.f32 %v1299, %v1205
    %v1328 = vadd.f32 %v1300, %v1264
    %v1329 = vadd.f32 %v1301, %v1208
    %v1330 = vadd.f32 %v1302, %v1267
    %v1331 = vadd.f32 %v1303, %v1211
    %v1332 = vadd.f32 %v1304, %v1270
    %v1333 = vadd.f32 %v1305, %v1214
    %v1334 = vadd.f32 %v1306, %v1273
    %v1335 = vadd.f32 %v1307, %v1217
    %v1336 = vadd.f32 %v1308, %v1276
    %v1337 = vadd.f32 %v1309, %v1220
    %v1338 = vadd.f32 %v1310, %v1279
    %v1339 = vadd.f32 %v1311, %v1223
    %v1340 = vadd.f32 %v1312, %v1282
    %v1341 = vadd.f32 %v1313, %v1226
    %v1342 = vadd.f32 %v1314, %v1285
    %1343 = vst [vmem:[%s410] sm:$0xff] %v1315
    %1344 = vst [vmem:[%s410 + $0x8] sm:$0xff] %v1316
    %1345 = vst [vmem:[%s410 + $0x10] sm:$0xff] %v1317
    %1346 = vst [vmem:[%s410 + $0x18] sm:$0xff] %v1318
    %1347 = vst [vmem:[%s410 + $0x20] sm:$0xff] %v1319
    %1348 = vst [vmem:[%s410 + $0x28] sm:$0xff] %v1320
    %1349 = vst [vmem:[%s410 + $0x30] sm:$0xff] %v1321
    %1350 = vst [vmem:[%s410 + $0x38] sm:$0xff] %v1322
    %1351 = vst [vmem:[%s410 + $0x40] sm:$0xff] %v1323
    %1352 = vst [vmem:[%s410 + $0x48] sm:$0xff] %v1324
    %1353 = vst [vmem:[%s410 + $0x50] sm:$0xff] %v1325
    %1354 = vst [vmem:[%s410 + $0x58] sm:$0xff] %v1326
    %1355 = vst [vmem:[%s410 + $0x60] sm:$0xff] %v1327
    %1356 = vst [vmem:[%s410 + $0x68] sm:$0xff] %v1328
    %1357 = vst [vmem:[%s410 + $0x70] sm:$0xff] %v1329
    %1358 = vst [vmem:[%s410 + $0x78] sm:$0xff] %v1330
    %1359 = vst [vmem:[%s410 + $0x80] sm:$0xff] %v1331
    %1360 = vst [vmem:[%s410 + $0x88] sm:$0xff] %v1332
    %1361 = vst [vmem:[%s410 + $0x90] sm:$0xff] %v1333
    %1362 = vst [vmem:[%s410 + $0x98] sm:$0xff] %v1334
    %1363 = vst [vmem:[%s410 + $0xa0] sm:$0xff] %v1335
    %1364 = vst [vmem:[%s410 + $0xa8] sm:$0xff] %v1336
    %1365 = vst [vmem:[%s410 + $0xb0] sm:$0xff] %v1337
    %1366 = vst [vmem:[%s410 + $0xb8] sm:$0xff] %v1338
    %1367 = vst [vmem:[%s410 + $0xc0] sm:$0xff] %v1339
    %1368 = vst [vmem:[%s410 + $0xc8] sm:$0xff] %v1340
    %1369 = vst [vmem:[%s410 + $0xd0] sm:$0xff] %v1341
    %1370 = vst [vmem:[%s410 + $0xd8] sm:$0xff] %v1342
    %s1371 = scalar_lea.vmem %s1, 768
    %v1372 = vld [vmem:[%s1371] sm:$0xff]
    %v1373 = vld [vmem:[%s1371 + $0x8] sm:$0xff]
    %v1374 = vld [vmem:[%s1371 + $0x10] sm:$0xff]
    %v1375 = vld [vmem:[%s1371 + $0x18] sm:$0xff]
    %v1376 = vld [vmem:[%s1371 + $0x20] sm:$0xff]
    %v1377 = vld [vmem:[%s1371 + $0x28] sm:$0xff]
    %v1378 = vld [vmem:[%s1371 + $0x30] sm:$0xff]
    %v1379 = vld [vmem:[%s1371 + $0x38] sm:$0xff]
    %v1380 = vld [vmem:[%s1371 + $0x40] sm:$0xff]
    %v1381 = vld [vmem:[%s1371 + $0x48] sm:$0xff]
    %v1382 = vld [vmem:[%s1371 + $0x50] sm:$0xff]
    %v1383 = vld [vmem:[%s1371 + $0x58] sm:$0xff]
    %v1384 = vld [vmem:[%s1371 + $0x60] sm:$0xff]
    %v1385 = vld [vmem:[%s1371 + $0x68] sm:$0xff]
    %v1386 = vld [vmem:[%s1371 + $0x70] sm:$0xff]
    %v1387 = vld [vmem:[%s1371 + $0x78] sm:$0xff]
    %v1388 = vld [vmem:[%s1371 + $0x80] sm:$0xff]
    %v1389 = vld [vmem:[%s1371 + $0x88] sm:$0xff]
    %v1390 = vld [vmem:[%s1371 + $0x90] sm:$0xff]
    %v1391 = vld [vmem:[%s1371 + $0x98] sm:$0xff]
    %v1392 = vld [vmem:[%s1371 + $0xa0] sm:$0xff]
    %v1393 = vld [vmem:[%s1371 + $0xa8] sm:$0xff]
    %v1394 = vld [vmem:[%s1371 + $0xb0] sm:$0xff]
    %v1395 = vld [vmem:[%s1371 + $0xb8] sm:$0xff]
    %v1396 = vld [vmem:[%s1371 + $0xc0] sm:$0xff]
    %v1397 = vld [vmem:[%s1371 + $0xc8] sm:$0xff]
    %v1398 = vld [vmem:[%s1371 + $0xd0] sm:$0xff]
    %v1399 = vld [vmem:[%s1371 + $0xd8] sm:$0xff]
    %v1400 = vld [vmem:[%s1371 + $0xe0] sm:$0xff]
    %v1401 = vld [vmem:[%s1371 + $0xe8] sm:$0xff]
    %v1402 = vld [vmem:[%s1371 + $0xf0] sm:$0xff]
    %v1403 = vld [vmem:[%s1371 + $0xf8] sm:$0xff]
    %v1404 = vld [vmem:[%s1154] sm:$0xff]
    %v1405 = vld [vmem:[%s1154 + $0x8] sm:$0xff]
    %v1406 = vld [vmem:[%s1154 + $0x10] sm:$0xff]
    %v1407 = vld [vmem:[%s1154 + $0x18] sm:$0xff]
    %v1408 = vld [vmem:[%s1154 + $0x20] sm:$0xff]
    %v1409 = vld [vmem:[%s1154 + $0x28] sm:$0xff]
    %v1410 = vld [vmem:[%s1154 + $0x30] sm:$0xff]
    %v1411 = vld [vmem:[%s1154 + $0x38] sm:$0xff]
    %v1412 = vld [vmem:[%s1154 + $0x40] sm:$0xff]
    %v1413 = vld [vmem:[%s1154 + $0x48] sm:$0xff]
    %v1414 = vld [vmem:[%s1154 + $0x50] sm:$0xff]
    %v1415 = vld [vmem:[%s1154 + $0x58] sm:$0xff]
    %v1416 = vld [vmem:[%s1154 + $0x60] sm:$0xff]
    %v1417 = vld [vmem:[%s1154 + $0x68] sm:$0xff]
    %1418 = vmatpush.msra.mxu0 %v1402
    %1419 = vmatpush.msra.mxu0 %v1400
    %1420 = vmatpush.msra.mxu0 %v1398
    %1421 = vmatpush.msra.mxu0 %v1396
    %1422 = vmatpush.msra.mxu0 %v1394
    %1423 = vmatpush.msra.mxu0 %v1392
    %1424 = vmatpush.msra.mxu0 %v1390
    %1425 = vmatpush.msra.mxu0 %v1388
    %1426 = vmatpush.msra.mxu0 %v1386
    %1427 = vmatpush.msra.mxu0 %v1384
    %1428 = vmatpush.msra.mxu0 %v1382
    %1429 = vmatpush.msra.mxu0 %v1380
    %1430 = vmatpush.msra.mxu0 %v1378
    %1431 = vmatpush.msra.mxu0 %v1376
    %1432 = vmatpush.msra.mxu0 %v1374
    %1433 = vmatpush.msra.mxu0 %v1372
    %1434 = vmatmul.f32.gmra.mxu0 %v1404
    %v1435 = vpop.f32.mrf.mxu0
    %v1436 = vadd.f32 0.0, %v1435
    %1437 = vmatmul.f32.gmra.mxu0 %v1405
    %v1438 = vpop.f32.mrf.mxu0
    %v1439 = vadd.f32 0.0, %v1438
    %1440 = vmatmul.f32.gmra.mxu0 %v1406
    %v1441 = vpop.f32.mrf.mxu0
    %v1442 = vadd.f32 0.0, %v1441
    %1443 = vmatmul.f32.gmra.mxu0 %v1407
    %v1444 = vpop.f32.mrf.mxu0
    %v1445 = vadd.f32 0.0, %v1444
    %1446 = vmatmul.f32.gmra.mxu0 %v1408
    %v1447 = vpop.f32.mrf.mxu0
    %v1448 = vadd.f32 0.0, %v1447
    %1449 = vmatmul.f32.gmra.mxu0 %v1409
    %v1450 = vpop.f32.mrf.mxu0
    %v1451 = vadd.f32 0.0, %v1450
    %1452 = vmatmul.f32.gmra.mxu0 %v1410
    %v1453 = vpop.f32.mrf.mxu0
    %v1454 = vadd.f32 0.0, %v1453
    %1455 = vmatmul.f32.gmra.mxu0 %v1411
    %v1456 = vpop.f32.mrf.mxu0
    %v1457 = vadd.f32 0.0, %v1456
    %1458 = vmatmul.f32.gmra.mxu0 %v1412
    %v1459 = vpop.f32.mrf.mxu0
    %v1460 = vadd.f32 0.0, %v1459
    %1461 = vmatmul.f32.gmra.mxu0 %v1413
    %v1462 = vpop.f32.mrf.mxu0
    %v1463 = vadd.f32 0.0, %v1462
    %1464 = vmatmul.f32.gmra.mxu0 %v1414
    %v1465 = vpop.f32.mrf.mxu0
    %v1466 = vadd.f32 0.0, %v1465
    %1467 = vmatmul.f32.gmra.mxu0 %v1415
    %v1468 = vpop.f32.mrf.mxu0
    %v1469 = vadd.f32 0.0, %v1468
    %1470 = vmatmul.f32.gmra.mxu0 %v1416
    %v1471 = vpop.f32.mrf.mxu0
    %v1472 = vadd.f32 0.0, %v1471
    %1473 = vmatmul.f32.gmra.mxu0 %v1417
    %v1474 = vpop.f32.mrf.mxu0
    %v1475 = vadd.f32 0.0, %v1474
    %1476 = vdwg.mxu0
    %1477 = vmatpush.msra.mxu0 %v1403
    %1478 = vmatpush.msra.mxu0 %v1401
    %1479 = vmatpush.msra.mxu0 %v1399
    %1480 = vmatpush.msra.mxu0 %v1397
    %1481 = vmatpush.msra.mxu0 %v1395
    %1482 = vmatpush.msra.mxu0 %v1393
    %1483 = vmatpush.msra.mxu0 %v1391
    %1484 = vmatpush.msra.mxu0 %v1389
    %1485 = vmatpush.msra.mxu0 %v1387
    %1486 = vmatpush.msra.mxu0 %v1385
    %1487 = vmatpush.msra.mxu0 %v1383
    %1488 = vmatpush.msra.mxu0 %v1381
    %1489 = vmatpush.msra.mxu0 %v1379
    %1490 = vmatpush.msra.mxu0 %v1377
    %1491 = vmatpush.msra.mxu0 %v1375
    %1492 = vmatpush.msra.mxu0 %v1373
    %1493 = vmatmul.f32.gmra.mxu0 %v1404
    %v1494 = vpop.f32.mrf.mxu0
    %v1495 = vadd.f32 0.0, %v1494
    %1496 = vmatmul.f32.gmra.mxu0 %v1405
    %v1497 = vpop.f32.mrf.mxu0
    %v1498 = vadd.f32 0.0, %v1497
    %1499 = vmatmul.f32.gmra.mxu0 %v1406
    %v1500 = vpop.f32.mrf.mxu0
    %v1501 = vadd.f32 0.0, %v1500
    %1502 = vmatmul.f32.gmra.mxu0 %v1407
    %v1503 = vpop.f32.mrf.mxu0
    %v1504 = vadd.f32 0.0, %v1503
    %1505 = vmatmul.f32.gmra.mxu0 %v1408
    %v1506 = vpop.f32.mrf.mxu0
    %v1507 = vadd.f32 0.0, %v1506
    %1508 = vmatmul.f32.gmra.mxu0 %v1409
    %v1509 = vpop.f32.mrf.mxu0
    %v1510 = vadd.f32 0.0, %v1509
    %1511 = vmatmul.f32.gmra.mxu0 %v1410
    %v1512 = vpop.f32.mrf.mxu0
    %v1513 = vadd.f32 0.0, %v1512
    %1514 = vmatmul.f32.gmra.mxu0 %v1411
    %v1515 = vpop.f32.mrf.mxu0
    %v1516 = vadd.f32 0.0, %v1515
    %1517 = vmatmul.f32.gmra.mxu0 %v1412
    %v1518 = vpop.f32.mrf.mxu0
    %v1519 = vadd.f32 0.0, %v1518
    %1520 = vmatmul.f32.gmra.mxu0 %v1413
    %v1521 = vpop.f32.mrf.mxu0
    %v1522 = vadd.f32 0.0, %v1521
    %1523 = vmatmul.f32.gmra.mxu0 %v1414
    %v1524 = vpop.f32.mrf.mxu0
    %v1525 = vadd.f32 0.0, %v1524
    %1526 = vmatmul.f32.gmra.mxu0 %v1415
    %v1527 = vpop.f32.mrf.mxu0
    %v1528 = vadd.f32 0.0, %v1527
    %1529 = vmatmul.f32.gmra.mxu0 %v1416
    %v1530 = vpop.f32.mrf.mxu0
    %v1531 = vadd.f32 0.0, %v1530
    %1532 = vmatmul.f32.gmra.mxu0 %v1417
    %v1533 = vpop.f32.mrf.mxu0
    %v1534 = vadd.f32 0.0, %v1533
    %1535 = vdwg.mxu0
    %v1536 = vld [vmem:[#allocation2] sm:$0xff]
    %v1537 = vld [vmem:[#allocation2 + $0x8] sm:$0xff]
    %v1538 = vld [vmem:[#allocation2 + $0x10] sm:$0xff]
    %v1539 = vld [vmem:[#allocation2 + $0x18] sm:$0xff]
    %v1540 = vld [vmem:[#allocation2 + $0x20] sm:$0xff]
    %v1541 = vld [vmem:[#allocation2 + $0x28] sm:$0xff]
    %v1542 = vld [vmem:[#allocation2 + $0x30] sm:$0xff]
    %v1543 = vld [vmem:[#allocation2 + $0x38] sm:$0xff]
    %v1544 = vld [vmem:[#allocation2 + $0x40] sm:$0xff]
    %v1545 = vld [vmem:[#allocation2 + $0x48] sm:$0xff]
    %v1546 = vld [vmem:[#allocation2 + $0x50] sm:$0xff]
    %v1547 = vld [vmem:[#allocation2 + $0x58] sm:$0xff]
    %v1548 = vld [vmem:[#allocation2 + $0x60] sm:$0xff]
    %v1549 = vld [vmem:[#allocation2 + $0x68] sm:$0xff]
    %v1550 = vld [vmem:[#allocation2 + $0x70] sm:$0xff]
    %v1551 = vld [vmem:[#allocation2 + $0x78] sm:$0xff]
    %v1552 = vld [vmem:[#allocation2 + $0x80] sm:$0xff]
    %v1553 = vld [vmem:[#allocation2 + $0x88] sm:$0xff]
    %v1554 = vld [vmem:[#allocation2 + $0x90] sm:$0xff]
    %v1555 = vld [vmem:[#allocation2 + $0x98] sm:$0xff]
    %v1556 = vld [vmem:[#allocation2 + $0xa0] sm:$0xff]
    %v1557 = vld [vmem:[#allocation2 + $0xa8] sm:$0xff]
    %v1558 = vld [vmem:[#allocation2 + $0xb0] sm:$0xff]
    %v1559 = vld [vmem:[#allocation2 + $0xb8] sm:$0xff]
    %v1560 = vld [vmem:[#allocation2 + $0xc0] sm:$0xff]
    %v1561 = vld [vmem:[#allocation2 + $0xc8] sm:$0xff]
    %v1562 = vld [vmem:[#allocation2 + $0xd0] sm:$0xff]
    %v1563 = vld [vmem:[#allocation2 + $0xd8] sm:$0xff]
    %v1564 = vadd.f32 %v1536, %v1436
    %v1565 = vadd.f32 %v1537, %v1495
    %v1566 = vadd.f32 %v1538, %v1439
    %v1567 = vadd.f32 %v1539, %v1498
    %v1568 = vadd.f32 %v1540, %v1442
    %v1569 = vadd.f32 %v1541, %v1501
    %v1570 = vadd.f32 %v1542, %v1445
    %v1571 = vadd.f32 %v1543, %v1504
    %v1572 = vadd.f32 %v1544, %v1448
    %v1573 = vadd.f32 %v1545, %v1507
    %v1574 = vadd.f32 %v1546, %v1451
    %v1575 = vadd.f32 %v1547, %v1510
    %v1576 = vadd.f32 %v1548, %v1454
    %v1577 = vadd.f32 %v1549, %v1513
    %v1578 = vadd.f32 %v1550, %v1457
    %v1579 = vadd.f32 %v1551, %v1516
    %v1580 = vadd.f32 %v1552, %v1460
    %v1581 = vadd.f32 %v1553, %v1519
    %v1582 = vadd.f32 %v1554, %v1463
    %v1583 = vadd.f32 %v1555, %v1522
    %v1584 = vadd.f32 %v1556, %v1466
    %v1585 = vadd.f32 %v1557, %v1525
    %v1586 = vadd.f32 %v1558, %v1469
    %v1587 = vadd.f32 %v1559, %v1528
    %v1588 = vadd.f32 %v1560, %v1472
    %v1589 = vadd.f32 %v1561, %v1531
    %v1590 = vadd.f32 %v1562, %v1475
    %v1591 = vadd.f32 %v1563, %v1534
    %1592 = vst [vmem:[#allocation2] sm:$0xff] %v1564
    %1593 = vst [vmem:[#allocation2 + $0x8] sm:$0xff] %v1565
    %1594 = vst [vmem:[#allocation2 + $0x10] sm:$0xff] %v1566
    %1595 = vst [vmem:[#allocation2 + $0x18] sm:$0xff] %v1567
    %1596 = vst [vmem:[#allocation2 + $0x20] sm:$0xff] %v1568
    %1597 = vst [vmem:[#allocation2 + $0x28] sm:$0xff] %v1569
    %1598 = vst [vmem:[#allocation2 + $0x30] sm:$0xff] %v1570
    %1599 = vst [vmem:[#allocation2 + $0x38] sm:$0xff] %v1571
    %1600 = vst [vmem:[#allocation2 + $0x40] sm:$0xff] %v1572
    %1601 = vst [vmem:[#allocation2 + $0x48] sm:$0xff] %v1573
    %1602 = vst [vmem:[#allocation2 + $0x50] sm:$0xff] %v1574
    %1603 = vst [vmem:[#allocation2 + $0x58] sm:$0xff] %v1575
    %1604 = vst [vmem:[#allocation2 + $0x60] sm:$0xff] %v1576
    %1605 = vst [vmem:[#allocation2 + $0x68] sm:$0xff] %v1577
    %1606 = vst [vmem:[#allocation2 + $0x70] sm:$0xff] %v1578
    %1607 = vst [vmem:[#allocation2 + $0x78] sm:$0xff] %v1579
    %1608 = vst [vmem:[#allocation2 + $0x80] sm:$0xff] %v1580
    %1609 = vst [vmem:[#allocation2 + $0x88] sm:$0xff] %v1581
    %1610 = vst [vmem:[#allocation2 + $0x90] sm:$0xff] %v1582
    %1611 = vst [vmem:[#allocation2 + $0x98] sm:$0xff] %v1583
    %1612 = vst [vmem:[#allocation2 + $0xa0] sm:$0xff] %v1584
    %1613 = vst [vmem:[#allocation2 + $0xa8] sm:$0xff] %v1585
    %1614 = vst [vmem:[#allocation2 + $0xb0] sm:$0xff] %v1586
    %1615 = vst [vmem:[#allocation2 + $0xb8] sm:$0xff] %v1587
    %1616 = vst [vmem:[#allocation2 + $0xc0] sm:$0xff] %v1588
    %1617 = vst [vmem:[#allocation2 + $0xc8] sm:$0xff] %v1589
    %1618 = vst [vmem:[#allocation2 + $0xd0] sm:$0xff] %v1590
    %1619 = vst [vmem:[#allocation2 + $0xd8] sm:$0xff] %v1591
    %s1620 = scalar_lea.vmem %s0, 16
    %v1621 = vld [vmem:[%s1620] sm:$0xff]
    %v1622 = vld [vmem:[%s1620 + $0x8] sm:$0xff]
    %v1623 = vld [vmem:[%s1620 + $0x10] sm:$0xff]
    %v1624 = vld [vmem:[%s1620 + $0x18] sm:$0xff]
    %v1625 = vld [vmem:[%s1620 + $0x20] sm:$0xff]
    %v1626 = vld [vmem:[%s1620 + $0x28] sm:$0xff]
    %v1627 = vld [vmem:[%s1620 + $0x30] sm:$0xff]
    %v1628 = vld [vmem:[%s1620 + $0x38] sm:$0xff]
    %v1629 = vld [vmem:[%s1620 + $0x40] sm:$0xff]
    %v1630 = vld [vmem:[%s1620 + $0x48] sm:$0xff]
    %v1631 = vld [vmem:[%s1620 + $0x50] sm:$0xff]
    %v1632 = vld [vmem:[%s1620 + $0x58] sm:$0xff]
    %v1633 = vld [vmem:[%s1620 + $0x60] sm:$0xff]
    %v1634 = vld [vmem:[%s1620 + $0x68] sm:$0xff]
    %1635 = vmatpush.msra.mxu0 %v1402
    %1636 = vmatpush.msra.mxu0 %v1400
    %1637 = vmatpush.msra.mxu0 %v1398
    %1638 = vmatpush.msra.mxu0 %v1396
    %1639 = vmatpush.msra.mxu0 %v1394
    %1640 = vmatpush.msra.mxu0 %v1392
    %1641 = vmatpush.msra.mxu0 %v1390
    %1642 = vmatpush.msra.mxu0 %v1388
    %1643 = vmatpush.msra.mxu0 %v1386
    %1644 = vmatpush.msra.mxu0 %v1384
    %1645 = vmatpush.msra.mxu0 %v1382
    %1646 = vmatpush.msra.mxu0 %v1380
    %1647 = vmatpush.msra.mxu0 %v1378
    %1648 = vmatpush.msra.mxu0 %v1376
    %1649 = vmatpush.msra.mxu0 %v1374
    %1650 = vmatpush.msra.mxu0 %v1372
    %1651 = vmatmul.f32.gmra.mxu0 %v1621
    %v1652 = vpop.f32.mrf.mxu0
    %v1653 = vadd.f32 0.0, %v1652
    %1654 = vmatmul.f32.gmra.mxu0 %v1622
    %v1655 = vpop.f32.mrf.mxu0
    %v1656 = vadd.f32 0.0, %v1655
    %1657 = vmatmul.f32.gmra.mxu0 %v1623
    %v1658 = vpop.f32.mrf.mxu0
    %v1659 = vadd.f32 0.0, %v1658
    %1660 = vmatmul.f32.gmra.mxu0 %v1624
    %v1661 = vpop.f32.mrf.mxu0
    %v1662 = vadd.f32 0.0, %v1661
    %1663 = vmatmul.f32.gmra.mxu0 %v1625
    %v1664 = vpop.f32.mrf.mxu0
    %v1665 = vadd.f32 0.0, %v1664
    %1666 = vmatmul.f32.gmra.mxu0 %v1626
    %v1667 = vpop.f32.mrf.mxu0
    %v1668 = vadd.f32 0.0, %v1667
    %1669 = vmatmul.f32.gmra.mxu0 %v1627
    %v1670 = vpop.f32.mrf.mxu0
    %v1671 = vadd.f32 0.0, %v1670
    %1672 = vmatmul.f32.gmra.mxu0 %v1628
    %v1673 = vpop.f32.mrf.mxu0
    %v1674 = vadd.f32 0.0, %v1673
    %1675 = vmatmul.f32.gmra.mxu0 %v1629
    %v1676 = vpop.f32.mrf.mxu0
    %v1677 = vadd.f32 0.0, %v1676
    %1678 = vmatmul.f32.gmra.mxu0 %v1630
    %v1679 = vpop.f32.mrf.mxu0
    %v1680 = vadd.f32 0.0, %v1679
    %1681 = vmatmul.f32.gmra.mxu0 %v1631
    %v1682 = vpop.f32.mrf.mxu0
    %v1683 = vadd.f32 0.0, %v1682
    %1684 = vmatmul.f32.gmra.mxu0 %v1632
    %v1685 = vpop.f32.mrf.mxu0
    %v1686 = vadd.f32 0.0, %v1685
    %1687 = vmatmul.f32.gmra.mxu0 %v1633
    %v1688 = vpop.f32.mrf.mxu0
    %v1689 = vadd.f32 0.0, %v1688
    %1690 = vmatmul.f32.gmra.mxu0 %v1634
    %v1691 = vpop.f32.mrf.mxu0
    %v1692 = vadd.f32 0.0, %v1691
    %1693 = vdwg.mxu0
    %1694 = vmatpush.msra.mxu0 %v1403
    %1695 = vmatpush.msra.mxu0 %v1401
    %1696 = vmatpush.msra.mxu0 %v1399
    %1697 = vmatpush.msra.mxu0 %v1397
    %1698 = vmatpush.msra.mxu0 %v1395
    %1699 = vmatpush.msra.mxu0 %v1393
    %1700 = vmatpush.msra.mxu0 %v1391
    %1701 = vmatpush.msra.mxu0 %v1389
    %1702 = vmatpush.msra.mxu0 %v1387
    %1703 = vmatpush.msra.mxu0 %v1385
    %1704 = vmatpush.msra.mxu0 %v1383
    %1705 = vmatpush.msra.mxu0 %v1381
    %1706 = vmatpush.msra.mxu0 %v1379
    %1707 = vmatpush.msra.mxu0 %v1377
    %1708 = vmatpush.msra.mxu0 %v1375
    %1709 = vmatpush.msra.mxu0 %v1373
    %1710 = vmatmul.f32.gmra.mxu0 %v1621
    %v1711 = vpop.f32.mrf.mxu0
    %v1712 = vadd.f32 0.0, %v1711
    %1713 = vmatmul.f32.gmra.mxu0 %v1622
    %v1714 = vpop.f32.mrf.mxu0
    %v1715 = vadd.f32 0.0, %v1714
    %1716 = vmatmul.f32.gmra.mxu0 %v1623
    %v1717 = vpop.f32.mrf.mxu0
    %v1718 = vadd.f32 0.0, %v1717
    %1719 = vmatmul.f32.gmra.mxu0 %v1624
    %v1720 = vpop.f32.mrf.mxu0
    %v1721 = vadd.f32 0.0, %v1720
    %1722 = vmatmul.f32.gmra.mxu0 %v1625
    %v1723 = vpop.f32.mrf.mxu0
    %v1724 = vadd.f32 0.0, %v1723
    %1725 = vmatmul.f32.gmra.mxu0 %v1626
    %v1726 = vpop.f32.mrf.mxu0
    %v1727 = vadd.f32 0.0, %v1726
    %1728 = vmatmul.f32.gmra.mxu0 %v1627
    %v1729 = vpop.f32.mrf.mxu0
    %v1730 = vadd.f32 0.0, %v1729
    %1731 = vmatmul.f32.gmra.mxu0 %v1628
    %v1732 = vpop.f32.mrf.mxu0
    %v1733 = vadd.f32 0.0, %v1732
    %1734 = vmatmul.f32.gmra.mxu0 %v1629
    %v1735 = vpop.f32.mrf.mxu0
    %v1736 = vadd.f32 0.0, %v1735
    %1737 = vmatmul.f32.gmra.mxu0 %v1630
    %v1738 = vpop.f32.mrf.mxu0
    %v1739 = vadd.f32 0.0, %v1738
    %1740 = vmatmul.f32.gmra.mxu0 %v1631
    %v1741 = vpop.f32.mrf.mxu0
    %v1742 = vadd.f32 0.0, %v1741
    %1743 = vmatmul.f32.gmra.mxu0 %v1632
    %v1744 = vpop.f32.mrf.mxu0
    %v1745 = vadd.f32 0.0, %v1744
    %1746 = vmatmul.f32.gmra.mxu0 %v1633
    %v1747 = vpop.f32.mrf.mxu0
    %v1748 = vadd.f32 0.0, %v1747
    %1749 = vmatmul.f32.gmra.mxu0 %v1634
    %v1750 = vpop.f32.mrf.mxu0
    %v1751 = vadd.f32 0.0, %v1750
    %1752 = vdwg.mxu0
    %v1753 = vld [vmem:[%s410] sm:$0xff]
    %v1754 = vld [vmem:[%s410 + $0x8] sm:$0xff]
    %v1755 = vld [vmem:[%s410 + $0x10] sm:$0xff]
    %v1756 = vld [vmem:[%s410 + $0x18] sm:$0xff]
    %v1757 = vld [vmem:[%s410 + $0x20] sm:$0xff]
    %v1758 = vld [vmem:[%s410 + $0x28] sm:$0xff]
    %v1759 = vld [vmem:[%s410 + $0x30] sm:$0xff]
    %v1760 = vld [vmem:[%s410 + $0x38] sm:$0xff]
    %v1761 = vld [vmem:[%s410 + $0x40] sm:$0xff]
    %v1762 = vld [vmem:[%s410 + $0x48] sm:$0xff]
    %v1763 = vld [vmem:[%s410 + $0x50] sm:$0xff]
    %v1764 = vld [vmem:[%s410 + $0x58] sm:$0xff]
    %v1765 = vld [vmem:[%s410 + $0x60] sm:$0xff]
    %v1766 = vld [vmem:[%s410 + $0x68] sm:$0xff]
    %v1767 = vld [vmem:[%s410 + $0x70] sm:$0xff]
    %v1768 = vld [vmem:[%s410 + $0x78] sm:$0xff]
    %v1769 = vld [vmem:[%s410 + $0x80] sm:$0xff]
    %v1770 = vld [vmem:[%s410 + $0x88] sm:$0xff]
    %v1771 = vld [vmem:[%s410 + $0x90] sm:$0xff]
    %v1772 = vld [vmem:[%s410 + $0x98] sm:$0xff]
    %v1773 = vld [vmem:[%s410 + $0xa0] sm:$0xff]
    %v1774 = vld [vmem:[%s410 + $0xa8] sm:$0xff]
    %v1775 = vld [vmem:[%s410 + $0xb0] sm:$0xff]
    %v1776 = vld [vmem:[%s410 + $0xb8] sm:$0xff]
    %v1777 = vld [vmem:[%s410 + $0xc0] sm:$0xff]
    %v1778 = vld [vmem:[%s410 + $0xc8] sm:$0xff]
    %v1779 = vld [vmem:[%s410 + $0xd0] sm:$0xff]
    %v1780 = vld [vmem:[%s410 + $0xd8] sm:$0xff]
    %v1781 = vadd.f32 %v1753, %v1653
    %v1782 = vadd.f32 %v1754, %v1712
    %v1783 = vadd.f32 %v1755, %v1656
    %v1784 = vadd.f32 %v1756, %v1715
    %v1785 = vadd.f32 %v1757, %v1659
    %v1786 = vadd.f32 %v1758, %v1718
    %v1787 = vadd.f32 %v1759, %v1662
    %v1788 = vadd.f32 %v1760, %v1721
    %v1789 = vadd.f32 %v1761, %v1665
    %v1790 = vadd.f32 %v1762, %v1724
    %v1791 = vadd.f32 %v1763, %v1668
    %v1792 = vadd.f32 %v1764, %v1727
    %v1793 = vadd.f32 %v1765, %v1671
    %v1794 = vadd.f32 %v1766, %v1730
    %v1795 = vadd.f32 %v1767, %v1674
    %v1796 = vadd.f32 %v1768, %v1733
    %v1797 = vadd.f32 %v1769, %v1677
    %v1798 = vadd.f32 %v1770, %v1736
    %v1799 = vadd.f32 %v1771, %v1680
    %v1800 = vadd.f32 %v1772, %v1739
    %v1801 = vadd.f32 %v1773, %v1683
    %v1802 = vadd.f32 %v1774, %v1742
    %v1803 = vadd.f32 %v1775, %v1686
    %v1804 = vadd.f32 %v1776, %v1745
    %v1805 = vadd.f32 %v1777, %v1689
    %v1806 = vadd.f32 %v1778, %v1748
    %v1807 = vadd.f32 %v1779, %v1692
    %v1808 = vadd.f32 %v1780, %v1751
    %1809 = vst [vmem:[%s410] sm:$0xff] %v1781
    %1810 = vst [vmem:[%s410 + $0x8] sm:$0xff] %v1782
    %1811 = vst [vmem:[%s410 + $0x10] sm:$0xff] %v1783
    %1812 = vst [vmem:[%s410 + $0x18] sm:$0xff] %v1784
    %1813 = vst [vmem:[%s410 + $0x20] sm:$0xff] %v1785
    %1814 = vst [vmem:[%s410 + $0x28] sm:$0xff] %v1786
    %1815 = vst [vmem:[%s410 + $0x30] sm:$0xff] %v1787
    %1816 = vst [vmem:[%s410 + $0x38] sm:$0xff] %v1788
    %1817 = vst [vmem:[%s410 + $0x40] sm:$0xff] %v1789
    %1818 = vst [vmem:[%s410 + $0x48] sm:$0xff] %v1790
    %1819 = vst [vmem:[%s410 + $0x50] sm:$0xff] %v1791
    %1820 = vst [vmem:[%s410 + $0x58] sm:$0xff] %v1792
    %1821 = vst [vmem:[%s410 + $0x60] sm:$0xff] %v1793
    %1822 = vst [vmem:[%s410 + $0x68] sm:$0xff] %v1794
    %1823 = vst [vmem:[%s410 + $0x70] sm:$0xff] %v1795
    %1824 = vst [vmem:[%s410 + $0x78] sm:$0xff] %v1796
    %1825 = vst [vmem:[%s410 + $0x80] sm:$0xff] %v1797
    %1826 = vst [vmem:[%s410 + $0x88] sm:$0xff] %v1798
    %1827 = vst [vmem:[%s410 + $0x90] sm:$0xff] %v1799
    %1828 = vst [vmem:[%s410 + $0x98] sm:$0xff] %v1800
    %1829 = vst [vmem:[%s410 + $0xa0] sm:$0xff] %v1801
    %1830 = vst [vmem:[%s410 + $0xa8] sm:$0xff] %v1802
    %1831 = vst [vmem:[%s410 + $0xb0] sm:$0xff] %v1803
    %1832 = vst [vmem:[%s410 + $0xb8] sm:$0xff] %v1804
    %1833 = vst [vmem:[%s410 + $0xc0] sm:$0xff] %v1805
    %1834 = vst [vmem:[%s410 + $0xc8] sm:$0xff] %v1806
    %1835 = vst [vmem:[%s410 + $0xd0] sm:$0xff] %v1807
    %1836 = vst [vmem:[%s410 + $0xd8] sm:$0xff] %v1808
    %s1837 = scalar_lea.vmem %s1, 1024
    %v1838 = vld [vmem:[%s1837] sm:$0xff]
    %v1839 = vld [vmem:[%s1837 + $0x8] sm:$0xff]
    %v1840 = vld [vmem:[%s1837 + $0x10] sm:$0xff]
    %v1841 = vld [vmem:[%s1837 + $0x18] sm:$0xff]
    %v1842 = vld [vmem:[%s1837 + $0x20] sm:$0xff]
    %v1843 = vld [vmem:[%s1837 + $0x28] sm:$0xff]
    %v1844 = vld [vmem:[%s1837 + $0x30] sm:$0xff]
    %v1845 = vld [vmem:[%s1837 + $0x38] sm:$0xff]
    %v1846 = vld [vmem:[%s1837 + $0x40] sm:$0xff]
    %v1847 = vld [vmem:[%s1837 + $0x48] sm:$0xff]
    %v1848 = vld [vmem:[%s1837 + $0x50] sm:$0xff]
    %v1849 = vld [vmem:[%s1837 + $0x58] sm:$0xff]
    %v1850 = vld [vmem:[%s1837 + $0x60] sm:$0xff]
    %v1851 = vld [vmem:[%s1837 + $0x68] sm:$0xff]
    %v1852 = vld [vmem:[%s1837 + $0x70] sm:$0xff]
    %v1853 = vld [vmem:[%s1837 + $0x78] sm:$0xff]
    %v1854 = vld [vmem:[%s1837 + $0x80] sm:$0xff]
    %v1855 = vld [vmem:[%s1837 + $0x88] sm:$0xff]
    %v1856 = vld [vmem:[%s1837 + $0x90] sm:$0xff]
    %v1857 = vld [vmem:[%s1837 + $0x98] sm:$0xff]
    %v1858 = vld [vmem:[%s1837 + $0xa0] sm:$0xff]
    %v1859 = vld [vmem:[%s1837 + $0xa8] sm:$0xff]
    %v1860 = vld [vmem:[%s1837 + $0xb0] sm:$0xff]
    %v1861 = vld [vmem:[%s1837 + $0xb8] sm:$0xff]
    %v1862 = vld [vmem:[%s1837 + $0xc0] sm:$0xff]
    %v1863 = vld [vmem:[%s1837 + $0xc8] sm:$0xff]
    %v1864 = vld [vmem:[%s1837 + $0xd0] sm:$0xff]
    %v1865 = vld [vmem:[%s1837 + $0xd8] sm:$0xff]
    %v1866 = vld [vmem:[%s1837 + $0xe0] sm:$0xff]
    %v1867 = vld [vmem:[%s1837 + $0xe8] sm:$0xff]
    %v1868 = vld [vmem:[%s1837 + $0xf0] sm:$0xff]
    %v1869 = vld [vmem:[%s1837 + $0xf8] sm:$0xff]
    %v1870 = vld [vmem:[%s1620] sm:$0xff]
    %v1871 = vld [vmem:[%s1620 + $0x8] sm:$0xff]
    %v1872 = vld [vmem:[%s1620 + $0x10] sm:$0xff]
    %v1873 = vld [vmem:[%s1620 + $0x18] sm:$0xff]
    %v1874 = vld [vmem:[%s1620 + $0x20] sm:$0xff]
    %v1875 = vld [vmem:[%s1620 + $0x28] sm:$0xff]
    %v1876 = vld [vmem:[%s1620 + $0x30] sm:$0xff]
    %v1877 = vld [vmem:[%s1620 + $0x38] sm:$0xff]
    %v1878 = vld [vmem:[%s1620 + $0x40] sm:$0xff]
    %v1879 = vld [vmem:[%s1620 + $0x48] sm:$0xff]
    %v1880 = vld [vmem:[%s1620 + $0x50] sm:$0xff]
    %v1881 = vld [vmem:[%s1620 + $0x58] sm:$0xff]
    %v1882 = vld [vmem:[%s1620 + $0x60] sm:$0xff]
    %v1883 = vld [vmem:[%s1620 + $0x68] sm:$0xff]
    %1884 = vmatpush.msra.mxu0 %v1868
    %1885 = vmatpush.msra.mxu0 %v1866
    %1886 = vmatpush.msra.mxu0 %v1864
    %1887 = vmatpush.msra.mxu0 %v1862
    %1888 = vmatpush.msra.mxu0 %v1860
    %1889 = vmatpush.msra.mxu0 %v1858
    %1890 = vmatpush.msra.mxu0 %v1856
    %1891 = vmatpush.msra.mxu0 %v1854
    %1892 = vmatpush.msra.mxu0 %v1852
    %1893 = vmatpush.msra.mxu0 %v1850
    %1894 = vmatpush.msra.mxu0 %v1848
    %1895 = vmatpush.msra.mxu0 %v1846
    %1896 = vmatpush.msra.mxu0 %v1844
    %1897 = vmatpush.msra.mxu0 %v1842
    %1898 = vmatpush.msra.mxu0 %v1840
    %1899 = vmatpush.msra.mxu0 %v1838
    %1900 = vmatmul.f32.gmra.mxu0 %v1870
    %v1901 = vpop.f32.mrf.mxu0
    %v1902 = vadd.f32 0.0, %v1901
    %1903 = vmatmul.f32.gmra.mxu0 %v1871
    %v1904 = vpop.f32.mrf.mxu0
    %v1905 = vadd.f32 0.0, %v1904
    %1906 = vmatmul.f32.gmra.mxu0 %v1872
    %v1907 = vpop.f32.mrf.mxu0
    %v1908 = vadd.f32 0.0, %v1907
    %1909 = vmatmul.f32.gmra.mxu0 %v1873
    %v1910 = vpop.f32.mrf.mxu0
    %v1911 = vadd.f32 0.0, %v1910
    %1912 = vmatmul.f32.gmra.mxu0 %v1874
    %v1913 = vpop.f32.mrf.mxu0
    %v1914 = vadd.f32 0.0, %v1913
    %1915 = vmatmul.f32.gmra.mxu0 %v1875
    %v1916 = vpop.f32.mrf.mxu0
    %v1917 = vadd.f32 0.0, %v1916
    %1918 = vmatmul.f32.gmra.mxu0 %v1876
    %v1919 = vpop.f32.mrf.mxu0
    %v1920 = vadd.f32 0.0, %v1919
    %1921 = vmatmul.f32.gmra.mxu0 %v1877
    %v1922 = vpop.f32.mrf.mxu0
    %v1923 = vadd.f32 0.0, %v1922
    %1924 = vmatmul.f32.gmra.mxu0 %v1878
    %v1925 = vpop.f32.mrf.mxu0
    %v1926 = vadd.f32 0.0, %v1925
    %1927 = vmatmul.f32.gmra.mxu0 %v1879
    %v1928 = vpop.f32.mrf.mxu0
    %v1929 = vadd.f32 0.0, %v1928
    %1930 = vmatmul.f32.gmra.mxu0 %v1880
    %v1931 = vpop.f32.mrf.mxu0
    %v1932 = vadd.f32 0.0, %v1931
    %1933 = vmatmul.f32.gmra.mxu0 %v1881
    %v1934 = vpop.f32.mrf.mxu0
    %v1935 = vadd.f32 0.0, %v1934
    %1936 = vmatmul.f32.gmra.mxu0 %v1882
    %v1937 = vpop.f32.mrf.mxu0
    %v1938 = vadd.f32 0.0, %v1937
    %1939 = vmatmul.f32.gmra.mxu0 %v1883
    %v1940 = vpop.f32.mrf.mxu0
    %v1941 = vadd.f32 0.0, %v1940
    %1942 = vdwg.mxu0
    %1943 = vmatpush.msra.mxu0 %v1869
    %1944 = vmatpush.msra.mxu0 %v1867
    %1945 = vmatpush.msra.mxu0 %v1865
    %1946 = vmatpush.msra.mxu0 %v1863
    %1947 = vmatpush.msra.mxu0 %v1861
    %1948 = vmatpush.msra.mxu0 %v1859
    %1949 = vmatpush.msra.mxu0 %v1857
    %1950 = vmatpush.msra.mxu0 %v1855
    %1951 = vmatpush.msra.mxu0 %v1853
    %1952 = vmatpush.msra.mxu0 %v1851
    %1953 = vmatpush.msra.mxu0 %v1849
    %1954 = vmatpush.msra.mxu0 %v1847
    %1955 = vmatpush.msra.mxu0 %v1845
    %1956 = vmatpush.msra.mxu0 %v1843
    %1957 = vmatpush.msra.mxu0 %v1841
    %1958 = vmatpush.msra.mxu0 %v1839
    %1959 = vmatmul.f32.gmra.mxu0 %v1870
    %v1960 = vpop.f32.mrf.mxu0
    %v1961 = vadd.f32 0.0, %v1960
    %1962 = vmatmul.f32.gmra.mxu0 %v1871
    %v1963 = vpop.f32.mrf.mxu0
    %v1964 = vadd.f32 0.0, %v1963
    %1965 = vmatmul.f32.gmra.mxu0 %v1872
    %v1966 = vpop.f32.mrf.mxu0
    %v1967 = vadd.f32 0.0, %v1966
    %1968 = vmatmul.f32.gmra.mxu0 %v1873
    %v1969 = vpop.f32.mrf.mxu0
    %v1970 = vadd.f32 0.0, %v1969
    %1971 = vmatmul.f32.gmra.mxu0 %v1874
    %v1972 = vpop.f32.mrf.mxu0
    %v1973 = vadd.f32 0.0, %v1972
    %1974 = vmatmul.f32.gmra.mxu0 %v1875
    %v1975 = vpop.f32.mrf.mxu0
    %v1976 = vadd.f32 0.0, %v1975
    %1977 = vmatmul.f32.gmra.mxu0 %v1876
    %v1978 = vpop.f32.mrf.mxu0
    %v1979 = vadd.f32 0.0, %v1978
    %1980 = vmatmul.f32.gmra.mxu0 %v1877
    %v1981 = vpop.f32.mrf.mxu0
    %v1982 = vadd.f32 0.0, %v1981
    %1983 = vmatmul.f32.gmra.mxu0 %v1878
    %v1984 = vpop.f32.mrf.mxu0
    %v1985 = vadd.f32 0.0, %v1984
    %1986 = vmatmul.f32.gmra.mxu0 %v1879
    %v1987 = vpop.f32.mrf.mxu0
    %v1988 = vadd.f32 0.0, %v1987
    %1989 = vmatmul.f32.gmra.mxu0 %v1880
    %v1990 = vpop.f32.mrf.mxu0
    %v1991 = vadd.f32 0.0, %v1990
    %1992 = vmatmul.f32.gmra.mxu0 %v1881
    %v1993 = vpop.f32.mrf.mxu0
    %v1994 = vadd.f32 0.0, %v1993
    %1995 = vmatmul.f32.gmra.mxu0 %v1882
    %v1996 = vpop.f32.mrf.mxu0
    %v1997 = vadd.f32 0.0, %v1996
    %1998 = vmatmul.f32.gmra.mxu0 %v1883
    %v1999 = vpop.f32.mrf.mxu0
    %v2000 = vadd.f32 0.0, %v1999
    %2001 = vdwg.mxu0
    %v2002 = vld [vmem:[#allocation2] sm:$0xff]
    %v2003 = vld [vmem:[#allocation2 + $0x8] sm:$0xff]
    %v2004 = vld [vmem:[#allocation2 + $0x10] sm:$0xff]
    %v2005 = vld [vmem:[#allocation2 + $0x18] sm:$0xff]
    %v2006 = vld [vmem:[#allocation2 + $0x20] sm:$0xff]
    %v2007 = vld [vmem:[#allocation2 + $0x28] sm:$0xff]
    %v2008 = vld [vmem:[#allocation2 + $0x30] sm:$0xff]
    %v2009 = vld [vmem:[#allocation2 + $0x38] sm:$0xff]
    %v2010 = vld [vmem:[#allocation2 + $0x40] sm:$0xff]
    %v2011 = vld [vmem:[#allocation2 + $0x48] sm:$0xff]
    %v2012 = vld [vmem:[#allocation2 + $0x50] sm:$0xff]
    %v2013 = vld [vmem:[#allocation2 + $0x58] sm:$0xff]
    %v2014 = vld [vmem:[#allocation2 + $0x60] sm:$0xff]
    %v2015 = vld [vmem:[#allocation2 + $0x68] sm:$0xff]
    %v2016 = vld [vmem:[#allocation2 + $0x70] sm:$0xff]
    %v2017 = vld [vmem:[#allocation2 + $0x78] sm:$0xff]
    %v2018 = vld [vmem:[#allocation2 + $0x80] sm:$0xff]
    %v2019 = vld [vmem:[#allocation2 + $0x88] sm:$0xff]
    %v2020 = vld [vmem:[#allocation2 + $0x90] sm:$0xff]
    %v2021 = vld [vmem:[#allocation2 + $0x98] sm:$0xff]
    %v2022 = vld [vmem:[#allocation2 + $0xa0] sm:$0xff]
    %v2023 = vld [vmem:[#allocation2 + $0xa8] sm:$0xff]
    %v2024 = vld [vmem:[#allocation2 + $0xb0] sm:$0xff]
    %v2025 = vld [vmem:[#allocation2 + $0xb8] sm:$0xff]
    %v2026 = vld [vmem:[#allocation2 + $0xc0] sm:$0xff]
    %v2027 = vld [vmem:[#allocation2 + $0xc8] sm:$0xff]
    %v2028 = vld [vmem:[#allocation2 + $0xd0] sm:$0xff]
    %v2029 = vld [vmem:[#allocation2 + $0xd8] sm:$0xff]
    %v2030 = vadd.f32 %v2002, %v1902
    %v2031 = vadd.f32 %v2003, %v1961
    %v2032 = vadd.f32 %v2004, %v1905
    %v2033 = vadd.f32 %v2005, %v1964
    %v2034 = vadd.f32 %v2006, %v1908
    %v2035 = vadd.f32 %v2007, %v1967
    %v2036 = vadd.f32 %v2008, %v1911
    %v2037 = vadd.f32 %v2009, %v1970
    %v2038 = vadd.f32 %v2010, %v1914
    %v2039 = vadd.f32 %v2011, %v1973
    %v2040 = vadd.f32 %v2012, %v1917
    %v2041 = vadd.f32 %v2013, %v1976
    %v2042 = vadd.f32 %v2014, %v1920
    %v2043 = vadd.f32 %v2015, %v1979
    %v2044 = vadd.f32 %v2016, %v1923
    %v2045 = vadd.f32 %v2017, %v1982
    %v2046 = vadd.f32 %v2018, %v1926
    %v2047 = vadd.f32 %v2019, %v1985
    %v2048 = vadd.f32 %v2020, %v1929
    %v2049 = vadd.f32 %v2021, %v1988
    %v2050 = vadd.f32 %v2022, %v1932
    %v2051 = vadd.f32 %v2023, %v1991
    %v2052 = vadd.f32 %v2024, %v1935
    %v2053 = vadd.f32 %v2025, %v1994
    %v2054 = vadd.f32 %v2026, %v1938
    %v2055 = vadd.f32 %v2027, %v1997
    %v2056 = vadd.f32 %v2028, %v1941
    %v2057 = vadd.f32 %v2029, %v2000
    %2058 = vst [vmem:[#allocation2] sm:$0xff] %v2030
    %2059 = vst [vmem:[#allocation2 + $0x8] sm:$0xff] %v2031
    %2060 = vst [vmem:[#allocation2 + $0x10] sm:$0xff] %v2032
    %2061 = vst [vmem:[#allocation2 + $0x18] sm:$0xff] %v2033
    %2062 = vst [vmem:[#allocation2 + $0x20] sm:$0xff] %v2034
    %2063 = vst [vmem:[#allocation2 + $0x28] sm:$0xff] %v2035
    %2064 = vst [vmem:[#allocation2 + $0x30] sm:$0xff] %v2036
    %2065 = vst [vmem:[#allocation2 + $0x38] sm:$0xff] %v2037
    %2066 = vst [vmem:[#allocation2 + $0x40] sm:$0xff] %v2038
    %2067 = vst [vmem:[#allocation2 + $0x48] sm:$0xff] %v2039
    %2068 = vst [vmem:[#allocation2 + $0x50] sm:$0xff] %v2040
    %2069 = vst [vmem:[#allocation2 + $0x58] sm:$0xff] %v2041
    %2070 = vst [vmem:[#allocation2 + $0x60] sm:$0xff] %v2042
    %2071 = vst [vmem:[#allocation2 + $0x68] sm:$0xff] %v2043
    %2072 = vst [vmem:[#allocation2 + $0x70] sm:$0xff] %v2044
    %2073 = vst [vmem:[#allocation2 + $0x78] sm:$0xff] %v2045
    %2074 = vst [vmem:[#allocation2 + $0x80] sm:$0xff] %v2046
    %2075 = vst [vmem:[#allocation2 + $0x88] sm:$0xff] %v2047
    %2076 = vst [vmem:[#allocation2 + $0x90] sm:$0xff] %v2048
    %2077 = vst [vmem:[#allocation2 + $0x98] sm:$0xff] %v2049
    %2078 = vst [vmem:[#allocation2 + $0xa0] sm:$0xff] %v2050
    %2079 = vst [vmem:[#allocation2 + $0xa8] sm:$0xff] %v2051
    %2080 = vst [vmem:[#allocation2 + $0xb0] sm:$0xff] %v2052
    %2081 = vst [vmem:[#allocation2 + $0xb8] sm:$0xff] %v2053
    %2082 = vst [vmem:[#allocation2 + $0xc0] sm:$0xff] %v2054
    %2083 = vst [vmem:[#allocation2 + $0xc8] sm:$0xff] %v2055
    %2084 = vst [vmem:[#allocation2 + $0xd0] sm:$0xff] %v2056
    %2085 = vst [vmem:[#allocation2 + $0xd8] sm:$0xff] %v2057
    %s2086 = scalar_lea.vmem %s277, 16
    %v2087 = vld [vmem:[%s2086] sm:$0xff]
    %v2088 = vld [vmem:[%s2086 + $0x8] sm:$0xff]
    %v2089 = vld [vmem:[%s2086 + $0x10] sm:$0xff]
    %v2090 = vld [vmem:[%s2086 + $0x18] sm:$0xff]
    %v2091 = vld [vmem:[%s2086 + $0x20] sm:$0xff]
    %v2092 = vld [vmem:[%s2086 + $0x28] sm:$0xff]
    %v2093 = vld [vmem:[%s2086 + $0x30] sm:$0xff]
    %v2094 = vld [vmem:[%s2086 + $0x38] sm:$0xff]
    %v2095 = vld [vmem:[%s2086 + $0x40] sm:$0xff]
    %v2096 = vld [vmem:[%s2086 + $0x48] sm:$0xff]
    %v2097 = vld [vmem:[%s2086 + $0x50] sm:$0xff]
    %v2098 = vld [vmem:[%s2086 + $0x58] sm:$0xff]
    %v2099 = vld [vmem:[%s2086 + $0x60] sm:$0xff]
    %v2100 = vld [vmem:[%s2086 + $0x68] sm:$0xff]
    %2101 = vmatpush.msra.mxu0 %v1868
    %2102 = vmatpush.msra.mxu0 %v1866
    %2103 = vmatpush.msra.mxu0 %v1864
    %2104 = vmatpush.msra.mxu0 %v1862
    %2105 = vmatpush.msra.mxu0 %v1860
    %2106 = vmatpush.msra.mxu0 %v1858
    %2107 = vmatpush.msra.mxu0 %v1856
    %2108 = vmatpush.msra.mxu0 %v1854
    %2109 = vmatpush.msra.mxu0 %v1852
    %2110 = vmatpush.msra.mxu0 %v1850
    %2111 = vmatpush.msra.mxu0 %v1848
    %2112 = vmatpush.msra.mxu0 %v1846
    %2113 = vmatpush.msra.mxu0 %v1844
    %2114 = vmatpush.msra.mxu0 %v1842
    %2115 = vmatpush.msra.mxu0 %v1840
    %2116 = vmatpush.msra.mxu0 %v1838
    %2117 = vmatmul.f32.gmra.mxu0 %v2087
    %v2118 = vpop.f32.mrf.mxu0
    %v2119 = vadd.f32 0.0, %v2118
    %2120 = vmatmul.f32.gmra.mxu0 %v2088
    %v2121 = vpop.f32.mrf.mxu0
    %v2122 = vadd.f32 0.0, %v2121
    %2123 = vmatmul.f32.gmra.mxu0 %v2089
    %v2124 = vpop.f32.mrf.mxu0
    %v2125 = vadd.f32 0.0, %v2124
    %2126 = vmatmul.f32.gmra.mxu0 %v2090
    %v2127 = vpop.f32.mrf.mxu0
    %v2128 = vadd.f32 0.0, %v2127
    %2129 = vmatmul.f32.gmra.mxu0 %v2091
    %v2130 = vpop.f32.mrf.mxu0
    %v2131 = vadd.f32 0.0, %v2130
    %2132 = vmatmul.f32.gmra.mxu0 %v2092
    %v2133 = vpop.f32.mrf.mxu0
    %v2134 = vadd.f32 0.0, %v2133
    %2135 = vmatmul.f32.gmra.mxu0 %v2093
    %v2136 = vpop.f32.mrf.mxu0
    %v2137 = vadd.f32 0.0, %v2136
    %2138 = vmatmul.f32.gmra.mxu0 %v2094
    %v2139 = vpop.f32.mrf.mxu0
    %v2140 = vadd.f32 0.0, %v2139
    %2141 = vmatmul.f32.gmra.mxu0 %v2095
    %v2142 = vpop.f32.mrf.mxu0
    %v2143 = vadd.f32 0.0, %v2142
    %2144 = vmatmul.f32.gmra.mxu0 %v2096
    %v2145 = vpop.f32.mrf.mxu0
    %v2146 = vadd.f32 0.0, %v2145
    %2147 = vmatmul.f32.gmra.mxu0 %v2097
    %v2148 = vpop.f32.mrf.mxu0
    %v2149 = vadd.f32 0.0, %v2148
    %2150 = vmatmul.f32.gmra.mxu0 %v2098
    %v2151 = vpop.f32.mrf.mxu0
    %v2152 = vadd.f32 0.0, %v2151
    %2153 = vmatmul.f32.gmra.mxu0 %v2099
    %v2154 = vpop.f32.mrf.mxu0
    %v2155 = vadd.f32 0.0, %v2154
    %2156 = vmatmul.f32.gmra.mxu0 %v2100
    %v2157 = vpop.f32.mrf.mxu0
    %v2158 = vadd.f32 0.0, %v2157
    %2159 = vdwg.mxu0
    %2160 = vmatpush.msra.mxu0 %v1869
    %2161 = vmatpush.msra.mxu0 %v1867
    %2162 = vmatpush.msra.mxu0 %v1865
    %2163 = vmatpush.msra.mxu0 %v1863
    %2164 = vmatpush.msra.mxu0 %v1861
    %2165 = vmatpush.msra.mxu0 %v1859
    %2166 = vmatpush.msra.mxu0 %v1857
    %2167 = vmatpush.msra.mxu0 %v1855
    %2168 = vmatpush.msra.mxu0 %v1853
    %2169 = vmatpush.msra.mxu0 %v1851
    %2170 = vmatpush.msra.mxu0 %v1849
    %2171 = vmatpush.msra.mxu0 %v1847
    %2172 = vmatpush.msra.mxu0 %v1845
    %2173 = vmatpush.msra.mxu0 %v1843
    %2174 = vmatpush.msra.mxu0 %v1841
    %2175 = vmatpush.msra.mxu0 %v1839
    %2176 = vmatmul.f32.gmra.mxu0 %v2087
    %v2177 = vpop.f32.mrf.mxu0
    %v2178 = vadd.f32 0.0, %v2177
    %2179 = vmatmul.f32.gmra.mxu0 %v2088
    %v2180 = vpop.f32.mrf.mxu0
    %v2181 = vadd.f32 0.0, %v2180
    %2182 = vmatmul.f32.gmra.mxu0 %v2089
    %v2183 = vpop.f32.mrf.mxu0
    %v2184 = vadd.f32 0.0, %v2183
    %2185 = vmatmul.f32.gmra.mxu0 %v2090
    %v2186 = vpop.f32.mrf.mxu0
    %v2187 = vadd.f32 0.0, %v2186
    %2188 = vmatmul.f32.gmra.mxu0 %v2091
    %v2189 = vpop.f32.mrf.mxu0
    %v2190 = vadd.f32 0.0, %v2189
    %2191 = vmatmul.f32.gmra.mxu0 %v2092
    %v2192 = vpop.f32.mrf.mxu0
    %v2193 = vadd.f32 0.0, %v2192
    %2194 = vmatmul.f32.gmra.mxu0 %v2093
    %v2195 = vpop.f32.mrf.mxu0
    %v2196 = vadd.f32 0.0, %v2195
    %2197 = vmatmul.f32.gmra.mxu0 %v2094
    %v2198 = vpop.f32.mrf.mxu0
    %v2199 = vadd.f32 0.0, %v2198
    %2200 = vmatmul.f32.gmra.mxu0 %v2095
    %v2201 = vpop.f32.mrf.mxu0
    %v2202 = vadd.f32 0.0, %v2201
    %2203 = vmatmul.f32.gmra.mxu0 %v2096
    %v2204 = vpop.f32.mrf.mxu0
    %v2205 = vadd.f32 0.0, %v2204
    %2206 = vmatmul.f32.gmra.mxu0 %v2097
    %v2207 = vpop.f32.mrf.mxu0
    %v2208 = vadd.f32 0.0, %v2207
    %2209 = vmatmul.f32.gmra.mxu0 %v2098
    %v2210 = vpop.f32.mrf.mxu0
    %v2211 = vadd.f32 0.0, %v2210
    %2212 = vmatmul.f32.gmra.mxu0 %v2099
    %v2213 = vpop.f32.mrf.mxu0
    %v2214 = vadd.f32 0.0, %v2213
    %2215 = vmatmul.f32.gmra.mxu0 %v2100
    %v2216 = vpop.f32.mrf.mxu0
    %v2217 = vadd.f32 0.0, %v2216
    %2218 = vdwg.mxu0
    %v2219 = vld [vmem:[%s410] sm:$0xff]
    %v2220 = vld [vmem:[%s410 + $0x8] sm:$0xff]
    %v2221 = vld [vmem:[%s410 + $0x10] sm:$0xff]
    %v2222 = vld [vmem:[%s410 + $0x18] sm:$0xff]
    %v2223 = vld [vmem:[%s410 + $0x20] sm:$0xff]
    %v2224 = vld [vmem:[%s410 + $0x28] sm:$0xff]
    %v2225 = vld [vmem:[%s410 + $0x30] sm:$0xff]
    %v2226 = vld [vmem:[%s410 + $0x38] sm:$0xff]
    %v2227 = vld [vmem:[%s410 + $0x40] sm:$0xff]
    %v2228 = vld [vmem:[%s410 + $0x48] sm:$0xff]
    %v2229 = vld [vmem:[%s410 + $0x50] sm:$0xff]
    %v2230 = vld [vmem:[%s410 + $0x58] sm:$0xff]
    %v2231 = vld [vmem:[%s410 + $0x60] sm:$0xff]
    %v2232 = vld [vmem:[%s410 + $0x68] sm:$0xff]
    %v2233 = vld [vmem:[%s410 + $0x70] sm:$0xff]
    %v2234 = vld [vmem:[%s410 + $0x78] sm:$0xff]
    %v2235 = vld [vmem:[%s410 + $0x80] sm:$0xff]
    %v2236 = vld [vmem:[%s410 + $0x88] sm:$0xff]
    %v2237 = vld [vmem:[%s410 + $0x90] sm:$0xff]
    %v2238 = vld [vmem:[%s410 + $0x98] sm:$0xff]
    %v2239 = vld [vmem:[%s410 + $0xa0] sm:$0xff]
    %v2240 = vld [vmem:[%s410 + $0xa8] sm:$0xff]
    %v2241 = vld [vmem:[%s410 + $0xb0] sm:$0xff]
    %v2242 = vld [vmem:[%s410 + $0xb8] sm:$0xff]
    %v2243 = vld [vmem:[%s410 + $0xc0] sm:$0xff]
    %v2244 = vld [vmem:[%s410 + $0xc8] sm:$0xff]
    %v2245 = vld [vmem:[%s410 + $0xd0] sm:$0xff]
    %v2246 = vld [vmem:[%s410 + $0xd8] sm:$0xff]
    %v2247 = vadd.f32 %v2219, %v2119
    %v2248 = vadd.f32 %v2220, %v2178
    %v2249 = vadd.f32 %v2221, %v2122
    %v2250 = vadd.f32 %v2222, %v2181
    %v2251 = vadd.f32 %v2223, %v2125
    %v2252 = vadd.f32 %v2224, %v2184
    %v2253 = vadd.f32 %v2225, %v2128
    %v2254 = vadd.f32 %v2226, %v2187
    %v2255 = vadd.f32 %v2227, %v2131
    %v2256 = vadd.f32 %v2228, %v2190
    %v2257 = vadd.f32 %v2229, %v2134
    %v2258 = vadd.f32 %v2230, %v2193
    %v2259 = vadd.f32 %v2231, %v2137
    %v2260 = vadd.f32 %v2232, %v2196
    %v2261 = vadd.f32 %v2233, %v2140
    %v2262 = vadd.f32 %v2234, %v2199
    %v2263 = vadd.f32 %v2235, %v2143
    %v2264 = vadd.f32 %v2236, %v2202
    %v2265 = vadd.f32 %v2237, %v2146
    %v2266 = vadd.f32 %v2238, %v2205
    %v2267 = vadd.f32 %v2239, %v2149
    %v2268 = vadd.f32 %v2240, %v2208
    %v2269 = vadd.f32 %v2241, %v2152
    %v2270 = vadd.f32 %v2242, %v2211
    %v2271 = vadd.f32 %v2243, %v2155
    %v2272 = vadd.f32 %v2244, %v2214
    %v2273 = vadd.f32 %v2245, %v2158
    %v2274 = vadd.f32 %v2246, %v2217
    %2275 = vst [vmem:[%s410] sm:$0xff] %v2247
    %2276 = vst [vmem:[%s410 + $0x8] sm:$0xff] %v2248
    %2277 = vst [vmem:[%s410 + $0x10] sm:$0xff] %v2249
    %2278 = vst [vmem:[%s410 + $0x18] sm:$0xff] %v2250
    %2279 = vst [vmem:[%s410 + $0x20] sm:$0xff] %v2251
    %2280 = vst [vmem:[%s410 + $0x28] sm:$0xff] %v2252
    %2281 = vst [vmem:[%s410 + $0x30] sm:$0xff] %v2253
    %2282 = vst [vmem:[%s410 + $0x38] sm:$0xff] %v2254
    %2283 = vst [vmem:[%s410 + $0x40] sm:$0xff] %v2255
    %2284 = vst [vmem:[%s410 + $0x48] sm:$0xff] %v2256
    %2285 = vst [vmem:[%s410 + $0x50] sm:$0xff] %v2257
    %2286 = vst [vmem:[%s410 + $0x58] sm:$0xff] %v2258
    %2287 = vst [vmem:[%s410 + $0x60] sm:$0xff] %v2259
    %2288 = vst [vmem:[%s410 + $0x68] sm:$0xff] %v2260
    %2289 = vst [vmem:[%s410 + $0x70] sm:$0xff] %v2261
    %2290 = vst [vmem:[%s410 + $0x78] sm:$0xff] %v2262
    %2291 = vst [vmem:[%s410 + $0x80] sm:$0xff] %v2263
    %2292 = vst [vmem:[%s410 + $0x88] sm:$0xff] %v2264
    %2293 = vst [vmem:[%s410 + $0x90] sm:$0xff] %v2265
    %2294 = vst [vmem:[%s410 + $0x98] sm:$0xff] %v2266
    %2295 = vst [vmem:[%s410 + $0xa0] sm:$0xff] %v2267
    %2296 = vst [vmem:[%s410 + $0xa8] sm:$0xff] %v2268
    %2297 = vst [vmem:[%s410 + $0xb0] sm:$0xff] %v2269
    %2298 = vst [vmem:[%s410 + $0xb8] sm:$0xff] %v2270
    %2299 = vst [vmem:[%s410 + $0xc0] sm:$0xff] %v2271
    %2300 = vst [vmem:[%s410 + $0xc8] sm:$0xff] %v2272
    %2301 = vst [vmem:[%s410 + $0xd0] sm:$0xff] %v2273
    %2302 = vst [vmem:[%s410 + $0xd8] sm:$0xff] %v2274
    %v2303 = vld [vmem:[#allocation2] sm:$0xff]
    %v2304 = vld [vmem:[#allocation2 + $0x8] sm:$0xff]
    %v2305 = vld [vmem:[#allocation2 + $0x10] sm:$0xff]
    %v2306 = vld [vmem:[#allocation2 + $0x18] sm:$0xff]
    %v2307 = vld [vmem:[#allocation2 + $0x20] sm:$0xff]
    %v2308 = vld [vmem:[#allocation2 + $0x28] sm:$0xff]
    %v2309 = vld [vmem:[#allocation2 + $0x30] sm:$0xff]
    %v2310 = vld [vmem:[#allocation2 + $0x38] sm:$0xff]
    %v2311 = vld [vmem:[#allocation2 + $0x40] sm:$0xff]
    %v2312 = vld [vmem:[#allocation2 + $0x48] sm:$0xff]
    %v2313 = vld [vmem:[#allocation2 + $0x50] sm:$0xff]
    %v2314 = vld [vmem:[#allocation2 + $0x58] sm:$0xff]
    %v2315 = vld [vmem:[#allocation2 + $0x60] sm:$0xff]
    %v2316 = vld [vmem:[#allocation2 + $0x68] sm:$0xff]
    %v2317 = vld [vmem:[#allocation2 + $0x70] sm:$0xff]
    %v2318 = vld [vmem:[#allocation2 + $0x78] sm:$0xff]
    %v2319 = vld [vmem:[#allocation2 + $0x80] sm:$0xff]
    %v2320 = vld [vmem:[#allocation2 + $0x88] sm:$0xff]
    %v2321 = vld [vmem:[#allocation2 + $0x90] sm:$0xff]
    %v2322 = vld [vmem:[#allocation2 + $0x98] sm:$0xff]
    %v2323 = vld [vmem:[#allocation2 + $0xa0] sm:$0xff]
    %v2324 = vld [vmem:[#allocation2 + $0xa8] sm:$0xff]
    %v2325 = vld [vmem:[#allocation2 + $0xb0] sm:$0xff]
    %v2326 = vld [vmem:[#allocation2 + $0xb8] sm:$0xff]
    %v2327 = vld [vmem:[#allocation2 + $0xc0] sm:$0xff]
    %v2328 = vld [vmem:[#allocation2 + $0xc8] sm:$0xff]
    %v2329 = vld [vmem:[#allocation2 + $0xd0] sm:$0xff]
    %v2330 = vld [vmem:[#allocation2 + $0xd8] sm:$0xff]
    %v2331 = vld [vmem:[%s410] sm:$0xff]
    %v2332 = vld [vmem:[%s410 + $0x8] sm:$0xff]
    %v2333 = vld [vmem:[%s410 + $0x10] sm:$0xff]
    %v2334 = vld [vmem:[%s410 + $0x18] sm:$0xff]
    %v2335 = vld [vmem:[%s410 + $0x20] sm:$0xff]
    %v2336 = vld [vmem:[%s410 + $0x28] sm:$0xff]
    %v2337 = vld [vmem:[%s410 + $0x30] sm:$0xff]
    %v2338 = vld [vmem:[%s410 + $0x38] sm:$0xff]
    %v2339 = vld [vmem:[%s410 + $0x40] sm:$0xff]
    %v2340 = vld [vmem:[%s410 + $0x48] sm:$0xff]
    %v2341 = vld [vmem:[%s410 + $0x50] sm:$0xff]
    %v2342 = vld [vmem:[%s410 + $0x58] sm:$0xff]
    %v2343 = vld [vmem:[%s410 + $0x60] sm:$0xff]
    %v2344 = vld [vmem:[%s410 + $0x68] sm:$0xff]
    %v2345 = vld [vmem:[%s410 + $0x70] sm:$0xff]
    %v2346 = vld [vmem:[%s410 + $0x78] sm:$0xff]
    %v2347 = vld [vmem:[%s410 + $0x80] sm:$0xff]
    %v2348 = vld [vmem:[%s410 + $0x88] sm:$0xff]
    %v2349 = vld [vmem:[%s410 + $0x90] sm:$0xff]
    %v2350 = vld [vmem:[%s410 + $0x98] sm:$0xff]
    %v2351 = vld [vmem:[%s410 + $0xa0] sm:$0xff]
    %v2352 = vld [vmem:[%s410 + $0xa8] sm:$0xff]
    %v2353 = vld [vmem:[%s410 + $0xb0] sm:$0xff]
    %v2354 = vld [vmem:[%s410 + $0xb8] sm:$0xff]
    %v2355 = vld [vmem:[%s410 + $0xc0] sm:$0xff]
    %v2356 = vld [vmem:[%s410 + $0xc8] sm:$0xff]
    %v2357 = vld [vmem:[%s410 + $0xd0] sm:$0xff]
    %v2358 = vld [vmem:[%s410 + $0xd8] sm:$0xff]
    %v2359 = vmax.f32 %v2303, %v2331
    %v2360 = vmax.f32 %v2304, %v2332
    %v2361 = vmax.f32 %v2305, %v2333
    %v2362 = vmax.f32 %v2306, %v2334
    %v2363 = vmax.f32 %v2307, %v2335
    %v2364 = vmax.f32 %v2308, %v2336
    %v2365 = vmax.f32 %v2309, %v2337
    %v2366 = vmax.f32 %v2310, %v2338
    %v2367 = vmax.f32 %v2311, %v2339
    %v2368 = vmax.f32 %v2312, %v2340
    %v2369 = vmax.f32 %v2313, %v2341
    %v2370 = vmax.f32 %v2314, %v2342
    %v2371 = vmax.f32 %v2315, %v2343
    %v2372 = vmax.f32 %v2316, %v2344
    %v2373 = vmax.f32 %v2317, %v2345
    %v2374 = vmax.f32 %v2318, %v2346
    %v2375 = vmax.f32 %v2319, %v2347
    %v2376 = vmax.f32 %v2320, %v2348
    %v2377 = vmax.f32 %v2321, %v2349
    %v2378 = vmax.f32 %v2322, %v2350
    %v2379 = vmax.f32 %v2323, %v2351
    %v2380 = vmax.f32 %v2324, %v2352
    %v2381 = vmax.f32 %v2325, %v2353
    %v2382 = vmax.f32 %v2326, %v2354
    %v2383 = vmax.f32 %v2327, %v2355
    %v2384 = vmax.f32 %v2328, %v2356
    %v2385 = vmax.f32 %v2329, %v2357
    %v2386 = vmax.f32 %v2330, %v2358
    %v2387 = vmax.f32 %v2359, %v2360
    %v2388 = vmax.f32 %v2361, %v2362
    %v2389 = vmax.f32 %v2363, %v2364
    %v2390 = vmax.f32 %v2365, %v2366
    %v2391 = vmax.f32 %v2367, %v2368
    %v2392 = vmax.f32 %v2369, %v2370
    %v2393 = vmax.f32 %v2371, %v2372
    %v2394 = vmax.f32 %v2373, %v2374
    %v2395 = vmax.f32 %v2375, %v2376
    %v2396 = vmax.f32 %v2377, %v2378
    %v2397 = vmax.f32 %v2379, %v2380
    %v2398 = vmax.f32 %v2381, %v2382
    %v2399 = vmax.f32 %v2383, %v2384
    %v2400 = vmax.f32 %v2385, %v2386
    %v2401 = vld [vmem:[%s2] sm:$0x1]
    %v2403 = vperm.slane %v2401, 0
    %v2405 = vadd.f32 %v2387, %v2403
    %v2406 = vadd.f32 %v2388, %v2403
    %v2407 = vadd.f32 %v2389, %v2403
    %v2408 = vadd.f32 %v2390, %v2403
    %v2409 = vadd.f32 %v2391, %v2403
    %v2410 = vadd.f32 %v2392, %v2403
    %v2411 = vadd.f32 %v2393, %v2403
    %v2412 = vadd.f32 %v2394, %v2403
    %v2413 = vadd.f32 %v2395, %v2403
    %v2414 = vadd.f32 %v2396, %v2403
    %v2415 = vadd.f32 %v2397, %v2403
    %v2416 = vadd.f32 %v2398, %v2403
    %v2417 = vadd.f32 %v2399, %v2403
    %v2418 = vadd.f32 %v2400, %v2403
    %v2419 = vmax.f32 %v2405, 0.0
    %v2420 = vmax.f32 %v2406, 0.0
    %v2421 = vmax.f32 %v2407, 0.0
    %v2422 = vmax.f32 %v2408, 0.0
    %v2423 = vmax.f32 %v2409, 0.0
    %v2424 = vmax.f32 %v2410, 0.0
    %v2425 = vmax.f32 %v2411, 0.0
    %v2426 = vmax.f32 %v2412, 0.0
    %v2427 = vmax.f32 %v2413, 0.0
    %v2428 = vmax.f32 %v2414, 0.0
    %v2429 = vmax.f32 %v2415, 0.0
    %v2430 = vmax.f32 %v2416, 0.0
    %v2431 = vmax.f32 %v2417, 0.0
    %v2432 = vmax.f32 %v2418, 0.0
    %2433 = vst [vmem:[#allocation4] sm:$0xff] %v2419
    %2434 = vst [vmem:[#allocation4 + $0x8] sm:$0xff] %v2421
    %2435 = vst [vmem:[#allocation4 + $0x10] sm:$0xff] %v2423
    %2436 = vst [vmem:[#allocation4 + $0x18] sm:$0xff] %v2425
    %2437 = vst [vmem:[#allocation4 + $0x20] sm:$0xff] %v2427
    %2438 = vst [vmem:[#allocation4 + $0x28] sm:$0xff] %v2429
    %2439 = vst [vmem:[#allocation4 + $0x30] sm:$0xff] %v2431
    %s2440 = scalar_lea.vmem [#allocation4], 56
    %2441 = vst [vmem:[%s2440] sm:$0xff] %v2420
    %2442 = vst [vmem:[%s2440 + $0x8] sm:$0xff] %v2422
    %2443 = vst [vmem:[%s2440 + $0x10] sm:$0xff] %v2424
    %2444 = vst [vmem:[%s2440 + $0x18] sm:$0xff] %v2426
    %2445 = vst [vmem:[%s2440 + $0x20] sm:$0xff] %v2428
    %2446 = vst [vmem:[%s2440 + $0x28] sm:$0xff] %v2430
    %2447 = vst [vmem:[%s2440 + $0x30] sm:$0xff] %v2432
    %v2448 = vld [vmem:[#allocation5] sm:$0xff]
    %v2449 = vld [vmem:[#allocation5 + $0x8] sm:$0xff]
    %v2450 = vld [vmem:[#allocation5 + $0x10] sm:$0xff]
    %v2451 = vld [vmem:[#allocation5 + $0x18] sm:$0xff]
    %v2452 = vld [vmem:[#allocation5 + $0x20] sm:$0xff]
    %v2453 = vld [vmem:[#allocation5 + $0x28] sm:$0xff]
    %v2454 = vld [vmem:[#allocation5 + $0x30] sm:$0xff]
    %v2455 = vld [vmem:[#allocation5 + $0x38] sm:$0xff]
    %v2456 = vld [vmem:[#allocation5 + $0x40] sm:$0xff]
    %v2457 = vld [vmem:[#allocation5 + $0x48] sm:$0xff]
    %v2458 = vld [vmem:[#allocation5 + $0x50] sm:$0xff]
    %v2459 = vld [vmem:[#allocation5 + $0x58] sm:$0xff]
    %v2460 = vld [vmem:[#allocation5 + $0x60] sm:$0xff]
    %v2461 = vld [vmem:[#allocation5 + $0x68] sm:$0xff]
    %v2462 = vld [vmem:[#allocation5 + $0x70] sm:$0xff]
    %v2463 = vld [vmem:[#allocation5 + $0x78] sm:$0xff]
    %v2464 = vld [vmem:[#allocation5 + $0x80] sm:$0xff]
    %v2465 = vld [vmem:[#allocation5 + $0x88] sm:$0xff]
    %v2466 = vld [vmem:[#allocation5 + $0x90] sm:$0xff]
    %v2467 = vld [vmem:[#allocation5 + $0x98] sm:$0xff]
    %v2468 = vld [vmem:[#allocation5 + $0xa0] sm:$0xff]
    %v2469 = vld [vmem:[#allocation5 + $0xa8] sm:$0xff]
    %v2470 = vld [vmem:[#allocation5 + $0xb0] sm:$0xff]
    %v2471 = vld [vmem:[#allocation5 + $0xb8] sm:$0xff]
    %v2472 = vld [vmem:[#allocation5 + $0xc0] sm:$0xff]
    %v2473 = vld [vmem:[#allocation5 + $0xc8] sm:$0xff]
    %v2474 = vld [vmem:[#allocation5 + $0xd0] sm:$0xff]
    %v2475 = vld [vmem:[#allocation5 + $0xd8] sm:$0xff]
    %v2476 = vld [vmem:[#allocation5 + $0xe0] sm:$0xff]
    %v2477 = vld [vmem:[#allocation5 + $0xe8] sm:$0xff]
    %v2478 = vld [vmem:[#allocation5 + $0xf0] sm:$0xff]
    %v2479 = vld [vmem:[#allocation5 + $0xf8] sm:$0xff]
    %v2480 = vld [vmem:[#allocation4] sm:$0xff]
    %v2481 = vld [vmem:[#allocation4 + $0x8] sm:$0xff]
    %v2482 = vld [vmem:[#allocation4 + $0x10] sm:$0xff]
    %v2483 = vld [vmem:[#allocation4 + $0x18] sm:$0xff]
    %v2484 = vld [vmem:[#allocation4 + $0x20] sm:$0xff]
    %2485 = vmatpush.msra.mxu0 %v2478
    %2486 = vmatpush.msra.mxu0 %v2476
    %2487 = vmatpush.msra.mxu0 %v2474
    %2488 = vmatpush.msra.mxu0 %v2472
    %2489 = vmatpush.msra.mxu0 %v2470
    %2490 = vmatpush.msra.mxu0 %v2468
    %2491 = vmatpush.msra.mxu0 %v2466
    %2492 = vmatpush.msra.mxu0 %v2464
    %2493 = vmatpush.msra.mxu0 %v2462
    %2494 = vmatpush.msra.mxu0 %v2460
    %2495 = vmatpush.msra.mxu0 %v2458
    %2496 = vmatpush.msra.mxu0 %v2456
    %2497 = vmatpush.msra.mxu0 %v2454
    %2498 = vmatpush.msra.mxu0 %v2452
    %2499 = vmatpush.msra.mxu0 %v2450
    %2500 = vmatpush.msra.mxu0 %v2448
    %2501 = vmatmul.f32.gmra.mxu0 %v2480
    %v2502 = vpop.f32.mrf.mxu0
    %v2503 = vadd.f32 0.0, %v2502
    %2504 = vmatmul.f32.gmra.mxu0 %v2481
    %v2505 = vpop.f32.mrf.mxu0
    %v2506 = vadd.f32 0.0, %v2505
    %2507 = vmatmul.f32.gmra.mxu0 %v2482
    %v2508 = vpop.f32.mrf.mxu0
    %v2509 = vadd.f32 0.0, %v2508
    %2510 = vmatmul.f32.gmra.mxu0 %v2483
    %v2511 = vpop.f32.mrf.mxu0
    %v2512 = vadd.f32 0.0, %v2511
    %2513 = vmatmul.f32.gmra.mxu0 %v2484
    %v2514 = vpop.f32.mrf.mxu0
    %v2515 = vadd.f32 0.0, %v2514
    %2516 = vdwg.mxu0
    %2517 = vmatpush.msra.mxu0 %v2479
    %2518 = vmatpush.msra.mxu0 %v2477
    %2519 = vmatpush.msra.mxu0 %v2475
    %2520 = vmatpush.msra.mxu0 %v2473
    %2521 = vmatpush.msra.mxu0 %v2471
    %2522 = vmatpush.msra.mxu0 %v2469
    %2523 = vmatpush.msra.mxu0 %v2467
    %2524 = vmatpush.msra.mxu0 %v2465
    %2525 = vmatpush.msra.mxu0 %v2463
    %2526 = vmatpush.msra.mxu0 %v2461
    %2527 = vmatpush.msra.mxu0 %v2459
    %2528 = vmatpush.msra.mxu0 %v2457
    %2529 = vmatpush.msra.mxu0 %v2455
    %2530 = vmatpush.msra.mxu0 %v2453
    %2531 = vmatpush.msra.mxu0 %v2451
    %2532 = vmatpush.msra.mxu0 %v2449
    %2533 = vmatmul.f32.gmra.mxu0 %v2480
    %v2534 = vpop.f32.mrf.mxu0
    %v2535 = vadd.f32 0.0, %v2534
    %2536 = vmatmul.f32.gmra.mxu0 %v2481
    %v2537 = vpop.f32.mrf.mxu0
    %v2538 = vadd.f32 0.0, %v2537
    %2539 = vmatmul.f32.gmra.mxu0 %v2482
    %v2540 = vpop.f32.mrf.mxu0
    %v2541 = vadd.f32 0.0, %v2540
    %2542 = vmatmul.f32.gmra.mxu0 %v2483
    %v2543 = vpop.f32.mrf.mxu0
    %v2544 = vadd.f32 0.0, %v2543
    %2545 = vmatmul.f32.gmra.mxu0 %v2484
    %v2546 = vpop.f32.mrf.mxu0
    %v2547 = vadd.f32 0.0, %v2546
    %2548 = vdwg.mxu0
    %2549 = vst [vmem:[#allocation3] sm:$0xff] %v2503
    %2550 = vst [vmem:[#allocation3 + $0x8] sm:$0xff] %v2535
    %2551 = vst [vmem:[#allocation3 + $0x10] sm:$0xff] %v2506
    %2552 = vst [vmem:[#allocation3 + $0x18] sm:$0xff] %v2538
    %2553 = vst [vmem:[#allocation3 + $0x20] sm:$0xff] %v2509
    %2554 = vst [vmem:[#allocation3 + $0x28] sm:$0xff] %v2541
    %2555 = vst [vmem:[#allocation3 + $0x30] sm:$0xff] %v2512
    %2556 = vst [vmem:[#allocation3 + $0x38] sm:$0xff] %v2544
    %2557 = vst [vmem:[#allocation3 + $0x40] sm:$0xff] %v2515
    %2558 = vst [vmem:[#allocation3 + $0x48] sm:$0xff] %v2547
    %v2559 = vld [vmem:[%s2440] sm:$0xff]
    %v2560 = vld [vmem:[%s2440 + $0x8] sm:$0xff]
    %v2561 = vld [vmem:[%s2440 + $0x10] sm:$0xff]
    %v2562 = vld [vmem:[%s2440 + $0x18] sm:$0xff]
    %v2563 = vld [vmem:[%s2440 + $0x20] sm:$0xff]
    %2564 = vmatpush.msra.mxu0 %v2478
    %2565 = vmatpush.msra.mxu0 %v2476
    %2566 = vmatpush.msra.mxu0 %v2474
    %2567 = vmatpush.msra.mxu0 %v2472
    %2568 = vmatpush.msra.mxu0 %v2470
    %2569 = vmatpush.msra.mxu0 %v2468
    %2570 = vmatpush.msra.mxu0 %v2466
    %2571 = vmatpush.msra.mxu0 %v2464
    %2572 = vmatpush.msra.mxu0 %v2462
    %2573 = vmatpush.msra.mxu0 %v2460
    %2574 = vmatpush.msra.mxu0 %v2458
    %2575 = vmatpush.msra.mxu0 %v2456
    %2576 = vmatpush.msra.mxu0 %v2454
    %2577 = vmatpush.msra.mxu0 %v2452
    %2578 = vmatpush.msra.mxu0 %v2450
    %2579 = vmatpush.msra.mxu0 %v2448
    %2580 = vmatmul.f32.gmra.mxu0 %v2559
    %v2581 = vpop.f32.mrf.mxu0
    %v2582 = vadd.f32 0.0, %v2581
    %2583 = vmatmul.f32.gmra.mxu0 %v2560
    %v2584 = vpop.f32.mrf.mxu0
    %v2585 = vadd.f32 0.0, %v2584
    %2586 = vmatmul.f32.gmra.mxu0 %v2561
    %v2587 = vpop.f32.mrf.mxu0
    %v2588 = vadd.f32 0.0, %v2587
    %2589 = vmatmul.f32.gmra.mxu0 %v2562
    %v2590 = vpop.f32.mrf.mxu0
    %v2591 = vadd.f32 0.0, %v2590
    %2592 = vmatmul.f32.gmra.mxu0 %v2563
    %v2593 = vpop.f32.mrf.mxu0
    %v2594 = vadd.f32 0.0, %v2593
    %2595 = vdwg.mxu0
    %2596 = vmatpush.msra.mxu0 %v2479
    %2597 = vmatpush.msra.mxu0 %v2477
    %2598 = vmatpush.msra.mxu0 %v2475
    %2599 = vmatpush.msra.mxu0 %v2473
    %2600 = vmatpush.msra.mxu0 %v2471
    %2601 = vmatpush.msra.mxu0 %v2469
    %2602 = vmatpush.msra.mxu0 %v2467
    %2603 = vmatpush.msra.mxu0 %v2465
    %2604 = vmatpush.msra.mxu0 %v2463
    %2605 = vmatpush.msra.mxu0 %v2461
    %2606 = vmatpush.msra.mxu0 %v2459
    %2607 = vmatpush.msra.mxu0 %v2457
    %2608 = vmatpush.msra.mxu0 %v2455
    %2609 = vmatpush.msra.mxu0 %v2453
    %2610 = vmatpush.msra.mxu0 %v2451
    %2611 = vmatpush.msra.mxu0 %v2449
    %2612 = vmatmul.f32.gmra.mxu0 %v2559
    %v2613 = vpop.f32.mrf.mxu0
    %v2614 = vadd.f32 0.0, %v2613
    %2615 = vmatmul.f32.gmra.mxu0 %v2560
    %v2616 = vpop.f32.mrf.mxu0
    %v2617 = vadd.f32 0.0, %v2616
    %2618 = vmatmul.f32.gmra.mxu0 %v2561
    %v2619 = vpop.f32.mrf.mxu0
    %v2620 = vadd.f32 0.0, %v2619
    %2621 = vmatmul.f32.gmra.mxu0 %v2562
    %v2622 = vpop.f32.mrf.mxu0
    %v2623 = vadd.f32 0.0, %v2622
    %2624 = vmatmul.f32.gmra.mxu0 %v2563
    %v2625 = vpop.f32.mrf.mxu0
    %v2626 = vadd.f32 0.0, %v2625
    %2627 = vdwg.mxu0
    %s2628 = scalar_lea.vmem [#allocation3], 80
    %2629 = vst [vmem:[%s2628] sm:$0xff] %v2582
    %2630 = vst [vmem:[%s2628 + $0x8] sm:$0xff] %v2614
    %2631 = vst [vmem:[%s2628 + $0x10] sm:$0xff] %v2585
    %2632 = vst [vmem:[%s2628 + $0x18] sm:$0xff] %v2617
    %2633 = vst [vmem:[%s2628 + $0x20] sm:$0xff] %v2588
    %2634 = vst [vmem:[%s2628 + $0x28] sm:$0xff] %v2620
    %2635 = vst [vmem:[%s2628 + $0x30] sm:$0xff] %v2591
    %2636 = vst [vmem:[%s2628 + $0x38] sm:$0xff] %v2623
    %2637 = vst [vmem:[%s2628 + $0x40] sm:$0xff] %v2594
    %2638 = vst [vmem:[%s2628 + $0x48] sm:$0xff] %v2626
    %s2639 = scalar_lea.vmem [#allocation5], 256
    %v2640 = vld [vmem:[%s2639] sm:$0xff]
    %v2641 = vld [vmem:[%s2639 + $0x8] sm:$0xff]
    %v2642 = vld [vmem:[%s2639 + $0x10] sm:$0xff]
    %v2643 = vld [vmem:[%s2639 + $0x18] sm:$0xff]
    %v2644 = vld [vmem:[%s2639 + $0x20] sm:$0xff]
    %v2645 = vld [vmem:[%s2639 + $0x28] sm:$0xff]
    %v2646 = vld [vmem:[%s2639 + $0x30] sm:$0xff]
    %v2647 = vld [vmem:[%s2639 + $0x38] sm:$0xff]
    %v2648 = vld [vmem:[%s2639 + $0x40] sm:$0xff]
    %v2649 = vld [vmem:[%s2639 + $0x48] sm:$0xff]
    %v2650 = vld [vmem:[%s2639 + $0x50] sm:$0xff]
    %v2651 = vld [vmem:[%s2639 + $0x58] sm:$0xff]
    %v2652 = vld [vmem:[%s2639 + $0x60] sm:$0xff]
    %v2653 = vld [vmem:[%s2639 + $0x68] sm:$0xff]
    %v2654 = vld [vmem:[%s2639 + $0x70] sm:$0xff]
    %v2655 = vld [vmem:[%s2639 + $0x78] sm:$0xff]
    %v2656 = vld [vmem:[%s2639 + $0x80] sm:$0xff]
    %v2657 = vld [vmem:[%s2639 + $0x88] sm:$0xff]
    %v2658 = vld [vmem:[%s2639 + $0x90] sm:$0xff]
    %v2659 = vld [vmem:[%s2639 + $0x98] sm:$0xff]
    %v2660 = vld [vmem:[%s2639 + $0xa0] sm:$0xff]
    %v2661 = vld [vmem:[%s2639 + $0xa8] sm:$0xff]
    %v2662 = vld [vmem:[%s2639 + $0xb0] sm:$0xff]
    %v2663 = vld [vmem:[%s2639 + $0xb8] sm:$0xff]
    %v2664 = vld [vmem:[%s2639 + $0xc0] sm:$0xff]
    %v2665 = vld [vmem:[%s2639 + $0xc8] sm:$0xff]
    %v2666 = vld [vmem:[%s2639 + $0xd0] sm:$0xff]
    %v2667 = vld [vmem:[%s2639 + $0xd8] sm:$0xff]
    %v2668 = vld [vmem:[%s2639 + $0xe0] sm:$0xff]
    %v2669 = vld [vmem:[%s2639 + $0xe8] sm:$0xff]
    %v2670 = vld [vmem:[%s2639 + $0xf0] sm:$0xff]
    %v2671 = vld [vmem:[%s2639 + $0xf8] sm:$0xff]
    %v2672 = vld [vmem:[%s2440] sm:$0xff]
    %v2673 = vld [vmem:[%s2440 + $0x8] sm:$0xff]
    %v2674 = vld [vmem:[%s2440 + $0x10] sm:$0xff]
    %v2675 = vld [vmem:[%s2440 + $0x18] sm:$0xff]
    %v2676 = vld [vmem:[%s2440 + $0x20] sm:$0xff]
    %2677 = vmatpush.msra.mxu0 %v2670
    %2678 = vmatpush.msra.mxu0 %v2668
    %2679 = vmatpush.msra.mxu0 %v2666
    %2680 = vmatpush.msra.mxu0 %v2664
    %2681 = vmatpush.msra.mxu0 %v2662
    %2682 = vmatpush.msra.mxu0 %v2660
    %2683 = vmatpush.msra.mxu0 %v2658
    %2684 = vmatpush.msra.mxu0 %v2656
    %2685 = vmatpush.msra.mxu0 %v2654
    %2686 = vmatpush.msra.mxu0 %v2652
    %2687 = vmatpush.msra.mxu0 %v2650
    %2688 = vmatpush.msra.mxu0 %v2648
    %2689 = vmatpush.msra.mxu0 %v2646
    %2690 = vmatpush.msra.mxu0 %v2644
    %2691 = vmatpush.msra.mxu0 %v2642
    %2692 = vmatpush.msra.mxu0 %v2640
    %2693 = vmatmul.f32.gmra.mxu0 %v2672
    %v2694 = vpop.f32.mrf.mxu0
    %v2695 = vadd.f32 0.0, %v2694
    %2696 = vmatmul.f32.gmra.mxu0 %v2673
    %v2697 = vpop.f32.mrf.mxu0
    %v2698 = vadd.f32 0.0, %v2697
    %2699 = vmatmul.f32.gmra.mxu0 %v2674
    %v2700 = vpop.f32.mrf.mxu0
    %v2701 = vadd.f32 0.0, %v2700
    %2702 = vmatmul.f32.gmra.mxu0 %v2675
    %v2703 = vpop.f32.mrf.mxu0
    %v2704 = vadd.f32 0.0, %v2703
    %2705 = vmatmul.f32.gmra.mxu0 %v2676
    %v2706 = vpop.f32.mrf.mxu0
    %v2707 = vadd.f32 0.0, %v2706
    %2708 = vdwg.mxu0
    %2709 = vmatpush.msra.mxu0 %v2671
    %2710 = vmatpush.msra.mxu0 %v2669
    %2711 = vmatpush.msra.mxu0 %v2667
    %2712 = vmatpush.msra.mxu0 %v2665
    %2713 = vmatpush.msra.mxu0 %v2663
    %2714 = vmatpush.msra.mxu0 %v2661
    %2715 = vmatpush.msra.mxu0 %v2659
    %2716 = vmatpush.msra.mxu0 %v2657
    %2717 = vmatpush.msra.mxu0 %v2655
    %2718 = vmatpush.msra.mxu0 %v2653
    %2719 = vmatpush.msra.mxu0 %v2651
    %2720 = vmatpush.msra.mxu0 %v2649
    %2721 = vmatpush.msra.mxu0 %v2647
    %2722 = vmatpush.msra.mxu0 %v2645
    %2723 = vmatpush.msra.mxu0 %v2643
    %2724 = vmatpush.msra.mxu0 %v2641
    %2725 = vmatmul.f32.gmra.mxu0 %v2672
    %v2726 = vpop.f32.mrf.mxu0
    %v2727 = vadd.f32 0.0, %v2726
    %2728 = vmatmul.f32.gmra.mxu0 %v2673
    %v2729 = vpop.f32.mrf.mxu0
    %v2730 = vadd.f32 0.0, %v2729
    %2731 = vmatmul.f32.gmra.mxu0 %v2674
    %v2732 = vpop.f32.mrf.mxu0
    %v2733 = vadd.f32 0.0, %v2732
    %2734 = vmatmul.f32.gmra.mxu0 %v2675
    %v2735 = vpop.f32.mrf.mxu0
    %v2736 = vadd.f32 0.0, %v2735
    %2737 = vmatmul.f32.gmra.mxu0 %v2676
    %v2738 = vpop.f32.mrf.mxu0
    %v2739 = vadd.f32 0.0, %v2738
    %2740 = vdwg.mxu0
    %v2741 = vld [vmem:[#allocation3] sm:$0xff]
    %v2742 = vld [vmem:[#allocation3 + $0x8] sm:$0xff]
    %v2743 = vld [vmem:[#allocation3 + $0x10] sm:$0xff]
    %v2744 = vld [vmem:[#allocation3 + $0x18] sm:$0xff]
    %v2745 = vld [vmem:[#allocation3 + $0x20] sm:$0xff]
    %v2746 = vld [vmem:[#allocation3 + $0x28] sm:$0xff]
    %v2747 = vld [vmem:[#allocation3 + $0x30] sm:$0xff]
    %v2748 = vld [vmem:[#allocation3 + $0x38] sm:$0xff]
    %v2749 = vld [vmem:[#allocation3 + $0x40] sm:$0xff]
    %v2750 = vld [vmem:[#allocation3 + $0x48] sm:$0xff]
    %v2751 = vadd.f32 %v2741, %v2695
    %v2752 = vadd.f32 %v2742, %v2727
    %v2753 = vadd.f32 %v2743, %v2698
    %v2754 = vadd.f32 %v2744, %v2730
    %v2755 = vadd.f32 %v2745, %v2701
    %v2756 = vadd.f32 %v2746, %v2733
    %v2757 = vadd.f32 %v2747, %v2704
    %v2758 = vadd.f32 %v2748, %v2736
    %v2759 = vadd.f32 %v2749, %v2707
    %v2760 = vadd.f32 %v2750, %v2739
    %2761 = vst [vmem:[#allocation3] sm:$0xff] %v2751
    %2762 = vst [vmem:[#allocation3 + $0x8] sm:$0xff] %v2752
    %2763 = vst [vmem:[#allocation3 + $0x10] sm:$0xff] %v2753
    %2764 = vst [vmem:[#allocation3 + $0x18] sm:$0xff] %v2754
    %2765 = vst [vmem:[#allocation3 + $0x20] sm:$0xff] %v2755
    %2766 = vst [vmem:[#allocation3 + $0x28] sm:$0xff] %v2756
    %2767 = vst [vmem:[#allocation3 + $0x30] sm:$0xff] %v2757
    %2768 = vst [vmem:[#allocation3 + $0x38] sm:$0xff] %v2758
    %2769 = vst [vmem:[#allocation3 + $0x40] sm:$0xff] %v2759
    %2770 = vst [vmem:[#allocation3 + $0x48] sm:$0xff] %v2760
    %s2771 = scalar_lea.vmem [#allocation4], 8
    %v2772 = vld [vmem:[%s2771] sm:$0xff]
    %v2773 = vld [vmem:[%s2771 + $0x8] sm:$0xff]
    %v2774 = vld [vmem:[%s2771 + $0x10] sm:$0xff]
    %v2775 = vld [vmem:[%s2771 + $0x18] sm:$0xff]
    %v2776 = vld [vmem:[%s2771 + $0x20] sm:$0xff]
    %2777 = vmatpush.msra.mxu0 %v2670
    %2778 = vmatpush.msra.mxu0 %v2668
    %2779 = vmatpush.msra.mxu0 %v2666
    %2780 = vmatpush.msra.mxu0 %v2664
    %2781 = vmatpush.msra.mxu0 %v2662
    %2782 = vmatpush.msra.mxu0 %v2660
    %2783 = vmatpush.msra.mxu0 %v2658
    %2784 = vmatpush.msra.mxu0 %v2656
    %2785 = vmatpush.msra.mxu0 %v2654
    %2786 = vmatpush.msra.mxu0 %v2652
    %2787 = vmatpush.msra.mxu0 %v2650
    %2788 = vmatpush.msra.mxu0 %v2648
    %2789 = vmatpush.msra.mxu0 %v2646
    %2790 = vmatpush.msra.mxu0 %v2644
    %2791 = vmatpush.msra.mxu0 %v2642
    %2792 = vmatpush.msra.mxu0 %v2640
    %2793 = vmatmul.f32.gmra.mxu0 %v2772
    %v2794 = vpop.f32.mrf.mxu0
    %v2795 = vadd.f32 0.0, %v2794
    %2796 = vmatmul.f32.gmra.mxu0 %v2773
    %v2797 = vpop.f32.mrf.mxu0
    %v2798 = vadd.f32 0.0, %v2797
    %2799 = vmatmul.f32.gmra.mxu0 %v2774
    %v2800 = vpop.f32.mrf.mxu0
    %v2801 = vadd.f32 0.0, %v2800
    %2802 = vmatmul.f32.gmra.mxu0 %v2775
    %v2803 = vpop.f32.mrf.mxu0
    %v2804 = vadd.f32 0.0, %v2803
    %2805 = vmatmul.f32.gmra.mxu0 %v2776
    %v2806 = vpop.f32.mrf.mxu0
    %v2807 = vadd.f32 0.0, %v2806
    %2808 = vdwg.mxu0
    %2809 = vmatpush.msra.mxu0 %v2671
    %2810 = vmatpush.msra.mxu0 %v2669
    %2811 = vmatpush.msra.mxu0 %v2667
    %2812 = vmatpush.msra.mxu0 %v2665
    %2813 = vmatpush.msra.mxu0 %v2663
    %2814 = vmatpush.msra.mxu0 %v2661
    %2815 = vmatpush.msra.mxu0 %v2659
    %2816 = vmatpush.msra.mxu0 %v2657
    %2817 = vmatpush.msra.mxu0 %v2655
    %2818 = vmatpush.msra.mxu0 %v2653
    %2819 = vmatpush.msra.mxu0 %v2651
    %2820 = vmatpush.msra.mxu0 %v2649
    %2821 = vmatpush.msra.mxu0 %v2647
    %2822 = vmatpush.msra.mxu0 %v2645
    %2823 = vmatpush.msra.mxu0 %v2643
    %2824 = vmatpush.msra.mxu0 %v2641
    %2825 = vmatmul.f32.gmra.mxu0 %v2772
    %v2826 = vpop.f32.mrf.mxu0
    %v2827 = vadd.f32 0.0, %v2826
    %2828 = vmatmul.f32.gmra.mxu0 %v2773
    %v2829 = vpop.f32.mrf.mxu0
    %v2830 = vadd.f32 0.0, %v2829
    %2831 = vmatmul.f32.gmra.mxu0 %v2774
    %v2832 = vpop.f32.mrf.mxu0
    %v2833 = vadd.f32 0.0, %v2832
    %2834 = vmatmul.f32.gmra.mxu0 %v2775
    %v2835 = vpop.f32.mrf.mxu0
    %v2836 = vadd.f32 0.0, %v2835
    %2837 = vmatmul.f32.gmra.mxu0 %v2776
    %v2838 = vpop.f32.mrf.mxu0
    %v2839 = vadd.f32 0.0, %v2838
    %2840 = vdwg.mxu0
    %v2841 = vld [vmem:[%s2628] sm:$0xff]
    %v2842 = vld [vmem:[%s2628 + $0x8] sm:$0xff]
    %v2843 = vld [vmem:[%s2628 + $0x10] sm:$0xff]
    %v2844 = vld [vmem:[%s2628 + $0x18] sm:$0xff]
    %v2845 = vld [vmem:[%s2628 + $0x20] sm:$0xff]
    %v2846 = vld [vmem:[%s2628 + $0x28] sm:$0xff]
    %v2847 = vld [vmem:[%s2628 + $0x30] sm:$0xff]
    %v2848 = vld [vmem:[%s2628 + $0x38] sm:$0xff]
    %v2849 = vld [vmem:[%s2628 + $0x40] sm:$0xff]
    %v2850 = vld [vmem:[%s2628 + $0x48] sm:$0xff]
    %v2851 = vadd.f32 %v2841, %v2795
    %v2852 = vadd.f32 %v2842, %v2827
    %v2853 = vadd.f32 %v2843, %v2798
    %v2854 = vadd.f32 %v2844, %v2830
    %v2855 = vadd.f32 %v2845, %v2801
    %v2856 = vadd.f32 %v2846, %v2833
    %v2857 = vadd.f32 %v2847, %v2804
    %v2858 = vadd.f32 %v2848, %v2836
    %v2859 = vadd.f32 %v2849, %v2807
    %v2860 = vadd.f32 %v2850, %v2839
    %2861 = vst [vmem:[%s2628] sm:$0xff] %v2851
    %2862 = vst [vmem:[%s2628 + $0x8] sm:$0xff] %v2852
    %2863 = vst [vmem:[%s2628 + $0x10] sm:$0xff] %v2853
    %2864 = vst [vmem:[%s2628 + $0x18] sm:$0xff] %v2854
    %2865 = vst [vmem:[%s2628 + $0x20] sm:$0xff] %v2855
    %2866 = vst [vmem:[%s2628 + $0x28] sm:$0xff] %v2856
    %2867 = vst [vmem:[%s2628 + $0x30] sm:$0xff] %v2857
    %2868 = vst [vmem:[%s2628 + $0x38] sm:$0xff] %v2858
    %2869 = vst [vmem:[%s2628 + $0x40] sm:$0xff] %v2859
    %2870 = vst [vmem:[%s2628 + $0x48] sm:$0xff] %v2860
    %s2871 = scalar_lea.vmem [#allocation5], 512
    %v2872 = vld [vmem:[%s2871] sm:$0xff]
    %v2873 = vld [vmem:[%s2871 + $0x8] sm:$0xff]
    %v2874 = vld [vmem:[%s2871 + $0x10] sm:$0xff]
    %v2875 = vld [vmem:[%s2871 + $0x18] sm:$0xff]
    %v2876 = vld [vmem:[%s2871 + $0x20] sm:$0xff]
    %v2877 = vld [vmem:[%s2871 + $0x28] sm:$0xff]
    %v2878 = vld [vmem:[%s2871 + $0x30] sm:$0xff]
    %v2879 = vld [vmem:[%s2871 + $0x38] sm:$0xff]
    %v2880 = vld [vmem:[%s2871 + $0x40] sm:$0xff]
    %v2881 = vld [vmem:[%s2871 + $0x48] sm:$0xff]
    %v2882 = vld [vmem:[%s2871 + $0x50] sm:$0xff]
    %v2883 = vld [vmem:[%s2871 + $0x58] sm:$0xff]
    %v2884 = vld [vmem:[%s2871 + $0x60] sm:$0xff]
    %v2885 = vld [vmem:[%s2871 + $0x68] sm:$0xff]
    %v2886 = vld [vmem:[%s2871 + $0x70] sm:$0xff]
    %v2887 = vld [vmem:[%s2871 + $0x78] sm:$0xff]
    %v2888 = vld [vmem:[%s2871 + $0x80] sm:$0xff]
    %v2889 = vld [vmem:[%s2871 + $0x88] sm:$0xff]
    %v2890 = vld [vmem:[%s2871 + $0x90] sm:$0xff]
    %v2891 = vld [vmem:[%s2871 + $0x98] sm:$0xff]
    %v2892 = vld [vmem:[%s2871 + $0xa0] sm:$0xff]
    %v2893 = vld [vmem:[%s2871 + $0xa8] sm:$0xff]
    %v2894 = vld [vmem:[%s2871 + $0xb0] sm:$0xff]
    %v2895 = vld [vmem:[%s2871 + $0xb8] sm:$0xff]
    %v2896 = vld [vmem:[%s2871 + $0xc0] sm:$0xff]
    %v2897 = vld [vmem:[%s2871 + $0xc8] sm:$0xff]
    %v2898 = vld [vmem:[%s2871 + $0xd0] sm:$0xff]
    %v2899 = vld [vmem:[%s2871 + $0xd8] sm:$0xff]
    %v2900 = vld [vmem:[%s2871 + $0xe0] sm:$0xff]
    %v2901 = vld [vmem:[%s2871 + $0xe8] sm:$0xff]
    %v2902 = vld [vmem:[%s2871 + $0xf0] sm:$0xff]
    %v2903 = vld [vmem:[%s2871 + $0xf8] sm:$0xff]
    %v2904 = vld [vmem:[%s2771] sm:$0xff]
    %v2905 = vld [vmem:[%s2771 + $0x8] sm:$0xff]
    %v2906 = vld [vmem:[%s2771 + $0x10] sm:$0xff]
    %v2907 = vld [vmem:[%s2771 + $0x18] sm:$0xff]
    %v2908 = vld [vmem:[%s2771 + $0x20] sm:$0xff]
    %2909 = vmatpush.msra.mxu0 %v2902
    %2910 = vmatpush.msra.mxu0 %v2900
    %2911 = vmatpush.msra.mxu0 %v2898
    %2912 = vmatpush.msra.mxu0 %v2896
    %2913 = vmatpush.msra.mxu0 %v2894
    %2914 = vmatpush.msra.mxu0 %v2892
    %2915 = vmatpush.msra.mxu0 %v2890
    %2916 = vmatpush.msra.mxu0 %v2888
    %2917 = vmatpush.msra.mxu0 %v2886
    %2918 = vmatpush.msra.mxu0 %v2884
    %2919 = vmatpush.msra.mxu0 %v2882
    %2920 = vmatpush.msra.mxu0 %v2880
    %2921 = vmatpush.msra.mxu0 %v2878
    %2922 = vmatpush.msra.mxu0 %v2876
    %2923 = vmatpush.msra.mxu0 %v2874
    %2924 = vmatpush.msra.mxu0 %v2872
    %2925 = vmatmul.f32.gmra.mxu0 %v2904
    %v2926 = vpop.f32.mrf.mxu0
    %v2927 = vadd.f32 0.0, %v2926
    %2928 = vmatmul.f32.gmra.mxu0 %v2905
    %v2929 = vpop.f32.mrf.mxu0
    %v2930 = vadd.f32 0.0, %v2929
    %2931 = vmatmul.f32.gmra.mxu0 %v2906
    %v2932 = vpop.f32.mrf.mxu0
    %v2933 = vadd.f32 0.0, %v2932
    %2934 = vmatmul.f32.gmra.mxu0 %v2907
    %v2935 = vpop.f32.mrf.mxu0
    %v2936 = vadd.f32 0.0, %v2935
    %2937 = vmatmul.f32.gmra.mxu0 %v2908
    %v2938 = vpop.f32.mrf.mxu0
    %v2939 = vadd.f32 0.0, %v2938
    %2940 = vdwg.mxu0
    %2941 = vmatpush.msra.mxu0 %v2903
    %2942 = vmatpush.msra.mxu0 %v2901
    %2943 = vmatpush.msra.mxu0 %v2899
    %2944 = vmatpush.msra.mxu0 %v2897
    %2945 = vmatpush.msra.mxu0 %v2895
    %2946 = vmatpush.msra.mxu0 %v2893
    %2947 = vmatpush.msra.mxu0 %v2891
    %2948 = vmatpush.msra.mxu0 %v2889
    %2949 = vmatpush.msra.mxu0 %v2887
    %2950 = vmatpush.msra.mxu0 %v2885
    %2951 = vmatpush.msra.mxu0 %v2883
    %2952 = vmatpush.msra.mxu0 %v2881
    %2953 = vmatpush.msra.mxu0 %v2879
    %2954 = vmatpush.msra.mxu0 %v2877
    %2955 = vmatpush.msra.mxu0 %v2875
    %2956 = vmatpush.msra.mxu0 %v2873
    %2957 = vmatmul.f32.gmra.mxu0 %v2904
    %v2958 = vpop.f32.mrf.mxu0
    %v2959 = vadd.f32 0.0, %v2958
    %2960 = vmatmul.f32.gmra.mxu0 %v2905
    %v2961 = vpop.f32.mrf.mxu0
    %v2962 = vadd.f32 0.0, %v2961
    %2963 = vmatmul.f32.gmra.mxu0 %v2906
    %v2964 = vpop.f32.mrf.mxu0
    %v2965 = vadd.f32 0.0, %v2964
    %2966 = vmatmul.f32.gmra.mxu0 %v2907
    %v2967 = vpop.f32.mrf.mxu0
    %v2968 = vadd.f32 0.0, %v2967
    %2969 = vmatmul.f32.gmra.mxu0 %v2908
    %v2970 = vpop.f32.mrf.mxu0
    %v2971 = vadd.f32 0.0, %v2970
    %2972 = vdwg.mxu0
    %v2973 = vld [vmem:[#allocation3] sm:$0xff]
    %v2974 = vld [vmem:[#allocation3 + $0x8] sm:$0xff]
    %v2975 = vld [vmem:[#allocation3 + $0x10] sm:$0xff]
    %v2976 = vld [vmem:[#allocation3 + $0x18] sm:$0xff]
    %v2977 = vld [vmem:[#allocation3 + $0x20] sm:$0xff]
    %v2978 = vld [vmem:[#allocation3 + $0x28] sm:$0xff]
    %v2979 = vld [vmem:[#allocation3 + $0x30] sm:$0xff]
    %v2980 = vld [vmem:[#allocation3 + $0x38] sm:$0xff]
    %v2981 = vld [vmem:[#allocation3 + $0x40] sm:$0xff]
    %v2982 = vld [vmem:[#allocation3 + $0x48] sm:$0xff]
    %v2983 = vadd.f32 %v2973, %v2927
    %v2984 = vadd.f32 %v2974, %v2959
    %v2985 = vadd.f32 %v2975, %v2930
    %v2986 = vadd.f32 %v2976, %v2962
    %v2987 = vadd.f32 %v2977, %v2933
    %v2988 = vadd.f32 %v2978, %v2965
    %v2989 = vadd.f32 %v2979, %v2936
    %v2990 = vadd.f32 %v2980, %v2968
    %v2991 = vadd.f32 %v2981, %v2939
    %v2992 = vadd.f32 %v2982, %v2971
    %2993 = vst [vmem:[#allocation3] sm:$0xff] %v2983
    %2994 = vst [vmem:[#allocation3 + $0x8] sm:$0xff] %v2984
    %2995 = vst [vmem:[#allocation3 + $0x10] sm:$0xff] %v2985
    %2996 = vst [vmem:[#allocation3 + $0x18] sm:$0xff] %v2986
    %2997 = vst [vmem:[#allocation3 + $0x20] sm:$0xff] %v2987
    %2998 = vst [vmem:[#allocation3 + $0x28] sm:$0xff] %v2988
    %2999 = vst [vmem:[#allocation3 + $0x30] sm:$0xff] %v2989
    %3000 = vst [vmem:[#allocation3 + $0x38] sm:$0xff] %v2990
    %3001 = vst [vmem:[#allocation3 + $0x40] sm:$0xff] %v2991
    %3002 = vst [vmem:[#allocation3 + $0x48] sm:$0xff] %v2992
    %s3003 = scalar_lea.vmem %s2440, 8 [#allocation4]
    %v3004 = vld [vmem:[%s3003] sm:$0xff]
    %v3005 = vld [vmem:[%s3003 + $0x8] sm:$0xff]
    %v3006 = vld [vmem:[%s3003 + $0x10] sm:$0xff]
    %v3007 = vld [vmem:[%s3003 + $0x18] sm:$0xff]
    %v3008 = vld [vmem:[%s3003 + $0x20] sm:$0xff]
    %3009 = vmatpush.msra.mxu0 %v2902
    %3010 = vmatpush.msra.mxu0 %v2900
    %3011 = vmatpush.msra.mxu0 %v2898
    %3012 = vmatpush.msra.mxu0 %v2896
    %3013 = vmatpush.msra.mxu0 %v2894
    %3014 = vmatpush.msra.mxu0 %v2892
    %3015 = vmatpush.msra.mxu0 %v2890
    %3016 = vmatpush.msra.mxu0 %v2888
    %3017 = vmatpush.msra.mxu0 %v2886
    %3018 = vmatpush.msra.mxu0 %v2884
    %3019 = vmatpush.msra.mxu0 %v2882
    %3020 = vmatpush.msra.mxu0 %v2880
    %3021 = vmatpush.msra.mxu0 %v2878
    %3022 = vmatpush.msra.mxu0 %v2876
    %3023 = vmatpush.msra.mxu0 %v2874
    %3024 = vmatpush.msra.mxu0 %v2872
    %3025 = vmatmul.f32.gmra.mxu0 %v3004
    %v3026 = vpop.f32.mrf.mxu0
    %v3027 = vadd.f32 0.0, %v3026
    %3028 = vmatmul.f32.gmra.mxu0 %v3005
    %v3029 = vpop.f32.mrf.mxu0
    %v3030 = vadd.f32 0.0, %v3029
    %3031 = vmatmul.f32.gmra.mxu0 %v3006
    %v3032 = vpop.f32.mrf.mxu0
    %v3033 = vadd.f32 0.0, %v3032
    %3034 = vmatmul.f32.gmra.mxu0 %v3007
    %v3035 = vpop.f32.mrf.mxu0
    %v3036 = vadd.f32 0.0, %v3035
    %3037 = vmatmul.f32.gmra.mxu0 %v3008
    %v3038 = vpop.f32.mrf.mxu0
    %v3039 = vadd.f32 0.0, %v3038
    %3040 = vdwg.mxu0
    %3041 = vmatpush.msra.mxu0 %v2903
    %3042 = vmatpush.msra.mxu0 %v2901
    %3043 = vmatpush.msra.mxu0 %v2899
    %3044 = vmatpush.msra.mxu0 %v2897
    %3045 = vmatpush.msra.mxu0 %v2895
    %3046 = vmatpush.msra.mxu0 %v2893
    %3047 = vmatpush.msra.mxu0 %v2891
    %3048 = vmatpush.msra.mxu0 %v2889
    %3049 = vmatpush.msra.mxu0 %v2887
    %3050 = vmatpush.msra.mxu0 %v2885
    %3051 = vmatpush.msra.mxu0 %v2883
    %3052 = vmatpush.msra.mxu0 %v2881
    %3053 = vmatpush.msra.mxu0 %v2879
    %3054 = vmatpush.msra.mxu0 %v2877
    %3055 = vmatpush.msra.mxu0 %v2875
    %3056 = vmatpush.msra.mxu0 %v2873
    %3057 = vmatmul.f32.gmra.mxu0 %v3004
    %v3058 = vpop.f32.mrf.mxu0
    %v3059 = vadd.f32 0.0, %v3058
    %3060 = vmatmul.f32.gmra.mxu0 %v3005
    %v3061 = vpop.f32.mrf.mxu0
    %v3062 = vadd.f32 0.0, %v3061
    %3063 = vmatmul.f32.gmra.mxu0 %v3006
    %v3064 = vpop.f32.mrf.mxu0
    %v3065 = vadd.f32 0.0, %v3064
    %3066 = vmatmul.f32.gmra.mxu0 %v3007
    %v3067 = vpop.f32.mrf.mxu0
    %v3068 = vadd.f32 0.0, %v3067
    %3069 = vmatmul.f32.gmra.mxu0 %v3008
    %v3070 = vpop.f32.mrf.mxu0
    %v3071 = vadd.f32 0.0, %v3070
    %3072 = vdwg.mxu0
    %v3073 = vld [vmem:[%s2628] sm:$0xff]
    %v3074 = vld [vmem:[%s2628 + $0x8] sm:$0xff]
    %v3075 = vld [vmem:[%s2628 + $0x10] sm:$0xff]
    %v3076 = vld [vmem:[%s2628 + $0x18] sm:$0xff]
    %v3077 = vld [vmem:[%s2628 + $0x20] sm:$0xff]
    %v3078 = vld [vmem:[%s2628 + $0x28] sm:$0xff]
    %v3079 = vld [vmem:[%s2628 + $0x30] sm:$0xff]
    %v3080 = vld [vmem:[%s2628 + $0x38] sm:$0xff]
    %v3081 = vld [vmem:[%s2628 + $0x40] sm:$0xff]
    %v3082 = vld [vmem:[%s2628 + $0x48] sm:$0xff]
    %v3083 = vadd.f32 %v3073, %v3027
    %v3084 = vadd.f32 %v3074, %v3059
    %v3085 = vadd.f32 %v3075, %v3030
    %v3086 = vadd.f32 %v3076, %v3062
    %v3087 = vadd.f32 %v3077, %v3033
    %v3088 = vadd.f32 %v3078, %v3065
    %v3089 = vadd.f32 %v3079, %v3036
    %v3090 = vadd.f32 %v3080, %v3068
    %v3091 = vadd.f32 %v3081, %v3039
    %v3092 = vadd.f32 %v3082, %v3071
    %3093 = vst [vmem:[%s2628] sm:$0xff] %v3083
    %3094 = vst [vmem:[%s2628 + $0x8] sm:$0xff] %v3084
    %3095 = vst [vmem:[%s2628 + $0x10] sm:$0xff] %v3085
    %3096 = vst [vmem:[%s2628 + $0x18] sm:$0xff] %v3086
    %3097 = vst [vmem:[%s2628 + $0x20] sm:$0xff] %v3087
    %3098 = vst [vmem:[%s2628 + $0x28] sm:$0xff] %v3088
    %3099 = vst [vmem:[%s2628 + $0x30] sm:$0xff] %v3089
    %3100 = vst [vmem:[%s2628 + $0x38] sm:$0xff] %v3090
    %3101 = vst [vmem:[%s2628 + $0x40] sm:$0xff] %v3091
    %3102 = vst [vmem:[%s2628 + $0x48] sm:$0xff] %v3092
    %s3103 = scalar_lea.vmem [#allocation5], 768
    %v3104 = vld [vmem:[%s3103] sm:$0xff]
    %v3105 = vld [vmem:[%s3103 + $0x8] sm:$0xff]
    %v3106 = vld [vmem:[%s3103 + $0x10] sm:$0xff]
    %v3107 = vld [vmem:[%s3103 + $0x18] sm:$0xff]
    %v3108 = vld [vmem:[%s3103 + $0x20] sm:$0xff]
    %v3109 = vld [vmem:[%s3103 + $0x28] sm:$0xff]
    %v3110 = vld [vmem:[%s3103 + $0x30] sm:$0xff]
    %v3111 = vld [vmem:[%s3103 + $0x38] sm:$0xff]
    %v3112 = vld [vmem:[%s3103 + $0x40] sm:$0xff]
    %v3113 = vld [vmem:[%s3103 + $0x48] sm:$0xff]
    %v3114 = vld [vmem:[%s3103 + $0x50] sm:$0xff]
    %v3115 = vld [vmem:[%s3103 + $0x58] sm:$0xff]
    %v3116 = vld [vmem:[%s3103 + $0x60] sm:$0xff]
    %v3117 = vld [vmem:[%s3103 + $0x68] sm:$0xff]
    %v3118 = vld [vmem:[%s3103 + $0x70] sm:$0xff]
    %v3119 = vld [vmem:[%s3103 + $0x78] sm:$0xff]
    %v3120 = vld [vmem:[%s3103 + $0x80] sm:$0xff]
    %v3121 = vld [vmem:[%s3103 + $0x88] sm:$0xff]
    %v3122 = vld [vmem:[%s3103 + $0x90] sm:$0xff]
    %v3123 = vld [vmem:[%s3103 + $0x98] sm:$0xff]
    %v3124 = vld [vmem:[%s3103 + $0xa0] sm:$0xff]
    %v3125 = vld [vmem:[%s3103 + $0xa8] sm:$0xff]
    %v3126 = vld [vmem:[%s3103 + $0xb0] sm:$0xff]
    %v3127 = vld [vmem:[%s3103 + $0xb8] sm:$0xff]
    %v3128 = vld [vmem:[%s3103 + $0xc0] sm:$0xff]
    %v3129 = vld [vmem:[%s3103 + $0xc8] sm:$0xff]
    %v3130 = vld [vmem:[%s3103 + $0xd0] sm:$0xff]
    %v3131 = vld [vmem:[%s3103 + $0xd8] sm:$0xff]
    %v3132 = vld [vmem:[%s3103 + $0xe0] sm:$0xff]
    %v3133 = vld [vmem:[%s3103 + $0xe8] sm:$0xff]
    %v3134 = vld [vmem:[%s3103 + $0xf0] sm:$0xff]
    %v3135 = vld [vmem:[%s3103 + $0xf8] sm:$0xff]
    %v3136 = vld [vmem:[%s3003] sm:$0xff]
    %v3137 = vld [vmem:[%s3003 + $0x8] sm:$0xff]
    %v3138 = vld [vmem:[%s3003 + $0x10] sm:$0xff]
    %v3139 = vld [vmem:[%s3003 + $0x18] sm:$0xff]
    %v3140 = vld [vmem:[%s3003 + $0x20] sm:$0xff]
    %3141 = vmatpush.msra.mxu0 %v3134
    %3142 = vmatpush.msra.mxu0 %v3132
    %3143 = vmatpush.msra.mxu0 %v3130
    %3144 = vmatpush.msra.mxu0 %v3128
    %3145 = vmatpush.msra.mxu0 %v3126
    %3146 = vmatpush.msra.mxu0 %v3124
    %3147 = vmatpush.msra.mxu0 %v3122
    %3148 = vmatpush.msra.mxu0 %v3120
    %3149 = vmatpush.msra.mxu0 %v3118
    %3150 = vmatpush.msra.mxu0 %v3116
    %3151 = vmatpush.msra.mxu0 %v3114
    %3152 = vmatpush.msra.mxu0 %v3112
    %3153 = vmatpush.msra.mxu0 %v3110
    %3154 = vmatpush.msra.mxu0 %v3108
    %3155 = vmatpush.msra.mxu0 %v3106
    %3156 = vmatpush.msra.mxu0 %v3104
    %3157 = vmatmul.f32.gmra.mxu0 %v3136
    %v3158 = vpop.f32.mrf.mxu0
    %v3159 = vadd.f32 0.0, %v3158
    %3160 = vmatmul.f32.gmra.mxu0 %v3137
    %v3161 = vpop.f32.mrf.mxu0
    %v3162 = vadd.f32 0.0, %v3161
    %3163 = vmatmul.f32.gmra.mxu0 %v3138
    %v3164 = vpop.f32.mrf.mxu0
    %v3165 = vadd.f32 0.0, %v3164
    %3166 = vmatmul.f32.gmra.mxu0 %v3139
    %v3167 = vpop.f32.mrf.mxu0
    %v3168 = vadd.f32 0.0, %v3167
    %3169 = vmatmul.f32.gmra.mxu0 %v3140
    %v3170 = vpop.f32.mrf.mxu0
    %v3171 = vadd.f32 0.0, %v3170
    %3172 = vdwg.mxu0
    %3173 = vmatpush.msra.mxu0 %v3135
    %3174 = vmatpush.msra.mxu0 %v3133
    %3175 = vmatpush.msra.mxu0 %v3131
    %3176 = vmatpush.msra.mxu0 %v3129
    %3177 = vmatpush.msra.mxu0 %v3127
    %3178 = vmatpush.msra.mxu0 %v3125
    %3179 = vmatpush.msra.mxu0 %v3123
    %3180 = vmatpush.msra.mxu0 %v3121
    %3181 = vmatpush.msra.mxu0 %v3119
    %3182 = vmatpush.msra.mxu0 %v3117
    %3183 = vmatpush.msra.mxu0 %v3115
    %3184 = vmatpush.msra.mxu0 %v3113
    %3185 = vmatpush.msra.mxu0 %v3111
    %3186 = vmatpush.msra.mxu0 %v3109
    %3187 = vmatpush.msra.mxu0 %v3107
    %3188 = vmatpush.msra.mxu0 %v3105
    %3189 = vmatmul.f32.gmra.mxu0 %v3136
    %v3190 = vpop.f32.mrf.mxu0
    %v3191 = vadd.f32 0.0, %v3190
    %3192 = vmatmul.f32.gmra.mxu0 %v3137
    %v3193 = vpop.f32.mrf.mxu0
    %v3194 = vadd.f32 0.0, %v3193
    %3195 = vmatmul.f32.gmra.mxu0 %v3138
    %v3196 = vpop.f32.mrf.mxu0
    %v3197 = vadd.f32 0.0, %v3196
    %3198 = vmatmul.f32.gmra.mxu0 %v3139
    %v3199 = vpop.f32.mrf.mxu0
    %v3200 = vadd.f32 0.0, %v3199
    %3201 = vmatmul.f32.gmra.mxu0 %v3140
    %v3202 = vpop.f32.mrf.mxu0
    %v3203 = vadd.f32 0.0, %v3202
    %3204 = vdwg.mxu0
    %v3205 = vld [vmem:[#allocation3] sm:$0xff]
    %v3206 = vld [vmem:[#allocation3 + $0x8] sm:$0xff]
    %v3207 = vld [vmem:[#allocation3 + $0x10] sm:$0xff]
    %v3208 = vld [vmem:[#allocation3 + $0x18] sm:$0xff]
    %v3209 = vld [vmem:[#allocation3 + $0x20] sm:$0xff]
    %v3210 = vld [vmem:[#allocation3 + $0x28] sm:$0xff]
    %v3211 = vld [vmem:[#allocation3 + $0x30] sm:$0xff]
    %v3212 = vld [vmem:[#allocation3 + $0x38] sm:$0xff]
    %v3213 = vld [vmem:[#allocation3 + $0x40] sm:$0xff]
    %v3214 = vld [vmem:[#allocation3 + $0x48] sm:$0xff]
    %v3215 = vadd.f32 %v3205, %v3159
    %v3216 = vadd.f32 %v3206, %v3191
    %v3217 = vadd.f32 %v3207, %v3162
    %v3218 = vadd.f32 %v3208, %v3194
    %v3219 = vadd.f32 %v3209, %v3165
    %v3220 = vadd.f32 %v3210, %v3197
    %v3221 = vadd.f32 %v3211, %v3168
    %v3222 = vadd.f32 %v3212, %v3200
    %v3223 = vadd.f32 %v3213, %v3171
    %v3224 = vadd.f32 %v3214, %v3203
    %3225 = vst [vmem:[#allocation3] sm:$0xff] %v3215
    %3226 = vst [vmem:[#allocation3 + $0x8] sm:$0xff] %v3216
    %3227 = vst [vmem:[#allocation3 + $0x10] sm:$0xff] %v3217
    %3228 = vst [vmem:[#allocation3 + $0x18] sm:$0xff] %v3218
    %3229 = vst [vmem:[#allocation3 + $0x20] sm:$0xff] %v3219
    %3230 = vst [vmem:[#allocation3 + $0x28] sm:$0xff] %v3220
    %3231 = vst [vmem:[#allocation3 + $0x30] sm:$0xff] %v3221
    %3232 = vst [vmem:[#allocation3 + $0x38] sm:$0xff] %v3222
    %3233 = vst [vmem:[#allocation3 + $0x40] sm:$0xff] %v3223
    %3234 = vst [vmem:[#allocation3 + $0x48] sm:$0xff] %v3224
    %s3235 = scalar_lea.vmem [#allocation4], 16
    %v3236 = vld [vmem:[%s3235] sm:$0xff]
    %v3237 = vld [vmem:[%s3235 + $0x8] sm:$0xff]
    %v3238 = vld [vmem:[%s3235 + $0x10] sm:$0xff]
    %v3239 = vld [vmem:[%s3235 + $0x18] sm:$0xff]
    %v3240 = vld [vmem:[%s3235 + $0x20] sm:$0xff]
    %3241 = vmatpush.msra.mxu0 %v3134
    %3242 = vmatpush.msra.mxu0 %v3132
    %3243 = vmatpush.msra.mxu0 %v3130
    %3244 = vmatpush.msra.mxu0 %v3128
    %3245 = vmatpush.msra.mxu0 %v3126
    %3246 = vmatpush.msra.mxu0 %v3124
    %3247 = vmatpush.msra.mxu0 %v3122
    %3248 = vmatpush.msra.mxu0 %v3120
    %3249 = vmatpush.msra.mxu0 %v3118
    %3250 = vmatpush.msra.mxu0 %v3116
    %3251 = vmatpush.msra.mxu0 %v3114
    %3252 = vmatpush.msra.mxu0 %v3112
    %3253 = vmatpush.msra.mxu0 %v3110
    %3254 = vmatpush.msra.mxu0 %v3108
    %3255 = vmatpush.msra.mxu0 %v3106
    %3256 = vmatpush.msra.mxu0 %v3104
    %3257 = vmatmul.f32.gmra.mxu0 %v3236
    %v3258 = vpop.f32.mrf.mxu0
    %v3259 = vadd.f32 0.0, %v3258
    %3260 = vmatmul.f32.gmra.mxu0 %v3237
    %v3261 = vpop.f32.mrf.mxu0
    %v3262 = vadd.f32 0.0, %v3261
    %3263 = vmatmul.f32.gmra.mxu0 %v3238
    %v3264 = vpop.f32.mrf.mxu0
    %v3265 = vadd.f32 0.0, %v3264
    %3266 = vmatmul.f32.gmra.mxu0 %v3239
    %v3267 = vpop.f32.mrf.mxu0
    %v3268 = vadd.f32 0.0, %v3267
    %3269 = vmatmul.f32.gmra.mxu0 %v3240
    %v3270 = vpop.f32.mrf.mxu0
    %v3271 = vadd.f32 0.0, %v3270
    %3272 = vdwg.mxu0
    %3273 = vmatpush.msra.mxu0 %v3135
    %3274 = vmatpush.msra.mxu0 %v3133
    %3275 = vmatpush.msra.mxu0 %v3131
    %3276 = vmatpush.msra.mxu0 %v3129
    %3277 = vmatpush.msra.mxu0 %v3127
    %3278 = vmatpush.msra.mxu0 %v3125
    %3279 = vmatpush.msra.mxu0 %v3123
    %3280 = vmatpush.msra.mxu0 %v3121
    %3281 = vmatpush.msra.mxu0 %v3119
    %3282 = vmatpush.msra.mxu0 %v3117
    %3283 = vmatpush.msra.mxu0 %v3115
    %3284 = vmatpush.msra.mxu0 %v3113
    %3285 = vmatpush.msra.mxu0 %v3111
    %3286 = vmatpush.msra.mxu0 %v3109
    %3287 = vmatpush.msra.mxu0 %v3107
    %3288 = vmatpush.msra.mxu0 %v3105
    %3289 = vmatmul.f32.gmra.mxu0 %v3236
    %v3290 = vpop.f32.mrf.mxu0
    %v3291 = vadd.f32 0.0, %v3290
    %3292 = vmatmul.f32.gmra.mxu0 %v3237
    %v3293 = vpop.f32.mrf.mxu0
    %v3294 = vadd.f32 0.0, %v3293
    %3295 = vmatmul.f32.gmra.mxu0 %v3238
    %v3296 = vpop.f32.mrf.mxu0
    %v3297 = vadd.f32 0.0, %v3296
    %3298 = vmatmul.f32.gmra.mxu0 %v3239
    %v3299 = vpop.f32.mrf.mxu0
    %v3300 = vadd.f32 0.0, %v3299
    %3301 = vmatmul.f32.gmra.mxu0 %v3240
    %v3302 = vpop.f32.mrf.mxu0
    %v3303 = vadd.f32 0.0, %v3302
    %3304 = vdwg.mxu0
    %v3305 = vld [vmem:[%s2628] sm:$0xff]
    %v3306 = vld [vmem:[%s2628 + $0x8] sm:$0xff]
    %v3307 = vld [vmem:[%s2628 + $0x10] sm:$0xff]
    %v3308 = vld [vmem:[%s2628 + $0x18] sm:$0xff]
    %v3309 = vld [vmem:[%s2628 + $0x20] sm:$0xff]
    %v3310 = vld [vmem:[%s2628 + $0x28] sm:$0xff]
    %v3311 = vld [vmem:[%s2628 + $0x30] sm:$0xff]
    %v3312 = vld [vmem:[%s2628 + $0x38] sm:$0xff]
    %v3313 = vld [vmem:[%s2628 + $0x40] sm:$0xff]
    %v3314 = vld [vmem:[%s2628 + $0x48] sm:$0xff]
    %v3315 = vadd.f32 %v3305, %v3259
    %v3316 = vadd.f32 %v3306, %v3291
    %v3317 = vadd.f32 %v3307, %v3262
    %v3318 = vadd.f32 %v3308, %v3294
    %v3319 = vadd.f32 %v3309, %v3265
    %v3320 = vadd.f32 %v3310, %v3297
    %v3321 = vadd.f32 %v3311, %v3268
    %v3322 = vadd.f32 %v3312, %v3300
    %v3323 = vadd.f32 %v3313, %v3271
    %v3324 = vadd.f32 %v3314, %v3303
    %3325 = vst [vmem:[%s2628] sm:$0xff] %v3315
    %3326 = vst [vmem:[%s2628 + $0x8] sm:$0xff] %v3316
    %3327 = vst [vmem:[%s2628 + $0x10] sm:$0xff] %v3317
    %3328 = vst [vmem:[%s2628 + $0x18] sm:$0xff] %v3318
    %3329 = vst [vmem:[%s2628 + $0x20] sm:$0xff] %v3319
    %3330 = vst [vmem:[%s2628 + $0x28] sm:$0xff] %v3320
    %3331 = vst [vmem:[%s2628 + $0x30] sm:$0xff] %v3321
    %3332 = vst [vmem:[%s2628 + $0x38] sm:$0xff] %v3322
    %3333 = vst [vmem:[%s2628 + $0x40] sm:$0xff] %v3323
    %3334 = vst [vmem:[%s2628 + $0x48] sm:$0xff] %v3324
    %s3335 = scalar_lea.vmem [#allocation5], 1024
    %v3336 = vld [vmem:[%s3335] sm:$0xff]
    %v3337 = vld [vmem:[%s3335 + $0x8] sm:$0xff]
    %v3338 = vld [vmem:[%s3335 + $0x10] sm:$0xff]
    %v3339 = vld [vmem:[%s3335 + $0x18] sm:$0xff]
    %v3340 = vld [vmem:[%s3335 + $0x20] sm:$0xff]
    %v3341 = vld [vmem:[%s3335 + $0x28] sm:$0xff]
    %v3342 = vld [vmem:[%s3335 + $0x30] sm:$0xff]
    %v3343 = vld [vmem:[%s3335 + $0x38] sm:$0xff]
    %v3344 = vld [vmem:[%s3335 + $0x40] sm:$0xff]
    %v3345 = vld [vmem:[%s3335 + $0x48] sm:$0xff]
    %v3346 = vld [vmem:[%s3335 + $0x50] sm:$0xff]
    %v3347 = vld [vmem:[%s3335 + $0x58] sm:$0xff]
    %v3348 = vld [vmem:[%s3335 + $0x60] sm:$0xff]
    %v3349 = vld [vmem:[%s3335 + $0x68] sm:$0xff]
    %v3350 = vld [vmem:[%s3335 + $0x70] sm:$0xff]
    %v3351 = vld [vmem:[%s3335 + $0x78] sm:$0xff]
    %v3352 = vld [vmem:[%s3335 + $0x80] sm:$0xff]
    %v3353 = vld [vmem:[%s3335 + $0x88] sm:$0xff]
    %v3354 = vld [vmem:[%s3335 + $0x90] sm:$0xff]
    %v3355 = vld [vmem:[%s3335 + $0x98] sm:$0xff]
    %v3356 = vld [vmem:[%s3335 + $0xa0] sm:$0xff]
    %v3357 = vld [vmem:[%s3335 + $0xa8] sm:$0xff]
    %v3358 = vld [vmem:[%s3335 + $0xb0] sm:$0xff]
    %v3359 = vld [vmem:[%s3335 + $0xb8] sm:$0xff]
    %v3360 = vld [vmem:[%s3335 + $0xc0] sm:$0xff]
    %v3361 = vld [vmem:[%s3335 + $0xc8] sm:$0xff]
    %v3362 = vld [vmem:[%s3335 + $0xd0] sm:$0xff]
    %v3363 = vld [vmem:[%s3335 + $0xd8] sm:$0xff]
    %v3364 = vld [vmem:[%s3335 + $0xe0] sm:$0xff]
    %v3365 = vld [vmem:[%s3335 + $0xe8] sm:$0xff]
    %v3366 = vld [vmem:[%s3335 + $0xf0] sm:$0xff]
    %v3367 = vld [vmem:[%s3335 + $0xf8] sm:$0xff]
    %v3368 = vld [vmem:[%s3235] sm:$0xff]
    %v3369 = vld [vmem:[%s3235 + $0x8] sm:$0xff]
    %v3370 = vld [vmem:[%s3235 + $0x10] sm:$0xff]
    %v3371 = vld [vmem:[%s3235 + $0x18] sm:$0xff]
    %v3372 = vld [vmem:[%s3235 + $0x20] sm:$0xff]
    %3373 = vmatpush.msra.mxu0 %v3366
    %3374 = vmatpush.msra.mxu0 %v3364
    %3375 = vmatpush.msra.mxu0 %v3362
    %3376 = vmatpush.msra.mxu0 %v3360
    %3377 = vmatpush.msra.mxu0 %v3358
    %3378 = vmatpush.msra.mxu0 %v3356
    %3379 = vmatpush.msra.mxu0 %v3354
    %3380 = vmatpush.msra.mxu0 %v3352
    %3381 = vmatpush.msra.mxu0 %v3350
    %3382 = vmatpush.msra.mxu0 %v3348
    %3383 = vmatpush.msra.mxu0 %v3346
    %3384 = vmatpush.msra.mxu0 %v3344
    %3385 = vmatpush.msra.mxu0 %v3342
    %3386 = vmatpush.msra.mxu0 %v3340
    %3387 = vmatpush.msra.mxu0 %v3338
    %3388 = vmatpush.msra.mxu0 %v3336
    %3389 = vmatmul.f32.gmra.mxu0 %v3368
    %v3390 = vpop.f32.mrf.mxu0
    %v3391 = vadd.f32 0.0, %v3390
    %3392 = vmatmul.f32.gmra.mxu0 %v3369
    %v3393 = vpop.f32.mrf.mxu0
    %v3394 = vadd.f32 0.0, %v3393
    %3395 = vmatmul.f32.gmra.mxu0 %v3370
    %v3396 = vpop.f32.mrf.mxu0
    %v3397 = vadd.f32 0.0, %v3396
    %3398 = vmatmul.f32.gmra.mxu0 %v3371
    %v3399 = vpop.f32.mrf.mxu0
    %v3400 = vadd.f32 0.0, %v3399
    %3401 = vmatmul.f32.gmra.mxu0 %v3372
    %v3402 = vpop.f32.mrf.mxu0
    %v3403 = vadd.f32 0.0, %v3402
    %3404 = vdwg.mxu0
    %3405 = vmatpush.msra.mxu0 %v3367
    %3406 = vmatpush.msra.mxu0 %v3365
    %3407 = vmatpush.msra.mxu0 %v3363
    %3408 = vmatpush.msra.mxu0 %v3361
    %3409 = vmatpush.msra.mxu0 %v3359
    %3410 = vmatpush.msra.mxu0 %v3357
    %3411 = vmatpush.msra.mxu0 %v3355
    %3412 = vmatpush.msra.mxu0 %v3353
    %3413 = vmatpush.msra.mxu0 %v3351
    %3414 = vmatpush.msra.mxu0 %v3349
    %3415 = vmatpush.msra.mxu0 %v3347
    %3416 = vmatpush.msra.mxu0 %v3345
    %3417 = vmatpush.msra.mxu0 %v3343
    %3418 = vmatpush.msra.mxu0 %v3341
    %3419 = vmatpush.msra.mxu0 %v3339
    %3420 = vmatpush.msra.mxu0 %v3337
    %3421 = vmatmul.f32.gmra.mxu0 %v3368
    %v3422 = vpop.f32.mrf.mxu0
    %v3423 = vadd.f32 0.0, %v3422
    %3424 = vmatmul.f32.gmra.mxu0 %v3369
    %v3425 = vpop.f32.mrf.mxu0
    %v3426 = vadd.f32 0.0, %v3425
    %3427 = vmatmul.f32.gmra.mxu0 %v3370
    %v3428 = vpop.f32.mrf.mxu0
    %v3429 = vadd.f32 0.0, %v3428
    %3430 = vmatmul.f32.gmra.mxu0 %v3371
    %v3431 = vpop.f32.mrf.mxu0
    %v3432 = vadd.f32 0.0, %v3431
    %3433 = vmatmul.f32.gmra.mxu0 %v3372
    %v3434 = vpop.f32.mrf.mxu0
    %v3435 = vadd.f32 0.0, %v3434
    %3436 = vdwg.mxu0
    %v3437 = vld [vmem:[#allocation3] sm:$0xff]
    %v3438 = vld [vmem:[#allocation3 + $0x8] sm:$0xff]
    %v3439 = vld [vmem:[#allocation3 + $0x10] sm:$0xff]
    %v3440 = vld [vmem:[#allocation3 + $0x18] sm:$0xff]
    %v3441 = vld [vmem:[#allocation3 + $0x20] sm:$0xff]
    %v3442 = vld [vmem:[#allocation3 + $0x28] sm:$0xff]
    %v3443 = vld [vmem:[#allocation3 + $0x30] sm:$0xff]
    %v3444 = vld [vmem:[#allocation3 + $0x38] sm:$0xff]
    %v3445 = vld [vmem:[#allocation3 + $0x40] sm:$0xff]
    %v3446 = vld [vmem:[#allocation3 + $0x48] sm:$0xff]
    %v3447 = vadd.f32 %v3437, %v3391
    %v3448 = vadd.f32 %v3438, %v3423
    %v3449 = vadd.f32 %v3439, %v3394
    %v3450 = vadd.f32 %v3440, %v3426
    %v3451 = vadd.f32 %v3441, %v3397
    %v3452 = vadd.f32 %v3442, %v3429
    %v3453 = vadd.f32 %v3443, %v3400
    %v3454 = vadd.f32 %v3444, %v3432
    %v3455 = vadd.f32 %v3445, %v3403
    %v3456 = vadd.f32 %v3446, %v3435
    %3457 = vst [vmem:[#allocation3] sm:$0xff] %v3447
    %3458 = vst [vmem:[#allocation3 + $0x8] sm:$0xff] %v3448
    %3459 = vst [vmem:[#allocation3 + $0x10] sm:$0xff] %v3449
    %3460 = vst [vmem:[#allocation3 + $0x18] sm:$0xff] %v3450
    %3461 = vst [vmem:[#allocation3 + $0x20] sm:$0xff] %v3451
    %3462 = vst [vmem:[#allocation3 + $0x28] sm:$0xff] %v3452
    %3463 = vst [vmem:[#allocation3 + $0x30] sm:$0xff] %v3453
    %3464 = vst [vmem:[#allocation3 + $0x38] sm:$0xff] %v3454
    %3465 = vst [vmem:[#allocation3 + $0x40] sm:$0xff] %v3455
    %3466 = vst [vmem:[#allocation3 + $0x48] sm:$0xff] %v3456
    %s3467 = scalar_lea.vmem %s2440, 16 [#allocation4]
    %v3468 = vld [vmem:[%s3467] sm:$0xff]
    %v3469 = vld [vmem:[%s3467 + $0x8] sm:$0xff]
    %v3470 = vld [vmem:[%s3467 + $0x10] sm:$0xff]
    %v3471 = vld [vmem:[%s3467 + $0x18] sm:$0xff]
    %v3472 = vld [vmem:[%s3467 + $0x20] sm:$0xff]
    %3473 = vmatpush.msra.mxu0 %v3366
    %3474 = vmatpush.msra.mxu0 %v3364
    %3475 = vmatpush.msra.mxu0 %v3362
    %3476 = vmatpush.msra.mxu0 %v3360
    %3477 = vmatpush.msra.mxu0 %v3358
    %3478 = vmatpush.msra.mxu0 %v3356
    %3479 = vmatpush.msra.mxu0 %v3354
    %3480 = vmatpush.msra.mxu0 %v3352
    %3481 = vmatpush.msra.mxu0 %v3350
    %3482 = vmatpush.msra.mxu0 %v3348
    %3483 = vmatpush.msra.mxu0 %v3346
    %3484 = vmatpush.msra.mxu0 %v3344
    %3485 = vmatpush.msra.mxu0 %v3342
    %3486 = vmatpush.msra.mxu0 %v3340
    %3487 = vmatpush.msra.mxu0 %v3338
    %3488 = vmatpush.msra.mxu0 %v3336
    %3489 = vmatmul.f32.gmra.mxu0 %v3468
    %v3490 = vpop.f32.mrf.mxu0
    %v3491 = vadd.f32 0.0, %v3490
    %3492 = vmatmul.f32.gmra.mxu0 %v3469
    %v3493 = vpop.f32.mrf.mxu0
    %v3494 = vadd.f32 0.0, %v3493
    %3495 = vmatmul.f32.gmra.mxu0 %v3470
    %v3496 = vpop.f32.mrf.mxu0
    %v3497 = vadd.f32 0.0, %v3496
    %3498 = vmatmul.f32.gmra.mxu0 %v3471
    %v3499 = vpop.f32.mrf.mxu0
    %v3500 = vadd.f32 0.0, %v3499
    %3501 = vmatmul.f32.gmra.mxu0 %v3472
    %v3502 = vpop.f32.mrf.mxu0
    %v3503 = vadd.f32 0.0, %v3502
    %3504 = vdwg.mxu0
    %3505 = vmatpush.msra.mxu0 %v3367
    %3506 = vmatpush.msra.mxu0 %v3365
    %3507 = vmatpush.msra.mxu0 %v3363
    %3508 = vmatpush.msra.mxu0 %v3361
    %3509 = vmatpush.msra.mxu0 %v3359
    %3510 = vmatpush.msra.mxu0 %v3357
    %3511 = vmatpush.msra.mxu0 %v3355
    %3512 = vmatpush.msra.mxu0 %v3353
    %3513 = vmatpush.msra.mxu0 %v3351
    %3514 = vmatpush.msra.mxu0 %v3349
    %3515 = vmatpush.msra.mxu0 %v3347
    %3516 = vmatpush.msra.mxu0 %v3345
    %3517 = vmatpush.msra.mxu0 %v3343
    %3518 = vmatpush.msra.mxu0 %v3341
    %3519 = vmatpush.msra.mxu0 %v3339
    %3520 = vmatpush.msra.mxu0 %v3337
    %3521 = vmatmul.f32.gmra.mxu0 %v3468
    %v3522 = vpop.f32.mrf.mxu0
    %v3523 = vadd.f32 0.0, %v3522
    %3524 = vmatmul.f32.gmra.mxu0 %v3469
    %v3525 = vpop.f32.mrf.mxu0
    %v3526 = vadd.f32 0.0, %v3525
    %3527 = vmatmul.f32.gmra.mxu0 %v3470
    %v3528 = vpop.f32.mrf.mxu0
    %v3529 = vadd.f32 0.0, %v3528
    %3530 = vmatmul.f32.gmra.mxu0 %v3471
    %v3531 = vpop.f32.mrf.mxu0
    %v3532 = vadd.f32 0.0, %v3531
    %3533 = vmatmul.f32.gmra.mxu0 %v3472
    %v3534 = vpop.f32.mrf.mxu0
    %v3535 = vadd.f32 0.0, %v3534
    %3536 = vdwg.mxu0
    %v3537 = vld [vmem:[%s2628] sm:$0xff]
    %v3538 = vld [vmem:[%s2628 + $0x8] sm:$0xff]
    %v3539 = vld [vmem:[%s2628 + $0x10] sm:$0xff]
    %v3540 = vld [vmem:[%s2628 + $0x18] sm:$0xff]
    %v3541 = vld [vmem:[%s2628 + $0x20] sm:$0xff]
    %v3542 = vld [vmem:[%s2628 + $0x28] sm:$0xff]
    %v3543 = vld [vmem:[%s2628 + $0x30] sm:$0xff]
    %v3544 = vld [vmem:[%s2628 + $0x38] sm:$0xff]
    %v3545 = vld [vmem:[%s2628 + $0x40] sm:$0xff]
    %v3546 = vld [vmem:[%s2628 + $0x48] sm:$0xff]
    %v3547 = vadd.f32 %v3537, %v3491
    %v3548 = vadd.f32 %v3538, %v3523
    %v3549 = vadd.f32 %v3539, %v3494
    %v3550 = vadd.f32 %v3540, %v3526
    %v3551 = vadd.f32 %v3541, %v3497
    %v3552 = vadd.f32 %v3542, %v3529
    %v3553 = vadd.f32 %v3543, %v3500
    %v3554 = vadd.f32 %v3544, %v3532
    %v3555 = vadd.f32 %v3545, %v3503
    %v3556 = vadd.f32 %v3546, %v3535
    %3557 = vst [vmem:[%s2628] sm:$0xff] %v3547
    %3558 = vst [vmem:[%s2628 + $0x8] sm:$0xff] %v3548
    %3559 = vst [vmem:[%s2628 + $0x10] sm:$0xff] %v3549
    %3560 = vst [vmem:[%s2628 + $0x18] sm:$0xff] %v3550
    %3561 = vst [vmem:[%s2628 + $0x20] sm:$0xff] %v3551
    %3562 = vst [vmem:[%s2628 + $0x28] sm:$0xff] %v3552
    %3563 = vst [vmem:[%s2628 + $0x30] sm:$0xff] %v3553
    %3564 = vst [vmem:[%s2628 + $0x38] sm:$0xff] %v3554
    %3565 = vst [vmem:[%s2628 + $0x40] sm:$0xff] %v3555
    %3566 = vst [vmem:[%s2628 + $0x48] sm:$0xff] %v3556
    %v3567 = vld [vmem:[#allocation3] sm:$0xff]
    %v3568 = vld [vmem:[#allocation3 + $0x8] sm:$0xff]
    %v3569 = vld [vmem:[#allocation3 + $0x10] sm:$0xff]
    %v3570 = vld [vmem:[#allocation3 + $0x18] sm:$0xff]
    %v3571 = vld [vmem:[#allocation3 + $0x20] sm:$0xff]
    %v3572 = vld [vmem:[#allocation3 + $0x28] sm:$0xff]
    %v3573 = vld [vmem:[#allocation3 + $0x30] sm:$0xff]
    %v3574 = vld [vmem:[#allocation3 + $0x38] sm:$0xff]
    %v3575 = vld [vmem:[#allocation3 + $0x40] sm:$0xff]
    %v3576 = vld [vmem:[#allocation3 + $0x48] sm:$0xff]
    %v3577 = vld [vmem:[%s2628] sm:$0xff]
    %v3578 = vld [vmem:[%s2628 + $0x8] sm:$0xff]
    %v3579 = vld [vmem:[%s2628 + $0x10] sm:$0xff]
    %v3580 = vld [vmem:[%s2628 + $0x18] sm:$0xff]
    %v3581 = vld [vmem:[%s2628 + $0x20] sm:$0xff]
    %v3582 = vld [vmem:[%s2628 + $0x28] sm:$0xff]
    %v3583 = vld [vmem:[%s2628 + $0x30] sm:$0xff]
    %v3584 = vld [vmem:[%s2628 + $0x38] sm:$0xff]
    %v3585 = vld [vmem:[%s2628 + $0x40] sm:$0xff]
    %v3586 = vld [vmem:[%s2628 + $0x48] sm:$0xff]
    %v3587 = vmax.f32 %v3567, %v3577
    %v3588 = vmax.f32 %v3568, %v3578
    %v3589 = vmax.f32 %v3569, %v3579
    %v3590 = vmax.f32 %v3570, %v3580
    %v3591 = vmax.f32 %v3571, %v3581
    %v3592 = vmax.f32 %v3572, %v3582
    %v3593 = vmax.f32 %v3573, %v3583
    %v3594 = vmax.f32 %v3574, %v3584
    %v3595 = vmax.f32 %v3575, %v3585
    %v3596 = vmax.f32 %v3576, %v3586
    %v3597 = vmax.f32 %v3587, %v3588
    %v3598 = vmax.f32 %v3589, %v3590
    %v3599 = vmax.f32 %v3591, %v3592
    %v3600 = vmax.f32 %v3593, %v3594
    %v3601 = vmax.f32 %v3595, %v3596
    %v3602 = vld [vmem:[%s4] sm:$0x1]
    %v3604 = vperm.slane %v3602, 0
    %v3606 = vadd.f32 %v3597, %v3604
    %v3607 = vadd.f32 %v3598, %v3604
    %v3608 = vadd.f32 %v3599, %v3604
    %v3609 = vadd.f32 %v3600, %v3604
    %v3610 = vadd.f32 %v3601, %v3604
    %v3611 = vmax.f32 %v3606, 0.0
    %v3612 = vmax.f32 %v3607, 0.0
    %v3613 = vmax.f32 %v3608, 0.0
    %v3614 = vmax.f32 %v3609, 0.0
    %v3615 = vmax.f32 %v3610, 0.0
    %v3616 = vld [vmem:[#allocation7] sm:$0xff]
    %v3617 = vld [vmem:[#allocation7 + $0x8] sm:$0xff]
    %v3618 = vld [vmem:[#allocation7 + $0x10] sm:$0xff]
    %v3619 = vld [vmem:[#allocation7 + $0x18] sm:$0xff]
    %v3620 = vld [vmem:[#allocation7 + $0x20] sm:$0xff]
    %v3621 = vld [vmem:[#allocation7 + $0x28] sm:$0xff]
    %v3622 = vld [vmem:[#allocation7 + $0x30] sm:$0xff]
    %v3623 = vld [vmem:[#allocation7 + $0x38] sm:$0xff]
    %v3624 = vld [vmem:[#allocation7 + $0x40] sm:$0xff]
    %v3625 = vld [vmem:[#allocation7 + $0x48] sm:$0xff]
    %v3626 = vld [vmem:[#allocation7 + $0x50] sm:$0xff]
    %v3627 = vld [vmem:[#allocation7 + $0x58] sm:$0xff]
    %v3628 = vld [vmem:[#allocation7 + $0x60] sm:$0xff]
    %v3629 = vld [vmem:[#allocation7 + $0x68] sm:$0xff]
    %v3630 = vld [vmem:[#allocation7 + $0x70] sm:$0xff]
    %v3631 = vld [vmem:[#allocation7 + $0x78] sm:$0xff]
    %s3632 = scalar_lea.vmem [#allocation7], 128
    %v3633 = vld [vmem:[%s3632] sm:$0xff]
    %v3634 = vld [vmem:[%s3632 + $0x8] sm:$0xff]
    %v3635 = vld [vmem:[%s3632 + $0x10] sm:$0xff]
    %v3636 = vld [vmem:[%s3632 + $0x18] sm:$0xff]
    %v3637 = vld [vmem:[%s3632 + $0x20] sm:$0xff]
    %v3638 = vld [vmem:[%s3632 + $0x28] sm:$0xff]
    %v3639 = vld [vmem:[%s3632 + $0x30] sm:$0xff]
    %v3640 = vld [vmem:[%s3632 + $0x38] sm:$0xff]
    %v3641 = vld [vmem:[%s3632 + $0x40] sm:$0xff]
    %v3642 = vld [vmem:[%s3632 + $0x48] sm:$0xff]
    %v3643 = vld [vmem:[%s3632 + $0x50] sm:$0xff]
    %v3644 = vld [vmem:[%s3632 + $0x58] sm:$0xff]
    %v3645 = vld [vmem:[%s3632 + $0x60] sm:$0xff]
    %v3646 = vld [vmem:[%s3632 + $0x68] sm:$0xff]
    %v3647 = vld [vmem:[%s3632 + $0x70] sm:$0xff]
    %v3648 = vld [vmem:[%s3632 + $0x78] sm:$0xff]
    %3649 = vmatpush.msra.mxu0 %v3648
    %3650 = vmatpush.msra.mxu0 %v3647
    %3651 = vmatpush.msra.mxu0 %v3646
    %3652 = vmatpush.msra.mxu0 %v3645
    %3653 = vmatpush.msra.mxu0 %v3644
    %3654 = vmatpush.msra.mxu0 %v3643
    %3655 = vmatpush.msra.mxu0 %v3642
    %3656 = vmatpush.msra.mxu0 %v3641
    %3657 = vmatpush.msra.mxu0 %v3640
    %3658 = vmatpush.msra.mxu0 %v3639
    %3659 = vmatpush.msra.mxu0 %v3638
    %3660 = vmatpush.msra.mxu0 %v3637
    %3661 = vmatpush.msra.mxu0 %v3636
    %3662 = vmatpush.msra.mxu0 %v3635
    %3663 = vmatpush.msra.mxu0 %v3634
    %3664 = vmatpush.msra.mxu0 %v3633
    %3665 = vmatmul.f32.gmra.mxu0 %v3612
    %v3666 = vpop.f32.mrf.mxu0
    %v3667 = vadd.f32 0.0, %v3666
    %3668 = vdwg.mxu0
    %3669 = vmatpush.msra.mxu0 %v3631
    %3670 = vmatpush.msra.mxu0 %v3630
    %3671 = vmatpush.msra.mxu0 %v3629
    %3672 = vmatpush.msra.mxu0 %v3628
    %3673 = vmatpush.msra.mxu0 %v3627
    %3674 = vmatpush.msra.mxu0 %v3626
    %3675 = vmatpush.msra.mxu0 %v3625
    %3676 = vmatpush.msra.mxu0 %v3624
    %3677 = vmatpush.msra.mxu0 %v3623
    %3678 = vmatpush.msra.mxu0 %v3622
    %3679 = vmatpush.msra.mxu0 %v3621
    %3680 = vmatpush.msra.mxu0 %v3620
    %3681 = vmatpush.msra.mxu0 %v3619
    %3682 = vmatpush.msra.mxu0 %v3618
    %3683 = vmatpush.msra.mxu0 %v3617
    %3684 = vmatpush.msra.mxu0 %v3616
    %3685 = vmatmul.f32.gmra.mxu0 %v3611
    %v3686 = vpop.f32.mrf.mxu0
    %v3687 = vadd.f32 %v3667, %v3686
    %3688 = vdwg.mxu0
    %s3689 = scalar_lea.vmem [#allocation7], 256
    %v3690 = vld [vmem:[%s3689] sm:$0xff]
    %v3691 = vld [vmem:[%s3689 + $0x8] sm:$0xff]
    %v3692 = vld [vmem:[%s3689 + $0x10] sm:$0xff]
    %v3693 = vld [vmem:[%s3689 + $0x18] sm:$0xff]
    %v3694 = vld [vmem:[%s3689 + $0x20] sm:$0xff]
    %v3695 = vld [vmem:[%s3689 + $0x28] sm:$0xff]
    %v3696 = vld [vmem:[%s3689 + $0x30] sm:$0xff]
    %v3697 = vld [vmem:[%s3689 + $0x38] sm:$0xff]
    %v3698 = vld [vmem:[%s3689 + $0x40] sm:$0xff]
    %v3699 = vld [vmem:[%s3689 + $0x48] sm:$0xff]
    %v3700 = vld [vmem:[%s3689 + $0x50] sm:$0xff]
    %v3701 = vld [vmem:[%s3689 + $0x58] sm:$0xff]
    %v3702 = vld [vmem:[%s3689 + $0x60] sm:$0xff]
    %v3703 = vld [vmem:[%s3689 + $0x68] sm:$0xff]
    %v3704 = vld [vmem:[%s3689 + $0x70] sm:$0xff]
    %v3705 = vld [vmem:[%s3689 + $0x78] sm:$0xff]
    %3706 = vmatpush.msra.mxu0 %v3705
    %3707 = vmatpush.msra.mxu0 %v3704
    %3708 = vmatpush.msra.mxu0 %v3703
    %3709 = vmatpush.msra.mxu0 %v3702
    %3710 = vmatpush.msra.mxu0 %v3701
    %3711 = vmatpush.msra.mxu0 %v3700
    %3712 = vmatpush.msra.mxu0 %v3699
    %3713 = vmatpush.msra.mxu0 %v3698
    %3714 = vmatpush.msra.mxu0 %v3697
    %3715 = vmatpush.msra.mxu0 %v3696
    %3716 = vmatpush.msra.mxu0 %v3695
    %3717 = vmatpush.msra.mxu0 %v3694
    %3718 = vmatpush.msra.mxu0 %v3693
    %3719 = vmatpush.msra.mxu0 %v3692
    %3720 = vmatpush.msra.mxu0 %v3691
    %3721 = vmatpush.msra.mxu0 %v3690
    %3722 = vmatmul.f32.gmra.mxu0 %v3613
    %v3723 = vpop.f32.mrf.mxu0
    %v3724 = vadd.f32 0.0, %v3723
    %3725 = vdwg.mxu0
    %v3726 = vadd.f32 %v3687, %v3724
    %s3727 = scalar_lea.vmem [#allocation7], 384
    %v3728 = vld [vmem:[%s3727] sm:$0xff]
    %v3729 = vld [vmem:[%s3727 + $0x8] sm:$0xff]
    %v3730 = vld [vmem:[%s3727 + $0x10] sm:$0xff]
    %v3731 = vld [vmem:[%s3727 + $0x18] sm:$0xff]
    %v3732 = vld [vmem:[%s3727 + $0x20] sm:$0xff]
    %v3733 = vld [vmem:[%s3727 + $0x28] sm:$0xff]
    %v3734 = vld [vmem:[%s3727 + $0x30] sm:$0xff]
    %v3735 = vld [vmem:[%s3727 + $0x38] sm:$0xff]
    %v3736 = vld [vmem:[%s3727 + $0x40] sm:$0xff]
    %v3737 = vld [vmem:[%s3727 + $0x48] sm:$0xff]
    %v3738 = vld [vmem:[%s3727 + $0x50] sm:$0xff]
    %v3739 = vld [vmem:[%s3727 + $0x58] sm:$0xff]
    %v3740 = vld [vmem:[%s3727 + $0x60] sm:$0xff]
    %v3741 = vld [vmem:[%s3727 + $0x68] sm:$0xff]
    %v3742 = vld [vmem:[%s3727 + $0x70] sm:$0xff]
    %v3743 = vld [vmem:[%s3727 + $0x78] sm:$0xff]
    %3744 = vmatpush.msra.mxu0 %v3743
    %3745 = vmatpush.msra.mxu0 %v3742
    %3746 = vmatpush.msra.mxu0 %v3741
    %3747 = vmatpush.msra.mxu0 %v3740
    %3748 = vmatpush.msra.mxu0 %v3739
    %3749 = vmatpush.msra.mxu0 %v3738
    %3750 = vmatpush.msra.mxu0 %v3737
    %3751 = vmatpush.msra.mxu0 %v3736
    %3752 = vmatpush.msra.mxu0 %v3735
    %3753 = vmatpush.msra.mxu0 %v3734
    %3754 = vmatpush.msra.mxu0 %v3733
    %3755 = vmatpush.msra.mxu0 %v3732
    %3756 = vmatpush.msra.mxu0 %v3731
    %3757 = vmatpush.msra.mxu0 %v3730
    %3758 = vmatpush.msra.mxu0 %v3729
    %3759 = vmatpush.msra.mxu0 %v3728
    %3760 = vmatmul.f32.gmra.mxu0 %v3614
    %v3761 = vpop.f32.mrf.mxu0
    %v3762 = vadd.f32 0.0, %v3761
    %3763 = vdwg.mxu0
    %v3764 = vadd.f32 %v3726, %v3762
    %s3765 = scalar_lea.vmem [#allocation7], 512
    %v3766 = vld [vmem:[%s3765] sm:$0xff]
    %v3767 = vld [vmem:[%s3765 + $0x8] sm:$0xff]
    %v3768 = vld [vmem:[%s3765 + $0x10] sm:$0xff]
    %v3769 = vld [vmem:[%s3765 + $0x18] sm:$0xff]
    %v3770 = vld [vmem:[%s3765 + $0x20] sm:$0xff]
    %v3771 = vld [vmem:[%s3765 + $0x28] sm:$0xff]
    %v3772 = vld [vmem:[%s3765 + $0x30] sm:$0xff]
    %v3773 = vld [vmem:[%s3765 + $0x38] sm:$0xff]
    %v3774 = vld [vmem:[%s3765 + $0x40] sm:$0xff]
    %v3775 = vld [vmem:[%s3765 + $0x48] sm:$0xff]
    %v3776 = vld [vmem:[%s3765 + $0x50] sm:$0xff]
    %v3777 = vld [vmem:[%s3765 + $0x58] sm:$0xff]
    %v3778 = vld [vmem:[%s3765 + $0x60] sm:$0xff]
    %v3779 = vld [vmem:[%s3765 + $0x68] sm:$0xff]
    %v3780 = vld [vmem:[%s3765 + $0x70] sm:$0xff]
    %v3781 = vld [vmem:[%s3765 + $0x78] sm:$0xff]
    %3782 = vmatpush.msra.mxu0 %v3781
    %3783 = vmatpush.msra.mxu0 %v3780
    %3784 = vmatpush.msra.mxu0 %v3779
    %3785 = vmatpush.msra.mxu0 %v3778
    %3786 = vmatpush.msra.mxu0 %v3777
    %3787 = vmatpush.msra.mxu0 %v3776
    %3788 = vmatpush.msra.mxu0 %v3775
    %3789 = vmatpush.msra.mxu0 %v3774
    %3790 = vmatpush.msra.mxu0 %v3773
    %3791 = vmatpush.msra.mxu0 %v3772
    %3792 = vmatpush.msra.mxu0 %v3771
    %3793 = vmatpush.msra.mxu0 %v3770
    %3794 = vmatpush.msra.mxu0 %v3769
    %3795 = vmatpush.msra.mxu0 %v3768
    %3796 = vmatpush.msra.mxu0 %v3767
    %3797 = vmatpush.msra.mxu0 %v3766
    %3798 = vmatmul.f32.gmra.mxu0 %v3615
    %v3799 = vpop.f32.mrf.mxu0
    %v3800 = vadd.f32 0.0, %v3799
    %3801 = vdwg.mxu0
    %v3802 = vadd.f32 %v3764, %v3800
    %v3803 = vld [vmem:[%s6] sm:$0x1]
    %v3805 = vperm.slane %v3803, 0
    %v3807 = vadd.f32 %v3802, %v3805
    %v3808 = vmax.f32 %v3807, 0.0
    %v3809 = vld [vmem:[%s7] sm:$0xff]
    %v3810 = vld [vmem:[%s7 + $0x8] sm:$0xff]
    %v3811 = vld [vmem:[%s7 + $0x10] sm:$0xff]
    %v3812 = vld [vmem:[%s7 + $0x18] sm:$0xff]
    %v3813 = vld [vmem:[%s7 + $0x20] sm:$0xff]
    %v3814 = vld [vmem:[%s7 + $0x28] sm:$0xff]
    %v3815 = vld [vmem:[%s7 + $0x30] sm:$0xff]
    %v3816 = vld [vmem:[%s7 + $0x38] sm:$0xff]
    %v3817 = vld [vmem:[%s7 + $0x40] sm:$0xff]
    %v3818 = vld [vmem:[%s7 + $0x48] sm:$0xff]
    %v3819 = vld [vmem:[%s7 + $0x50] sm:$0xff]
    %v3820 = vld [vmem:[%s7 + $0x58] sm:$0xff]
    %v3821 = vld [vmem:[%s7 + $0x60] sm:$0xff]
    %v3822 = vld [vmem:[%s7 + $0x68] sm:$0xff]
    %v3823 = vld [vmem:[%s7 + $0x70] sm:$0xff]
    %v3824 = vld [vmem:[%s7 + $0x78] sm:$0xff]
    %v3825 = vld [vmem:[%s8] sm:$0x1]
    %v3827 = vperm.slane %v3825, 0
    %3829 = vmatpush.msra.mxu0 %v3824
    %3830 = vmatpush.msra.mxu0 %v3823
    %3831 = vmatpush.msra.mxu0 %v3822
    %3832 = vmatpush.msra.mxu0 %v3821
    %3833 = vmatpush.msra.mxu0 %v3820
    %3834 = vmatpush.msra.mxu0 %v3819
    %3835 = vmatpush.msra.mxu0 %v3818
    %3836 = vmatpush.msra.mxu0 %v3817
    %3837 = vmatpush.msra.mxu0 %v3816
    %3838 = vmatpush.msra.mxu0 %v3815
    %3839 = vmatpush.msra.mxu0 %v3814
    %3840 = vmatpush.msra.mxu0 %v3813
    %3841 = vmatpush.msra.mxu0 %v3812
    %3842 = vmatpush.msra.mxu0 %v3811
    %3843 = vmatpush.msra.mxu0 %v3810
    %3844 = vmatpush.msra.mxu0 %v3809
    %3845 = vmatmul.f32.gmra.mxu0 %v3808
    %v3846 = vpop.f32.mrf.mxu0
    %v3847 = vadd.f32 %v3827, %v3846
    %3848 = vdwg.mxu0
    %v3849 = vmax.f32 %v3847, 0.0
    %v3850 = vld [vmem:[#allocation9] sm:$0xff]
    %v3851 = vld [vmem:[#allocation9 + $0x8] sm:$0xff]
    %v3852 = vld [vmem:[#allocation9 + $0x10] sm:$0xff]
    %v3853 = vld [vmem:[#allocation9 + $0x18] sm:$0xff]
    %v3854 = vld [vmem:[#allocation9 + $0x20] sm:$0xff]
    %v3855 = vld [vmem:[#allocation9 + $0x28] sm:$0xff]
    %v3856 = vld [vmem:[#allocation9 + $0x30] sm:$0xff]
    %v3857 = vld [vmem:[#allocation9 + $0x38] sm:$0xff]
    %v3858 = vld [vmem:[#allocation9 + $0x40] sm:$0xff]
    %v3859 = vld [vmem:[#allocation9 + $0x48] sm:$0xff]
    %v3860 = vld [vmem:[#allocation9 + $0x50] sm:$0xff]
    %v3861 = vld [vmem:[#allocation9 + $0x58] sm:$0xff]
    %v3862 = vld [vmem:[#allocation9 + $0x60] sm:$0xff]
    %v3863 = vld [vmem:[#allocation9 + $0x68] sm:$0xff]
    %v3864 = vld [vmem:[#allocation9 + $0x70] sm:$0xff]
    %v3865 = vld [vmem:[#allocation9 + $0x78] sm:$0xff]
    %v3866 = vld [vmem:[%s10] sm:$0x1]
    %v3868 = vperm.slane %v3866, 0
    %3870 = vmatpush.msra.mxu0 %v3865
    %3871 = vmatpush.msra.mxu0 %v3864
    %3872 = vmatpush.msra.mxu0 %v3863
    %3873 = vmatpush.msra.mxu0 %v3862
    %3874 = vmatpush.msra.mxu0 %v3861
    %3875 = vmatpush.msra.mxu0 %v3860
    %3876 = vmatpush.msra.mxu0 %v3859
    %3877 = vmatpush.msra.mxu0 %v3858
    %3878 = vmatpush.msra.mxu0 %v3857
    %3879 = vmatpush.msra.mxu0 %v3856
    %3880 = vmatpush.msra.mxu0 %v3855
    %3881 = vmatpush.msra.mxu0 %v3854
    %3882 = vmatpush.msra.mxu0 %v3853
    %3883 = vmatpush.msra.mxu0 %v3852
    %3884 = vmatpush.msra.mxu0 %v3851
    %3885 = vmatpush.msra.mxu0 %v3850
    %3886 = vmatmul.f32.gmra.mxu0 %v3849
    %v3887 = vpop.f32.mrf.mxu0
    %v3888 = vadd.f32 %v3868, %v3887
    %3889 = vdwg.mxu0
    %3890 = vst [vmem:[%s11] sm:$0xff] %v3888
    // Predicated region
    $region58: #{my_model_forward.1} parent=1 // pred_check
      _
    $region59: #{my_model_forward.1} parent=1 // pred_check_branch
      %3892 = sbr.rel (0) target = $region61
    $region60: #{my_model_forward.1} parent=1 // pred_region
      _
    $region61: #{my_model_forward.1} parent=1 // pred_fallthru
      _
    // Predicated region
    $region62: #{my_model_forward.1} parent=1 // pred_check
      _
    $region63: #{my_model_forward.1} parent=1 // pred_check_branch
      %3894 = sbr.rel (0) target = $region65
    $region64: #{my_model_forward.1} parent=1 // pred_region
      _
    $region65: #{my_model_forward.1} parent=1 // pred_fallthru
      _
    %3895 = vsyncpa [#allocation6], 1
    %3896 = vsyncpa [#allocation8], 1

</llo_original>
